<compile_context>
chip_gen: v7x
topology: tpu7x:2x2x1
jax: 0.10.0
libtpu: 0.0.40
codegen_flags: <defaults>
</compile_context>

<pallas_src>
import math
import jax
import jax.numpy as jnp
from jax.experimental import pallas as pl
from jax.experimental.pallas import tpu as pltpu

# ---- problem sizes (small, consistent with the module) -----------------------
EMBED = 32
NUM_HEADS = 4
HEAD_DIM = EMBED // NUM_HEADS          # 8
FWD_EXP = 4
HIDDEN = FWD_EXP * EMBED               # 128
SEQ = 8
BATCH = 2
LN_EPS = 1e-5


def _layer_norm(x, gamma, beta):
    mean = jnp.mean(x, axis=-1, keepdims=True)
    var = jnp.mean((x - mean) ** 2, axis=-1, keepdims=True)   # biased, like PyTorch
    return (x - mean) * jax.lax.rsqrt(var + LN_EPS) * gamma + beta


# ---- the fused Pallas kernel (single invocation, whole problem resident) -----
def transformer_block_kernel(qkv_ref, wproj_ref, qres_ref, w1b_ref, w2v_ref, o_ref):
    inv_scale = 1.0 / math.sqrt(EMBED)     # reference scales by sqrt(embed_size)

    qh = qkv_ref[0]                        # (Z, T, Dh)   Z = BATCH*NUM_HEADS
    kh = qkv_ref[1]
    vh = qkv_ref[2]

    # Head-batched projections on the MXU.
    #   Q/K weights are zero-padded (Dh -> E) so the score contraction over E is exact.
    #   V weight already has fc_out folded in:  Wvo[h] = Wv^T @ Wo^T[h*Dh:(h+1)*Dh, :].
    qp = jnp.einsum('ztd,zde->zte', qh, wproj_ref[0],
                    preferred_element_type=jnp.float32)          # (Z, T, E)
    kp = jnp.einsum('ztd,zde->zte', kh, wproj_ref[1],
                    preferred_element_type=jnp.float32)          # (Z, T, E)
    vpo = jnp.einsum('ztd,zde->zte', vh, wproj_ref[2],
                     preferred_element_type=jnp.float32)         # (Z, T, E)

    # Attention (mask=None path), softmax over keys.
    s = jnp.einsum('zqe,zke->zqk', qp, kp,
                   preferred_element_type=jnp.float32) * inv_scale   # (Z, T, T)
    s = s - jnp.max(s, axis=-1, keepdims=True)
    p = jnp.exp(s)
    a = p * pl.reciprocal(jnp.sum(p, axis=-1, keepdims=True), approx=True)
    ctxo = jnp.einsum('zqk,zke->zqe', a, vpo,
                      preferred_element_type=jnp.float32)        # (Z, T, E), fc_out applied

    # fc_out is linear per head, so the full projection is just the sum over heads.
    per_batch = []
    for b in range(BATCH):                                       # static, tiny
        acc = ctxo[b * NUM_HEADS]
        for h in range(1, NUM_HEADS):
            acc = acc + ctxo[b * NUM_HEADS + h]
        per_batch.append(acc)                                    # (T, E)
    attn = jnp.concatenate(per_batch, axis=0)                    # (B*T, E), sublane-aligned

    # Packed small vectors (one aligned load, then row views).
    tail = w2v_ref[HIDDEN:HIDDEN + 6, :]                         # (6, E)
    bo, g1, be1, b2, g2, be2 = (tail[i:i + 1, :] for i in range(6))

    # residual + LayerNorm 1   (dropout == identity in eval)
    x = _layer_norm(attn + bo + qres_ref[...], g1, be1)          # (B*T, E)

    # FeedForward: relu(x W1^T + b1) W2^T + b2
    h1 = jnp.dot(x, w1b_ref[0:EMBED, :],
                 preferred_element_type=jnp.float32) + w1b_ref[EMBED:EMBED + 1, :]
    h1 = jnp.maximum(h1, 0.0)                                    # (B*T, HIDDEN)
    ff = jnp.dot(h1, w2v_ref[0:HIDDEN, :],
                 preferred_element_type=jnp.float32) + b2        # (B*T, E)

    # residual + LayerNorm 2
    o_ref[...] = _layer_norm(ff + x, g2, be2)


# ---- plain-JAX wrapper: parameter/layout plumbing + pallas_call ---------------
def transformer_block(value, key, query, params):
    B, T, E = query.shape
    H, Dh = NUM_HEADS, HEAD_DIM
    Z = B * H

    # head-split activations: (B,T,E) -> (B,H,T,Dh) -> (Z,T,Dh)   (layout plumbing, not compute)
    def to_heads(x):
        return x.reshape(B, T, H, Dh).transpose(0, 2, 1, 3).reshape(Z, T, Dh)

    qkv_h = jnp.stack([to_heads(query), to_heads(key), to_heads(value)])   # (3, Z, T, Dh)

    # batched projection weights (3, Z, Dh, E)
    pad = jnp.zeros((Dh, E - Dh), jnp.float32)
    wq_p = jnp.concatenate([params['Wq'].T, pad], axis=1)                  # (Dh, E)
    wk_p = jnp.concatenate([params['Wk'].T, pad], axis=1)                  # (Dh, E)
    woT = params['Wo'].T                                                   # (E, E)
    wvo = jnp.stack([params['Wv'].T @ woT[h * Dh:(h + 1) * Dh, :]
                     for h in range(H)])                                   # (H, Dh, E)
    wproj = jnp.stack([jnp.tile(wq_p[None], (Z, 1, 1)),
                       jnp.tile(wk_p[None], (Z, 1, 1)),
                       jnp.tile(wvo, (B, 1, 1))])                          # (3, Z, Dh, E)

    qres = query.reshape(B * T, E)                                         # residual input

    w1b = jnp.concatenate([params['W1'].T,
                           params['b1'].reshape(1, HIDDEN)], axis=0)       # (E+1, HIDDEN)
    w2v = jnp.concatenate([params['W2'].T,
                           params['bo'].reshape(1, E),
                           params['g1'].reshape(1, E),
                           params['be1'].reshape(1, E),
                           params['b2'].reshape(1, E),
                           params['g2'].reshape(1, E),
                           params['be2'].reshape(1, E)], axis=0)           # (HIDDEN+6, E)

    out_flat = pl.pallas_call(
        transformer_block_kernel,
        out_shape=jax.ShapeDtypeStruct((B * T, E), jnp.float32),
        grid_spec=pltpu.PrefetchScalarGridSpec(
            num_scalar_prefetch=0,
            grid=(1,),
            in_specs=[
                pl.BlockSpec((3, Z, T, Dh), lambda i: (0, 0, 0, 0)),
                pl.BlockSpec((3, Z, Dh, E), lambda i: (0, 0, 0, 0)),
                pl.BlockSpec((B * T, E), lambda i: (0, 0)),
                pl.BlockSpec((E + 1, HIDDEN), lambda i: (0, 0)),
                pl.BlockSpec((HIDDEN + 6, E), lambda i: (0, 0)),
            ],
            out_specs=pl.BlockSpec((B * T, E), lambda i: (0, 0)),
        ),
    )(qkv_h, wproj, qres, w1b, w2v)
    return out_flat.reshape(B, T, E)


# ---- pure-JAX reference (same math) for a correctness check ------------------
def reference(value, key_, query, params):
    B, T, E = query.shape
    H, Dh = NUM_HEADS, HEAD_DIM

    def per_head_proj(x, W):
        xh = x.reshape(B, T, H, Dh)
        return jnp.einsum('blhd,ed->blhe', xh, W)   # y = x @ W^T per head

    Qp = per_head_proj(query, params['Wq'])
    Kp = per_head_proj(key_, params['Wk'])
    Vp = per_head_proj(value, params['Wv'])
    energy = jnp.einsum('nqhd,nkhd->nhqk', Qp, Kp)
    attn = jax.nn.softmax(energy / math.sqrt(E), axis=-1)
    out = jnp.einsum('nhqk,nkhd->nqhd', attn, Vp).reshape(B, T, E)
    out = out @ params['Wo'].T + params['bo']
    x = _layer_norm(out + query, params['g1'], params['be1'])
    ff = jax.nn.relu(x @ params['W1'].T + params['b1']) @ params['W2'].T + params['b2']
    return _layer_norm(ff + x, params['g2'], params['be2'])


if __name__ == "__main__":
    root = jax.random.PRNGKey(0)
    ks = jax.random.split(root, 12)

    def uni(k, shape, fan_in):
        bound = 1.0 / math.sqrt(fan_in)
        return jax.random.uniform(k, shape, jnp.float32, -bound, bound)

    params = dict(
        Wq=uni(ks[0], (HEAD_DIM, HEAD_DIM), HEAD_DIM),
        Wk=uni(ks[1], (HEAD_DIM, HEAD_DIM), HEAD_DIM),
        Wv=uni(ks[2], (HEAD_DIM, HEAD_DIM), HEAD_DIM),
        Wo=uni(ks[3], (EMBED, EMBED), EMBED),
        bo=uni(ks[4], (EMBED,), EMBED),
        W1=uni(ks[5], (HIDDEN, EMBED), EMBED),
        b1=uni(ks[6], (HIDDEN,), EMBED),
        W2=uni(ks[7], (EMBED, HIDDEN), HIDDEN),
        b2=uni(ks[8], (EMBED,), HIDDEN),
        g1=jnp.ones((EMBED,), jnp.float32),
        be1=jnp.zeros((EMBED,), jnp.float32),
        g2=jnp.ones((EMBED,), jnp.float32),
        be2=jnp.zeros((EMBED,), jnp.float32),
    )

    value = jax.random.normal(ks[9], (BATCH, SEQ, EMBED), jnp.float32)
    key_in = jax.random.normal(ks[10], (BATCH, SEQ, EMBED), jnp.float32)
    query = jax.random.normal(ks[11], (BATCH, SEQ, EMBED), jnp.float32)

    out = transformer_block(value, key_in, query, params)
    out = jax.block_until_ready(out)

    ref = jax.block_until_ready(reference(value, key_in, query, params))
    assert out.shape == (BATCH, SEQ, EMBED)
    # Tolerance 2e-3 (was 1e-4) solely to cover the approximate EUP reciprocal used for the
    # softmax denominator (feedback item); everything else is exact f32.
    assert jnp.allclose(out, ref, atol=2e-3, rtol=2e-3), "kernel/reference mismatch"

    print("KERNEL_OK")
</pallas_src>

<mosaic_0001>
module attributes {stable_mosaic.version = 11 : i64} {
  func.func @transformer_block_kernel(%arg0: i32, %arg1: memref<3x8x8x8xf32, #tpu.memory_space<vmem>>, %arg2: memref<3x8x8x32xf32, #tpu.memory_space<vmem>>, %arg3: memref<16x32xf32, #tpu.memory_space<vmem>>, %arg4: memref<33x128xf32, #tpu.memory_space<vmem>>, %arg5: memref<134x32xf32, #tpu.memory_space<vmem>>, %arg6: memref<16x32xf32, #tpu.memory_space<vmem>>) attributes {dimension_semantics = [#tpu.dimension_semantics<arbitrary>], iteration_bounds = array<i64: 1>, scalar_prefetch = 0 : i64, scratch_operands = 0 : i64, tpu.core_type = #tpu.core_type<tc>, window_params = [{pipeline_mode = #tpu.pipeline_mode<synchronous>, transform_indices = @transform_0, window_bounds = array<i64: 3, 8, 8, 8>}, {pipeline_mode = #tpu.pipeline_mode<synchronous>, transform_indices = @transform_1, window_bounds = array<i64: 3, 8, 8, 32>}, {pipeline_mode = #tpu.pipeline_mode<synchronous>, transform_indices = @transform_2, window_bounds = array<i64: 16, 32>}, {pipeline_mode = #tpu.pipeline_mode<synchronous>, transform_indices = @transform_3, window_bounds = array<i64: 33, 128>}, {pipeline_mode = #tpu.pipeline_mode<synchronous>, transform_indices = @transform_4, window_bounds = array<i64: 134, 32>}, {pipeline_mode = #tpu.pipeline_mode<synchronous>, transform_indices = @transform_5, window_bounds = array<i64: 16, 32>}]} {
    %c0 = arith.constant 0 : index
    %c0_0 = arith.constant 0 : index
    %c0_1 = arith.constant 0 : index
    %c0_2 = arith.constant 0 : index
    %0 = vector.load %arg1[%c0, %c0_0, %c0_1, %c0_2] : memref<3x8x8x8xf32, #tpu.memory_space<vmem>>, vector<1x8x8x8xf32>
    %1 = vector.shape_cast %0 : vector<1x8x8x8xf32> to vector<8x8x8xf32>
    %c1 = arith.constant 1 : index
    %c0_3 = arith.constant 0 : index
    %c0_4 = arith.constant 0 : index
    %c0_5 = arith.constant 0 : index
    %2 = vector.load %arg1[%c1, %c0_3, %c0_4, %c0_5] : memref<3x8x8x8xf32, #tpu.memory_space<vmem>>, vector<1x8x8x8xf32>
    %3 = vector.shape_cast %2 : vector<1x8x8x8xf32> to vector<8x8x8xf32>
    %c2 = arith.constant 2 : index
    %c0_6 = arith.constant 0 : index
    %c0_7 = arith.constant 0 : index
    %c0_8 = arith.constant 0 : index
    %4 = vector.load %arg1[%c2, %c0_6, %c0_7, %c0_8] : memref<3x8x8x8xf32, #tpu.memory_space<vmem>>, vector<1x8x8x8xf32>
    %5 = vector.shape_cast %4 : vector<1x8x8x8xf32> to vector<8x8x8xf32>
    %c0_9 = arith.constant 0 : index
    %c0_10 = arith.constant 0 : index
    %c0_11 = arith.constant 0 : index
    %c0_12 = arith.constant 0 : index
    %6 = vector.load %arg2[%c0_9, %c0_10, %c0_11, %c0_12] : memref<3x8x8x32xf32, #tpu.memory_space<vmem>>, vector<1x8x8x32xf32>
    %7 = vector.shape_cast %6 : vector<1x8x8x32xf32> to vector<8x8x32xf32>
    "tpu.trace_start"() <{level = 10 : i32, message = "ztd,zde->zte"}> : () -> ()
    %cst = arith.constant dense<0.000000e+00> : vector<8x8x32xf32>
    %8 = tpu.matmul %1, %7, %cst {dimension_numbers = #tpu.dot_dimension_numbers<[2], [1], [1], [2], [0, 0, 0, 1, 1, 2], [0], [0]>} : vector<8x8x8xf32>, vector<8x8x32xf32>, vector<8x8x32xf32> -> vector<8x8x32xf32>
    "tpu.trace_stop"() : () -> ()
    %c1_13 = arith.constant 1 : index
    %c0_14 = arith.constant 0 : index
    %c0_15 = arith.constant 0 : index
    %c0_16 = arith.constant 0 : index
    %9 = vector.load %arg2[%c1_13, %c0_14, %c0_15, %c0_16] : memref<3x8x8x32xf32, #tpu.memory_space<vmem>>, vector<1x8x8x32xf32>
    %10 = vector.shape_cast %9 : vector<1x8x8x32xf32> to vector<8x8x32xf32>
    "tpu.trace_start"() <{level = 10 : i32, message = "ztd,zde->zte"}> : () -> ()
    %cst_17 = arith.constant dense<0.000000e+00> : vector<8x8x32xf32>
    %11 = tpu.matmul %3, %10, %cst_17 {dimension_numbers = #tpu.dot_dimension_numbers<[2], [1], [1], [2], [0, 0, 0, 1, 1, 2], [0], [0]>} : vector<8x8x8xf32>, vector<8x8x32xf32>, vector<8x8x32xf32> -> vector<8x8x32xf32>
    "tpu.trace_stop"() : () -> ()
    %c2_18 = arith.constant 2 : index
    %c0_19 = arith.constant 0 : index
    %c0_20 = arith.constant 0 : index
    %c0_21 = arith.constant 0 : index
    %12 = vector.load %arg2[%c2_18, %c0_19, %c0_20, %c0_21] : memref<3x8x8x32xf32, #tpu.memory_space<vmem>>, vector<1x8x8x32xf32>
    %13 = vector.shape_cast %12 : vector<1x8x8x32xf32> to vector<8x8x32xf32>
    "tpu.trace_start"() <{level = 10 : i32, message = "ztd,zde->zte"}> : () -> ()
    %cst_22 = arith.constant dense<0.000000e+00> : vector<8x8x32xf32>
    %14 = tpu.matmul %5, %13, %cst_22 {dimension_numbers = #tpu.dot_dimension_numbers<[2], [1], [1], [2], [0, 0, 0, 1, 1, 2], [0], [0]>} : vector<8x8x8xf32>, vector<8x8x32xf32>, vector<8x8x32xf32> -> vector<8x8x32xf32>
    "tpu.trace_stop"() : () -> ()
    "tpu.trace_start"() <{level = 10 : i32, message = "zqe,zke->zqk"}> : () -> ()
    %cst_23 = arith.constant dense<0.000000e+00> : vector<8x8x8xf32>
    %15 = tpu.matmul %8, %11, %cst_23 {dimension_numbers = #tpu.dot_dimension_numbers<[2], [2], [1], [1], [0, 0, 0, 1, 1, 1], [0], [0]>} : vector<8x8x32xf32>, vector<8x8x32xf32>, vector<8x8x8xf32> -> vector<8x8x8xf32>
    "tpu.trace_stop"() : () -> ()
    %cst_24 = arith.constant 0.176776692 : f32
    %16 = vector.broadcast %cst_24 : f32 to vector<8x8x8xf32>
    %17 = arith.mulf %15, %16 : vector<8x8x8xf32>
    %cst_25 = arith.constant dense<0xFF800000> : vector<8x8xf32>
    %18 = vector.multi_reduction <maximumf>, %17, %cst_25 [2] : vector<8x8x8xf32> to vector<8x8xf32>
    %19 = vector.shape_cast %18 : vector<8x8xf32> to vector<8x8x1xf32>
    %20 = vector.broadcast %19 : vector<8x8x1xf32> to vector<8x8x8xf32>
    %21 = arith.subf %17, %20 : vector<8x8x8xf32>
    %22 = math.exp %21 : vector<8x8x8xf32>
    %cst_26 = arith.constant dense<0.000000e+00> : vector<8x8xf32>
    %23 = vector.multi_reduction <add>, %22, %cst_26 [2] : vector<8x8x8xf32> to vector<8x8xf32>
    %24 = vector.shape_cast %23 : vector<8x8xf32> to vector<8x8x1xf32>
    %25 = tpu.reciprocal %24 {approx = true} : vector<8x8x1xf32> -> vector<8x8x1xf32>
    %26 = vector.broadcast %25 : vector<8x8x1xf32> to vector<8x8x8xf32>
    %27 = arith.mulf %22, %26 : vector<8x8x8xf32>
    "tpu.trace_start"() <{level = 10 : i32, message = "zqk,zke->zqe"}> : () -> ()
    %cst_27 = arith.constant dense<0.000000e+00> : vector<8x8x32xf32>
    %28 = tpu.matmul %27, %14, %cst_27 {dimension_numbers = #tpu.dot_dimension_numbers<[2], [1], [1], [2], [0, 0, 0, 1, 1, 2], [0], [0]>} : vector<8x8x8xf32>, vector<8x8x32xf32>, vector<8x8x32xf32> -> vector<8x8x32xf32>
    "tpu.trace_stop"() : () -> ()
    %29 = vector.extract_strided_slice %28 {offsets = [0, 0, 0], sizes = [1, 8, 32], strides = [1, 1, 1]} : vector<8x8x32xf32> to vector<1x8x32xf32>
    %30 = vector.shape_cast %29 : vector<1x8x32xf32> to vector<8x32xf32>
    %31 = vector.extract_strided_slice %28 {offsets = [1, 0, 0], sizes = [1, 8, 32], strides = [1, 1, 1]} : vector<8x8x32xf32> to vector<1x8x32xf32>
    %32 = vector.shape_cast %31 : vector<1x8x32xf32> to vector<8x32xf32>
    %33 = arith.addf %30, %32 : vector<8x32xf32>
    %34 = vector.extract_strided_slice %28 {offsets = [2, 0, 0], sizes = [1, 8, 32], strides = [1, 1, 1]} : vector<8x8x32xf32> to vector<1x8x32xf32>
    %35 = vector.shape_cast %34 : vector<1x8x32xf32> to vector<8x32xf32>
    %36 = arith.addf %33, %35 : vector<8x32xf32>
    %37 = vector.extract_strided_slice %28 {offsets = [3, 0, 0], sizes = [1, 8, 32], strides = [1, 1, 1]} : vector<8x8x32xf32> to vector<1x8x32xf32>
    %38 = vector.shape_cast %37 : vector<1x8x32xf32> to vector<8x32xf32>
    %39 = arith.addf %36, %38 : vector<8x32xf32>
    %40 = vector.extract_strided_slice %28 {offsets = [4, 0, 0], sizes = [1, 8, 32], strides = [1, 1, 1]} : vector<8x8x32xf32> to vector<1x8x32xf32>
    %41 = vector.shape_cast %40 : vector<1x8x32xf32> to vector<8x32xf32>
    %42 = vector.extract_strided_slice %28 {offsets = [5, 0, 0], sizes = [1, 8, 32], strides = [1, 1, 1]} : vector<8x8x32xf32> to vector<1x8x32xf32>
    %43 = vector.shape_cast %42 : vector<1x8x32xf32> to vector<8x32xf32>
    %44 = arith.addf %41, %43 : vector<8x32xf32>
    %45 = vector.extract_strided_slice %28 {offsets = [6, 0, 0], sizes = [1, 8, 32], strides = [1, 1, 1]} : vector<8x8x32xf32> to vector<1x8x32xf32>
    %46 = vector.shape_cast %45 : vector<1x8x32xf32> to vector<8x32xf32>
    %47 = arith.addf %44, %46 : vector<8x32xf32>
    %48 = vector.extract_strided_slice %28 {offsets = [7, 0, 0], sizes = [1, 8, 32], strides = [1, 1, 1]} : vector<8x8x32xf32> to vector<1x8x32xf32>
    %49 = vector.shape_cast %48 : vector<1x8x32xf32> to vector<8x32xf32>
    %50 = arith.addf %47, %49 : vector<8x32xf32>
    %51 = tpu.concatenate %39, %50 in 0 : vector<8x32xf32>, vector<8x32xf32> -> vector<16x32xf32>
    %c128 = arith.constant 128 : index
    %c0_28 = arith.constant 0 : index
    %52 = vector.load %arg5[%c128, %c0_28] : memref<134x32xf32, #tpu.memory_space<vmem>>, vector<6x32xf32>
    %53 = vector.extract_strided_slice %52 {offsets = [0, 0], sizes = [1, 32], strides = [1, 1]} : vector<6x32xf32> to vector<1x32xf32>
    %54 = vector.extract_strided_slice %52 {offsets = [1, 0], sizes = [1, 32], strides = [1, 1]} : vector<6x32xf32> to vector<1x32xf32>
    %55 = vector.extract_strided_slice %52 {offsets = [2, 0], sizes = [1, 32], strides = [1, 1]} : vector<6x32xf32> to vector<1x32xf32>
    %56 = vector.extract_strided_slice %52 {offsets = [3, 0], sizes = [1, 32], strides = [1, 1]} : vector<6x32xf32> to vector<1x32xf32>
    %57 = vector.extract_strided_slice %52 {offsets = [4, 0], sizes = [1, 32], strides = [1, 1]} : vector<6x32xf32> to vector<1x32xf32>
    %58 = vector.extract_strided_slice %52 {offsets = [5, 0], sizes = [1, 32], strides = [1, 1]} : vector<6x32xf32> to vector<1x32xf32>
    %59 = vector.broadcast %53 : vector<1x32xf32> to vector<16x32xf32>
    %60 = arith.addf %51, %59 : vector<16x32xf32>
    %c0_29 = arith.constant 0 : index
    %c0_30 = arith.constant 0 : index
    %61 = vector.load %arg3[%c0_29, %c0_30] : memref<16x32xf32, #tpu.memory_space<vmem>>, vector<16x32xf32>
    %62 = arith.addf %60, %61 : vector<16x32xf32>
    %cst_31 = arith.constant dense<0.000000e+00> : vector<16xf32>
    %63 = vector.multi_reduction <add>, %62, %cst_31 [1] : vector<16x32xf32> to vector<16xf32>
    %64 = vector.shape_cast %63 : vector<16xf32> to vector<16x1xf32>
    %cst_32 = arith.constant 3.200000e+01 : f32
    %65 = vector.broadcast %cst_32 : f32 to vector<16x1xf32>
    %66 = arith.divf %64, %65 : vector<16x1xf32>
    %67 = vector.broadcast %66 : vector<16x1xf32> to vector<16x32xf32>
    %68 = arith.subf %62, %67 : vector<16x32xf32>
    %69 = arith.mulf %68, %68 : vector<16x32xf32>
    %cst_33 = arith.constant dense<0.000000e+00> : vector<16xf32>
    %70 = vector.multi_reduction <add>, %69, %cst_33 [1] : vector<16x32xf32> to vector<16xf32>
    %71 = vector.shape_cast %70 : vector<16xf32> to vector<16x1xf32>
    %cst_34 = arith.constant 3.200000e+01 : f32
    %72 = vector.broadcast %cst_34 : f32 to vector<16x1xf32>
    %73 = arith.divf %71, %72 : vector<16x1xf32>
    %74 = vector.broadcast %66 : vector<16x1xf32> to vector<16x32xf32>
    %75 = arith.subf %62, %74 : vector<16x32xf32>
    %cst_35 = arith.constant 9.99999974E-6 : f32
    %76 = vector.broadcast %cst_35 : f32 to vector<16x1xf32>
    %77 = arith.addf %73, %76 : vector<16x1xf32>
    %78 = math.rsqrt %77 : vector<16x1xf32>
    %79 = vector.broadcast %78 : vector<16x1xf32> to vector<16x32xf32>
    %80 = arith.mulf %75, %79 : vector<16x32xf32>
    %81 = vector.broadcast %54 : vector<1x32xf32> to vector<16x32xf32>
    %82 = arith.mulf %80, %81 : vector<16x32xf32>
    %83 = vector.broadcast %55 : vector<1x32xf32> to vector<16x32xf32>
    %84 = arith.addf %82, %83 : vector<16x32xf32>
    %c0_36 = arith.constant 0 : index
    %c0_37 = arith.constant 0 : index
    %85 = vector.load %arg4[%c0_36, %c0_37] : memref<33x128xf32, #tpu.memory_space<vmem>>, vector<32x128xf32>
    %cst_38 = arith.constant dense<0.000000e+00> : vector<16x128xf32>
    %86 = tpu.matmul %84, %85, %cst_38 {dimension_numbers = #tpu.dot_dimension_numbers<[1], [0], [0], [1], [0, 0, 1, 1], [], []>} : vector<16x32xf32>, vector<32x128xf32>, vector<16x128xf32> -> vector<16x128xf32>
    %c32 = arith.constant 32 : index
    %c0_39 = arith.constant 0 : index
    %87 = vector.load %arg4[%c32, %c0_39] : memref<33x128xf32, #tpu.memory_space<vmem>>, vector<1x128xf32>
    %88 = vector.broadcast %87 : vector<1x128xf32> to vector<16x128xf32>
    %89 = arith.addf %86, %88 : vector<16x128xf32>
    %cst_40 = arith.constant 0.000000e+00 : f32
    %90 = vector.broadcast %cst_40 : f32 to vector<16x128xf32>
    %91 = arith.maximumf %89, %90 : vector<16x128xf32>
    %c0_41 = arith.constant 0 : index
    %c0_42 = arith.constant 0 : index
    %92 = vector.load %arg5[%c0_41, %c0_42] : memref<134x32xf32, #tpu.memory_space<vmem>>, vector<128x32xf32>
    %cst_43 = arith.constant dense<0.000000e+00> : vector<16x32xf32>
    %93 = tpu.matmul %91, %92, %cst_43 {dimension_numbers = #tpu.dot_dimension_numbers<[1], [0], [0], [1], [0, 0, 1, 1], [], []>} : vector<16x128xf32>, vector<128x32xf32>, vector<16x32xf32> -> vector<16x32xf32>
    %94 = vector.broadcast %56 : vector<1x32xf32> to vector<16x32xf32>
    %95 = arith.addf %93, %94 : vector<16x32xf32>
    %96 = arith.addf %95, %84 : vector<16x32xf32>
    %cst_44 = arith.constant dense<0.000000e+00> : vector<16xf32>
    %97 = vector.multi_reduction <add>, %96, %cst_44 [1] : vector<16x32xf32> to vector<16xf32>
    %98 = vector.shape_cast %97 : vector<16xf32> to vector<16x1xf32>
    %cst_45 = arith.constant 3.200000e+01 : f32
    %99 = vector.broadcast %cst_45 : f32 to vector<16x1xf32>
    %100 = arith.divf %98, %99 : vector<16x1xf32>
    %101 = vector.broadcast %100 : vector<16x1xf32> to vector<16x32xf32>
    %102 = arith.subf %96, %101 : vector<16x32xf32>
    %103 = arith.mulf %102, %102 : vector<16x32xf32>
    %cst_46 = arith.constant dense<0.000000e+00> : vector<16xf32>
    %104 = vector.multi_reduction <add>, %103, %cst_46 [1] : vector<16x32xf32> to vector<16xf32>
    %105 = vector.shape_cast %104 : vector<16xf32> to vector<16x1xf32>
    %cst_47 = arith.constant 3.200000e+01 : f32
    %106 = vector.broadcast %cst_47 : f32 to vector<16x1xf32>
    %107 = arith.divf %105, %106 : vector<16x1xf32>
    %108 = vector.broadcast %100 : vector<16x1xf32> to vector<16x32xf32>
    %109 = arith.subf %96, %108 : vector<16x32xf32>
    %cst_48 = arith.constant 9.99999974E-6 : f32
    %110 = vector.broadcast %cst_48 : f32 to vector<16x1xf32>
    %111 = arith.addf %107, %110 : vector<16x1xf32>
    %112 = math.rsqrt %111 : vector<16x1xf32>
    %113 = vector.broadcast %112 : vector<16x1xf32> to vector<16x32xf32>
    %114 = arith.mulf %109, %113 : vector<16x32xf32>
    %115 = vector.broadcast %57 : vector<1x32xf32> to vector<16x32xf32>
    %116 = arith.mulf %114, %115 : vector<16x32xf32>
    %117 = vector.broadcast %58 : vector<1x32xf32> to vector<16x32xf32>
    %118 = arith.addf %116, %117 : vector<16x32xf32>
    %c0_49 = arith.constant 0 : index
    %c0_50 = arith.constant 0 : index
    %119 = vector.load %arg6[%c0_49, %c0_50] : memref<16x32xf32, #tpu.memory_space<vmem>>, vector<16x32xf32>
    tpu.vector_store %arg6[%c0_49, %c0_50], %118 {strides = array<i32>} : memref<16x32xf32, #tpu.memory_space<vmem>>, vector<16x32xf32>,
    return
  }
  func.func @transform_0(%arg0: i32) -> (i32, i32, i32, i32) {
    %c0_i32 = arith.constant 0 : i32
    %c0_i32_0 = arith.constant 0 : i32
    %c0_i32_1 = arith.constant 0 : i32
    %c0_i32_2 = arith.constant 0 : i32
    %c0_i32_3 = arith.constant 0 : i32
    return %c0_i32, %c0_i32_0, %c0_i32_1, %c0_i32_2 : i32, i32, i32, i32
  }
  func.func @transform_1(%arg0: i32) -> (i32, i32, i32, i32) {
    %c0_i32 = arith.constant 0 : i32
    %c0_i32_0 = arith.constant 0 : i32
    %c0_i32_1 = arith.constant 0 : i32
    %c0_i32_2 = arith.constant 0 : i32
    %c0_i32_3 = arith.constant 0 : i32
    return %c0_i32, %c0_i32_0, %c0_i32_1, %c0_i32_2 : i32, i32, i32, i32
  }
  func.func @transform_2(%arg0: i32) -> (i32, i32) {
    %c0_i32 = arith.constant 0 : i32
    %c0_i32_0 = arith.constant 0 : i32
    %c0_i32_1 = arith.constant 0 : i32
    return %c0_i32, %c0_i32_0 : i32, i32
  }
  func.func @transform_3(%arg0: i32) -> (i32, i32) {
    %c0_i32 = arith.constant 0 : i32
    %c0_i32_0 = arith.constant 0 : i32
    %c0_i32_1 = arith.constant 0 : i32
    return %c0_i32, %c0_i32_0 : i32, i32
  }
  func.func @transform_4(%arg0: i32) -> (i32, i32) {
    %c0_i32 = arith.constant 0 : i32
    %c0_i32_0 = arith.constant 0 : i32
    %c0_i32_1 = arith.constant 0 : i32
    return %c0_i32, %c0_i32_0 : i32, i32
  }
  func.func @transform_5(%arg0: i32) -> (i32, i32) {
    %c0_i32 = arith.constant 0 : i32
    %c0_i32_0 = arith.constant 0 : i32
    %c0_i32_1 = arith.constant 0 : i32
    return %c0_i32, %c0_i32_0 : i32, i32
  }
}

</mosaic_0001>

<llo_original>
// kernel: tpu_custom_call.1
$region0: #{tpu_custom_call.1}
  #allocation0 [shape = 'u32[]', space=smem, size = 0x4, offset = 0x4, fixed_abs, tag = 'smem constant byte address 0x4 - core index']
  #allocation1 [shape = 'u32[144,128]{1,0:T(1,128)}', space=vmem, size = 0x12000, scoped, tag = 'internal scratch']
  %s0 = inlined_call_operand.vmem [shape: f32[3,8,8,8], index: 0, kind: input, shape index: {}]
  %s1 = inlined_call_operand.hbm [shape: f32[3,8,8,32], index: 1, kind: input, shape index: {}]
  %s2 = inlined_call_operand.hbm [shape: f32[16,32], index: 2, kind: input, shape index: {}]
  %s3 = inlined_call_operand.hbm [shape: f32[33,128], index: 3, kind: input, shape index: {}]
  %s4 = inlined_call_operand.vmem [shape: f32[134,32], index: 4, kind: input, shape index: {}]
  %s5 = inlined_call_operand.hbm [shape: f32[16,32], index: 5, kind: output, shape index: {}]
  %s6 = sld [smem:[#allocation0]]
  $region42: #{tpu_custom_call.1} parent=0
    _
  %s8 = ssub.s32 1, %s6
  %s9 = scalar_select 0, %s8, %s6
  $region1: #{tpu_custom_call.1} parent=0
    #allocation2 [shape = 'u8[98304]{0}', space=vmem, size = 0x18000, scoped, tag = 'input window, operand 1, single buffered']
    #allocation3 [shape = 's32[1]{0}', space=sflag, size = 0x4, scoped, tag = 'scoped memory for tpu_custom_call.1']
    #allocation4 [shape = 's32[1]{0}', space=sflag, size = 0x4, scoped, tag = 'scoped memory for tpu_custom_call.1']
    #allocation5 [shape = 'u8[8192]{0}', space=vmem, size = 0x2000, scoped, tag = 'input window, operand 2, single buffered']
    #allocation6 [shape = 's32[1]{0}', space=sflag, size = 0x4, scoped, tag = 'scoped memory for tpu_custom_call.1']
    #allocation7 [shape = 'u8[20480]{0}', space=vmem, size = 0x5000, scoped, tag = 'input window, operand 3, single buffered']
    #allocation8 [shape = 'u8[8192]{0}', space=vmem, size = 0x2000, scoped, tag = 'output window, operand 0, single buffered']
    %10 = vsyncpa [#allocation3], 0
    %11 = vsyncpa [#allocation6], 0
    %12 = vsyncpa [#allocation4], 0
    // Predicated region
    $region2: #{tpu_custom_call.1} parent=1 // pred_check
      _
    $region3: #{tpu_custom_call.1} parent=1 // pred_check_branch
      %14 = sbr.rel (0) target = $region5
    $region4: #{tpu_custom_call.1} parent=1 // pred_region
      _
    $region5: #{tpu_custom_call.1} parent=1 // pred_fallthru
      _
    // Predicated region
    $region6: #{tpu_custom_call.1} parent=1 // pred_check
      _
    $region7: #{tpu_custom_call.1} parent=1 // pred_check_branch
      %16 = sbr.rel (0) target = $region9
    $region8: #{tpu_custom_call.1} parent=1 // pred_region
      %s18 = ssub.s32 3072, 3072
      %19 = vsyncadd [#allocation3], %s18
      %s20 = sshll.u32 [#allocation2], 4
      %s21 = int_to_ptr.vmem [resolvable:$true] %s20
      %26 = dma.hbm_to_vmem [thread:$0]  %s1, 3072, %s21, [#allocation3], 128, 128, 8
    $region9: #{tpu_custom_call.1} parent=1 // pred_fallthru
      _
    // Predicated region
    $region10: #{tpu_custom_call.1} parent=1 // pred_check
      _
    $region11: #{tpu_custom_call.1} parent=1 // pred_check_branch
      %28 = sbr.rel (0) target = $region13
    $region12: #{tpu_custom_call.1} parent=1 // pred_region
      %s30 = ssub.s32 256, 256
      %31 = vsyncadd [#allocation6], %s30
      %s32 = sshll.u32 [#allocation5], 4
      %s33 = int_to_ptr.vmem [resolvable:$true] %s32
      %38 = dma.hbm_to_vmem [thread:$0]  %s2, 256, %s33, [#allocation6], 128, 128, 8
    $region13: #{tpu_custom_call.1} parent=1 // pred_fallthru
      _
    // Predicated region
    $region14: #{tpu_custom_call.1} parent=1 // pred_check
      _
    $region15: #{tpu_custom_call.1} parent=1 // pred_check_branch
      %40 = sbr.rel (0) target = $region17
    $region16: #{tpu_custom_call.1} parent=1 // pred_region
      %s42 = ssub.s32 640, 640
      %43 = vsyncadd [#allocation6], %s42
      %s44 = sshll.u32 [#allocation7], 4
      %s45 = int_to_ptr.vmem [resolvable:$true] %s44
      %50 = dma.hbm_to_vmem [thread:$0]  %s3, 640, %s45, [#allocation6], 128, 128, 8
    $region17: #{tpu_custom_call.1} parent=1 // pred_fallthru
      _
    // Predicated region
    $region18: #{tpu_custom_call.1} parent=1 // pred_check
      _
    $region19: #{tpu_custom_call.1} parent=1 // pred_check_branch
      %52 = sbr.rel (0) target = $region21
    $region20: #{tpu_custom_call.1} parent=1 // pred_region
      _
    $region21: #{tpu_custom_call.1} parent=1 // pred_fallthru
      _
    // Predicated region
    $region22: #{tpu_custom_call.1} parent=1 // pred_check
      _
    $region23: #{tpu_custom_call.1} parent=1 // pred_check_branch
      %54 = sbr.rel (0) target = $region25
    $region24: #{tpu_custom_call.1} parent=1 // pred_region
      %55 = dma.done [#allocation3], 3072
    $region25: #{tpu_custom_call.1} parent=1 // pred_fallthru
      _
    // Predicated region
    $region26: #{tpu_custom_call.1} parent=1 // pred_check
      _
    $region27: #{tpu_custom_call.1} parent=1 // pred_check_branch
      %57 = sbr.rel (0) target = $region29
    $region28: #{tpu_custom_call.1} parent=1 // pred_region
      %58 = dma.done [#allocation6], 256
    $region29: #{tpu_custom_call.1} parent=1 // pred_fallthru
      _
    // Predicated region
    $region30: #{tpu_custom_call.1} parent=1 // pred_check
      _
    $region31: #{tpu_custom_call.1} parent=1 // pred_check_branch
      %60 = sbr.rel (0) target = $region33
    $region32: #{tpu_custom_call.1} parent=1 // pred_region
      %61 = dma.done [#allocation6], 640
    $region33: #{tpu_custom_call.1} parent=1 // pred_fallthru
      _
    %v62 = vld [vmem:[%s0] sm:$0xff]
    %v63 = vld [vmem:[%s0 + $0x8] sm:$0xff]
    %v64 = vld [vmem:[%s0 + $0x10] sm:$0xff]
    %v65 = vld [vmem:[%s0 + $0x18] sm:$0xff]
    %v66 = vld [vmem:[%s0 + $0x20] sm:$0xff]
    %v67 = vld [vmem:[%s0 + $0x28] sm:$0xff]
    %v68 = vld [vmem:[%s0 + $0x30] sm:$0xff]
    %v69 = vld [vmem:[%s0 + $0x38] sm:$0xff]
    %s70 = scalar_lea.vmem %s0, 64
    %v71 = vld [vmem:[%s70] sm:$0xff]
    %v72 = vld [vmem:[%s70 + $0x8] sm:$0xff]
    %v73 = vld [vmem:[%s70 + $0x10] sm:$0xff]
    %v74 = vld [vmem:[%s70 + $0x18] sm:$0xff]
    %v75 = vld [vmem:[%s70 + $0x20] sm:$0xff]
    %v76 = vld [vmem:[%s70 + $0x28] sm:$0xff]
    %v77 = vld [vmem:[%s70 + $0x30] sm:$0xff]
    %v78 = vld [vmem:[%s70 + $0x38] sm:$0xff]
    %s79 = scalar_lea.vmem %s0, 128
    %v80 = vld [vmem:[%s79] sm:$0xff]
    %v81 = vld [vmem:[%s79 + $0x8] sm:$0xff]
    %v82 = vld [vmem:[%s79 + $0x10] sm:$0xff]
    %v83 = vld [vmem:[%s79 + $0x18] sm:$0xff]
    %v84 = vld [vmem:[%s79 + $0x20] sm:$0xff]
    %v85 = vld [vmem:[%s79 + $0x28] sm:$0xff]
    %v86 = vld [vmem:[%s79 + $0x30] sm:$0xff]
    %v87 = vld [vmem:[%s79 + $0x38] sm:$0xff]
    %v88 = vld [vmem:[#allocation2] sm:$0xff]
    %v89 = vld [vmem:[#allocation2 + $0x8] sm:$0xff]
    %v90 = vld [vmem:[#allocation2 + $0x10] sm:$0xff]
    %v91 = vld [vmem:[#allocation2 + $0x18] sm:$0xff]
    %v92 = vld [vmem:[#allocation2 + $0x20] sm:$0xff]
    %v93 = vld [vmem:[#allocation2 + $0x28] sm:$0xff]
    %v94 = vld [vmem:[#allocation2 + $0x30] sm:$0xff]
    %v95 = vld [vmem:[#allocation2 + $0x38] sm:$0xff]
    %vm96 = vcmask 64512
    %v98 = vsel %vm96, %v62, 0
    %100 = vmatprep.subr.mxu0 0.0
    %101 = vmatpush1.msra.mxu0 %v88
    %102 = vmatprep.subr.mxu0 0.0
    %103 = vmatpush1.msra.mxu0 0.0
    %104 = vmatprep.subr.mxu0 0.0
    %105 = vmatpush1.msra.mxu0 0.0
    %106 = vmatprep.subr.mxu0 0.0
    %107 = vmatpush1.msra.mxu0 0.0
    %108 = vmatprep.subr.mxu0 0.0
    %109 = vmatpush1.msra.mxu0 0.0
    %110 = vmatprep.subr.mxu0 0.0
    %111 = vmatpush1.msra.mxu0 0.0
    %112 = vmatprep.subr.mxu0 0.0
    %113 = vmatpush1.msra.mxu0 0.0
    %114 = vmatprep.subr.mxu0 0.0
    %115 = vmatpush1.msra.mxu0 0.0
    %116 = vmatprep.subr.mxu0 0.0
    %117 = vmatpush1.msra.mxu0 0.0
    %118 = vmatprep.subr.mxu0 0.0
    %119 = vmatpush1.msra.mxu0 0.0
    %120 = vmatprep.subr.mxu0 0.0
    %121 = vmatpush1.msra.mxu0 0.0
    %122 = vmatprep.subr.mxu0 0.0
    %123 = vmatpush1.msra.mxu0 0.0
    %124 = vmatprep.subr.mxu0 0.0
    %125 = vmatpush1.msra.mxu0 0.0
    %126 = vmatprep.subr.mxu0 0.0
    %127 = vmatpush1.msra.mxu0 0.0
    %128 = vmatprep.subr.mxu0 0.0
    %129 = vmatpush1.msra.mxu0 0.0
    %130 = vmatprep.subr.mxu0 0.0
    %131 = vmatpush1.msra.mxu0 0.0
    %132 = vmatprep.subr.mxu0 0.0
    %133 = vmatpush1.msra.mxu0 0.0
    %134 = vmatprep.subr.mxu0 0.0
    %135 = vmatpush1.msra.mxu0 0.0
    %136 = vmatprep.subr.mxu0 0.0
    %137 = vmatpush1.msra.mxu0 0.0
    %138 = vmatprep.subr.mxu0 0.0
    %139 = vmatpush1.msra.mxu0 0.0
    %140 = vmatprep.subr.mxu0 0.0
    %141 = vmatpush1.msra.mxu0 0.0
    %142 = vmatprep.subr.mxu0 0.0
    %143 = vmatpush1.msra.mxu0 0.0
    %144 = vmatprep.subr.mxu0 0.0
    %145 = vmatpush1.msra.mxu0 0.0
    %146 = vmatprep.subr.mxu0 0.0
    %147 = vmatpush1.msra.mxu0 0.0
    %148 = vmatprep.subr.mxu0 0.0
    %149 = vmatpush1.msra.mxu0 0.0
    %150 = vmatprep.subr.mxu0 0.0
    %151 = vmatpush1.msra.mxu0 0.0
    %152 = vmatprep.subr.mxu0 0.0
    %153 = vmatpush1.msra.mxu0 0.0
    %154 = vmatprep.subr.mxu0 0.0
    %155 = vmatpush1.msra.mxu0 0.0
    %156 = vmatprep.subr.mxu0 0.0
    %157 = vmatpush1.msra.mxu0 0.0
    %158 = vmatprep.subr.mxu0 0.0
    %159 = vmatpush1.msra.mxu0 0.0
    %160 = vmatprep.subr.mxu0 0.0
    %161 = vmatpush1.msra.mxu0 0.0
    %162 = vmatprep.subr.mxu0 0.0
    %163 = vmatpush1.msra.mxu0 0.0
    %164 = vmatprep.mubr.f32.mxu0 0.0
    %165 = vmatmul.mubr.f32.gmra.mrb[0].mxu0 %v98
    %v166 = vpop.f32.mrb[0].mxu0
    %v167 = vadd.f32 0.0, %v166
    %v168 = vpop.f32.mrb[0].mxu0
    %169 = vdwg.mxu0
    %v171 = vsel %vm96, %v63, 0
    %173 = vmatprep.subr.mxu0 0.0
    %174 = vmatpush1.msra.mxu0 %v89
    %175 = vmatprep.subr.mxu0 0.0
    %176 = vmatpush1.msra.mxu0 0.0
    %177 = vmatprep.subr.mxu0 0.0
    %178 = vmatpush1.msra.mxu0 0.0
    %179 = vmatprep.subr.mxu0 0.0
    %180 = vmatpush1.msra.mxu0 0.0
    %181 = vmatprep.subr.mxu0 0.0
    %182 = vmatpush1.msra.mxu0 0.0
    %183 = vmatprep.subr.mxu0 0.0
    %184 = vmatpush1.msra.mxu0 0.0
    %185 = vmatprep.subr.mxu0 0.0
    %186 = vmatpush1.msra.mxu0 0.0
    %187 = vmatprep.subr.mxu0 0.0
    %188 = vmatpush1.msra.mxu0 0.0
    %189 = vmatprep.subr.mxu0 0.0
    %190 = vmatpush1.msra.mxu0 0.0
    %191 = vmatprep.subr.mxu0 0.0
    %192 = vmatpush1.msra.mxu0 0.0
    %193 = vmatprep.subr.mxu0 0.0
    %194 = vmatpush1.msra.mxu0 0.0
    %195 = vmatprep.subr.mxu0 0.0
    %196 = vmatpush1.msra.mxu0 0.0
    %197 = vmatprep.subr.mxu0 0.0
    %198 = vmatpush1.msra.mxu0 0.0
    %199 = vmatprep.subr.mxu0 0.0
    %200 = vmatpush1.msra.mxu0 0.0
    %201 = vmatprep.subr.mxu0 0.0
    %202 = vmatpush1.msra.mxu0 0.0
    %203 = vmatprep.subr.mxu0 0.0
    %204 = vmatpush1.msra.mxu0 0.0
    %205 = vmatprep.subr.mxu0 0.0
    %206 = vmatpush1.msra.mxu0 0.0
    %207 = vmatprep.subr.mxu0 0.0
    %208 = vmatpush1.msra.mxu0 0.0
    %209 = vmatprep.subr.mxu0 0.0
    %210 = vmatpush1.msra.mxu0 0.0
    %211 = vmatprep.subr.mxu0 0.0
    %212 = vmatpush1.msra.mxu0 0.0
    %213 = vmatprep.subr.mxu0 0.0
    %214 = vmatpush1.msra.mxu0 0.0
    %215 = vmatprep.subr.mxu0 0.0
    %216 = vmatpush1.msra.mxu0 0.0
    %217 = vmatprep.subr.mxu0 0.0
    %218 = vmatpush1.msra.mxu0 0.0
    %219 = vmatprep.subr.mxu0 0.0
    %220 = vmatpush1.msra.mxu0 0.0
    %221 = vmatprep.subr.mxu0 0.0
    %222 = vmatpush1.msra.mxu0 0.0
    %223 = vmatprep.subr.mxu0 0.0
    %224 = vmatpush1.msra.mxu0 0.0
    %225 = vmatprep.subr.mxu0 0.0
    %226 = vmatpush1.msra.mxu0 0.0
    %227 = vmatprep.subr.mxu0 0.0
    %228 = vmatpush1.msra.mxu0 0.0
    %229 = vmatprep.subr.mxu0 0.0
    %230 = vmatpush1.msra.mxu0 0.0
    %231 = vmatprep.subr.mxu0 0.0
    %232 = vmatpush1.msra.mxu0 0.0
    %233 = vmatprep.subr.mxu0 0.0
    %234 = vmatpush1.msra.mxu0 0.0
    %235 = vmatprep.subr.mxu0 0.0
    %236 = vmatpush1.msra.mxu0 0.0
    %237 = vmatprep.mubr.f32.mxu0 0.0
    %238 = vmatmul.mubr.f32.gmra.mrb[0].mxu0 %v171
    %v239 = vpop.f32.mrb[0].mxu0
    %v240 = vadd.f32 0.0, %v239
    %v241 = vpop.f32.mrb[0].mxu0
    %242 = vdwg.mxu0
    %v244 = vsel %vm96, %v64, 0
    %246 = vmatprep.subr.mxu0 0.0
    %247 = vmatpush1.msra.mxu0 %v90
    %248 = vmatprep.subr.mxu0 0.0
    %249 = vmatpush1.msra.mxu0 0.0
    %250 = vmatprep.subr.mxu0 0.0
    %251 = vmatpush1.msra.mxu0 0.0
    %252 = vmatprep.subr.mxu0 0.0
    %253 = vmatpush1.msra.mxu0 0.0
    %254 = vmatprep.subr.mxu0 0.0
    %255 = vmatpush1.msra.mxu0 0.0
    %256 = vmatprep.subr.mxu0 0.0
    %257 = vmatpush1.msra.mxu0 0.0
    %258 = vmatprep.subr.mxu0 0.0
    %259 = vmatpush1.msra.mxu0 0.0
    %260 = vmatprep.subr.mxu0 0.0
    %261 = vmatpush1.msra.mxu0 0.0
    %262 = vmatprep.subr.mxu0 0.0
    %263 = vmatpush1.msra.mxu0 0.0
    %264 = vmatprep.subr.mxu0 0.0
    %265 = vmatpush1.msra.mxu0 0.0
    %266 = vmatprep.subr.mxu0 0.0
    %267 = vmatpush1.msra.mxu0 0.0
    %268 = vmatprep.subr.mxu0 0.0
    %269 = vmatpush1.msra.mxu0 0.0
    %270 = vmatprep.subr.mxu0 0.0
    %271 = vmatpush1.msra.mxu0 0.0
    %272 = vmatprep.subr.mxu0 0.0
    %273 = vmatpush1.msra.mxu0 0.0
    %274 = vmatprep.subr.mxu0 0.0
    %275 = vmatpush1.msra.mxu0 0.0
    %276 = vmatprep.subr.mxu0 0.0
    %277 = vmatpush1.msra.mxu0 0.0
    %278 = vmatprep.subr.mxu0 0.0
    %279 = vmatpush1.msra.mxu0 0.0
    %280 = vmatprep.subr.mxu0 0.0
    %281 = vmatpush1.msra.mxu0 0.0
    %282 = vmatprep.subr.mxu0 0.0
    %283 = vmatpush1.msra.mxu0 0.0
    %284 = vmatprep.subr.mxu0 0.0
    %285 = vmatpush1.msra.mxu0 0.0
    %286 = vmatprep.subr.mxu0 0.0
    %287 = vmatpush1.msra.mxu0 0.0
    %288 = vmatprep.subr.mxu0 0.0
    %289 = vmatpush1.msra.mxu0 0.0
    %290 = vmatprep.subr.mxu0 0.0
    %291 = vmatpush1.msra.mxu0 0.0
    %292 = vmatprep.subr.mxu0 0.0
    %293 = vmatpush1.msra.mxu0 0.0
    %294 = vmatprep.subr.mxu0 0.0
    %295 = vmatpush1.msra.mxu0 0.0
    %296 = vmatprep.subr.mxu0 0.0
    %297 = vmatpush1.msra.mxu0 0.0
    %298 = vmatprep.subr.mxu0 0.0
    %299 = vmatpush1.msra.mxu0 0.0
    %300 = vmatprep.subr.mxu0 0.0
    %301 = vmatpush1.msra.mxu0 0.0
    %302 = vmatprep.subr.mxu0 0.0
    %303 = vmatpush1.msra.mxu0 0.0
    %304 = vmatprep.subr.mxu0 0.0
    %305 = vmatpush1.msra.mxu0 0.0
    %306 = vmatprep.subr.mxu0 0.0
    %307 = vmatpush1.msra.mxu0 0.0
    %308 = vmatprep.subr.mxu0 0.0
    %309 = vmatpush1.msra.mxu0 0.0
    %310 = vmatprep.mubr.f32.mxu0 0.0
    %311 = vmatmul.mubr.f32.gmra.mrb[0].mxu0 %v244
    %v312 = vpop.f32.mrb[0].mxu0
    %v313 = vadd.f32 0.0, %v312
    %v314 = vpop.f32.mrb[0].mxu0
    %315 = vdwg.mxu0
    %v317 = vsel %vm96, %v65, 0
    %319 = vmatprep.subr.mxu0 0.0
    %320 = vmatpush1.msra.mxu0 %v91
    %321 = vmatprep.subr.mxu0 0.0
    %322 = vmatpush1.msra.mxu0 0.0
    %323 = vmatprep.subr.mxu0 0.0
    %324 = vmatpush1.msra.mxu0 0.0
    %325 = vmatprep.subr.mxu0 0.0
    %326 = vmatpush1.msra.mxu0 0.0
    %327 = vmatprep.subr.mxu0 0.0
    %328 = vmatpush1.msra.mxu0 0.0
    %329 = vmatprep.subr.mxu0 0.0
    %330 = vmatpush1.msra.mxu0 0.0
    %331 = vmatprep.subr.mxu0 0.0
    %332 = vmatpush1.msra.mxu0 0.0
    %333 = vmatprep.subr.mxu0 0.0
    %334 = vmatpush1.msra.mxu0 0.0
    %335 = vmatprep.subr.mxu0 0.0
    %336 = vmatpush1.msra.mxu0 0.0
    %337 = vmatprep.subr.mxu0 0.0
    %338 = vmatpush1.msra.mxu0 0.0
    %339 = vmatprep.subr.mxu0 0.0
    %340 = vmatpush1.msra.mxu0 0.0
    %341 = vmatprep.subr.mxu0 0.0
    %342 = vmatpush1.msra.mxu0 0.0
    %343 = vmatprep.subr.mxu0 0.0
    %344 = vmatpush1.msra.mxu0 0.0
    %345 = vmatprep.subr.mxu0 0.0
    %346 = vmatpush1.msra.mxu0 0.0
    %347 = vmatprep.subr.mxu0 0.0
    %348 = vmatpush1.msra.mxu0 0.0
    %349 = vmatprep.subr.mxu0 0.0
    %350 = vmatpush1.msra.mxu0 0.0
    %351 = vmatprep.subr.mxu0 0.0
    %352 = vmatpush1.msra.mxu0 0.0
    %353 = vmatprep.subr.mxu0 0.0
    %354 = vmatpush1.msra.mxu0 0.0
    %355 = vmatprep.subr.mxu0 0.0
    %356 = vmatpush1.msra.mxu0 0.0
    %357 = vmatprep.subr.mxu0 0.0
    %358 = vmatpush1.msra.mxu0 0.0
    %359 = vmatprep.subr.mxu0 0.0
    %360 = vmatpush1.msra.mxu0 0.0
    %361 = vmatprep.subr.mxu0 0.0
    %362 = vmatpush1.msra.mxu0 0.0
    %363 = vmatprep.subr.mxu0 0.0
    %364 = vmatpush1.msra.mxu0 0.0
    %365 = vmatprep.subr.mxu0 0.0
    %366 = vmatpush1.msra.mxu0 0.0
    %367 = vmatprep.subr.mxu0 0.0
    %368 = vmatpush1.msra.mxu0 0.0
    %369 = vmatprep.subr.mxu0 0.0
    %370 = vmatpush1.msra.mxu0 0.0
    %371 = vmatprep.subr.mxu0 0.0
    %372 = vmatpush1.msra.mxu0 0.0
    %373 = vmatprep.subr.mxu0 0.0
    %374 = vmatpush1.msra.mxu0 0.0
    %375 = vmatprep.subr.mxu0 0.0
    %376 = vmatpush1.msra.mxu0 0.0
    %377 = vmatprep.subr.mxu0 0.0
    %378 = vmatpush1.msra.mxu0 0.0
    %379 = vmatprep.subr.mxu0 0.0
    %380 = vmatpush1.msra.mxu0 0.0
    %381 = vmatprep.subr.mxu0 0.0
    %382 = vmatpush1.msra.mxu0 0.0
    %383 = vmatprep.mubr.f32.mxu0 0.0
    %384 = vmatmul.mubr.f32.gmra.mrb[0].mxu0 %v317
    %v385 = vpop.f32.mrb[0].mxu0
    %v386 = vadd.f32 0.0, %v385
    %v387 = vpop.f32.mrb[0].mxu0
    %388 = vdwg.mxu0
    %v390 = vsel %vm96, %v66, 0
    %392 = vmatprep.subr.mxu0 0.0
    %393 = vmatpush1.msra.mxu0 %v92
    %394 = vmatprep.subr.mxu0 0.0
    %395 = vmatpush1.msra.mxu0 0.0
    %396 = vmatprep.subr.mxu0 0.0
    %397 = vmatpush1.msra.mxu0 0.0
    %398 = vmatprep.subr.mxu0 0.0
    %399 = vmatpush1.msra.mxu0 0.0
    %400 = vmatprep.subr.mxu0 0.0
    %401 = vmatpush1.msra.mxu0 0.0
    %402 = vmatprep.subr.mxu0 0.0
    %403 = vmatpush1.msra.mxu0 0.0
    %404 = vmatprep.subr.mxu0 0.0
    %405 = vmatpush1.msra.mxu0 0.0
    %406 = vmatprep.subr.mxu0 0.0
    %407 = vmatpush1.msra.mxu0 0.0
    %408 = vmatprep.subr.mxu0 0.0
    %409 = vmatpush1.msra.mxu0 0.0
    %410 = vmatprep.subr.mxu0 0.0
    %411 = vmatpush1.msra.mxu0 0.0
    %412 = vmatprep.subr.mxu0 0.0
    %413 = vmatpush1.msra.mxu0 0.0
    %414 = vmatprep.subr.mxu0 0.0
    %415 = vmatpush1.msra.mxu0 0.0
    %416 = vmatprep.subr.mxu0 0.0
    %417 = vmatpush1.msra.mxu0 0.0
    %418 = vmatprep.subr.mxu0 0.0
    %419 = vmatpush1.msra.mxu0 0.0
    %420 = vmatprep.subr.mxu0 0.0
    %421 = vmatpush1.msra.mxu0 0.0
    %422 = vmatprep.subr.mxu0 0.0
    %423 = vmatpush1.msra.mxu0 0.0
    %424 = vmatprep.subr.mxu0 0.0
    %425 = vmatpush1.msra.mxu0 0.0
    %426 = vmatprep.subr.mxu0 0.0
    %427 = vmatpush1.msra.mxu0 0.0
    %428 = vmatprep.subr.mxu0 0.0
    %429 = vmatpush1.msra.mxu0 0.0
    %430 = vmatprep.subr.mxu0 0.0
    %431 = vmatpush1.msra.mxu0 0.0
    %432 = vmatprep.subr.mxu0 0.0
    %433 = vmatpush1.msra.mxu0 0.0
    %434 = vmatprep.subr.mxu0 0.0
    %435 = vmatpush1.msra.mxu0 0.0
    %436 = vmatprep.subr.mxu0 0.0
    %437 = vmatpush1.msra.mxu0 0.0
    %438 = vmatprep.subr.mxu0 0.0
    %439 = vmatpush1.msra.mxu0 0.0
    %440 = vmatprep.subr.mxu0 0.0
    %441 = vmatpush1.msra.mxu0 0.0
    %442 = vmatprep.subr.mxu0 0.0
    %443 = vmatpush1.msra.mxu0 0.0
    %444 = vmatprep.subr.mxu0 0.0
    %445 = vmatpush1.msra.mxu0 0.0
    %446 = vmatprep.subr.mxu0 0.0
    %447 = vmatpush1.msra.mxu0 0.0
    %448 = vmatprep.subr.mxu0 0.0
    %449 = vmatpush1.msra.mxu0 0.0
    %450 = vmatprep.subr.mxu0 0.0
    %451 = vmatpush1.msra.mxu0 0.0
    %452 = vmatprep.subr.mxu0 0.0
    %453 = vmatpush1.msra.mxu0 0.0
    %454 = vmatprep.subr.mxu0 0.0
    %455 = vmatpush1.msra.mxu0 0.0
    %456 = vmatprep.mubr.f32.mxu0 0.0
    %457 = vmatmul.mubr.f32.gmra.mrb[0].mxu0 %v390
    %v458 = vpop.f32.mrb[0].mxu0
    %v459 = vadd.f32 0.0, %v458
    %v460 = vpop.f32.mrb[0].mxu0
    %461 = vdwg.mxu0
    %v463 = vsel %vm96, %v67, 0
    %465 = vmatprep.subr.mxu0 0.0
    %466 = vmatpush1.msra.mxu0 %v93
    %467 = vmatprep.subr.mxu0 0.0
    %468 = vmatpush1.msra.mxu0 0.0
    %469 = vmatprep.subr.mxu0 0.0
    %470 = vmatpush1.msra.mxu0 0.0
    %471 = vmatprep.subr.mxu0 0.0
    %472 = vmatpush1.msra.mxu0 0.0
    %473 = vmatprep.subr.mxu0 0.0
    %474 = vmatpush1.msra.mxu0 0.0
    %475 = vmatprep.subr.mxu0 0.0
    %476 = vmatpush1.msra.mxu0 0.0
    %477 = vmatprep.subr.mxu0 0.0
    %478 = vmatpush1.msra.mxu0 0.0
    %479 = vmatprep.subr.mxu0 0.0
    %480 = vmatpush1.msra.mxu0 0.0
    %481 = vmatprep.subr.mxu0 0.0
    %482 = vmatpush1.msra.mxu0 0.0
    %483 = vmatprep.subr.mxu0 0.0
    %484 = vmatpush1.msra.mxu0 0.0
    %485 = vmatprep.subr.mxu0 0.0
    %486 = vmatpush1.msra.mxu0 0.0
    %487 = vmatprep.subr.mxu0 0.0
    %488 = vmatpush1.msra.mxu0 0.0
    %489 = vmatprep.subr.mxu0 0.0
    %490 = vmatpush1.msra.mxu0 0.0
    %491 = vmatprep.subr.mxu0 0.0
    %492 = vmatpush1.msra.mxu0 0.0
    %493 = vmatprep.subr.mxu0 0.0
    %494 = vmatpush1.msra.mxu0 0.0
    %495 = vmatprep.subr.mxu0 0.0
    %496 = vmatpush1.msra.mxu0 0.0
    %497 = vmatprep.subr.mxu0 0.0
    %498 = vmatpush1.msra.mxu0 0.0
    %499 = vmatprep.subr.mxu0 0.0
    %500 = vmatpush1.msra.mxu0 0.0
    %501 = vmatprep.subr.mxu0 0.0
    %502 = vmatpush1.msra.mxu0 0.0
    %503 = vmatprep.subr.mxu0 0.0
    %504 = vmatpush1.msra.mxu0 0.0
    %505 = vmatprep.subr.mxu0 0.0
    %506 = vmatpush1.msra.mxu0 0.0
    %507 = vmatprep.subr.mxu0 0.0
    %508 = vmatpush1.msra.mxu0 0.0
    %509 = vmatprep.subr.mxu0 0.0
    %510 = vmatpush1.msra.mxu0 0.0
    %511 = vmatprep.subr.mxu0 0.0
    %512 = vmatpush1.msra.mxu0 0.0
    %513 = vmatprep.subr.mxu0 0.0
    %514 = vmatpush1.msra.mxu0 0.0
    %515 = vmatprep.subr.mxu0 0.0
    %516 = vmatpush1.msra.mxu0 0.0
    %517 = vmatprep.subr.mxu0 0.0
    %518 = vmatpush1.msra.mxu0 0.0
    %519 = vmatprep.subr.mxu0 0.0
    %520 = vmatpush1.msra.mxu0 0.0
    %521 = vmatprep.subr.mxu0 0.0
    %522 = vmatpush1.msra.mxu0 0.0
    %523 = vmatprep.subr.mxu0 0.0
    %524 = vmatpush1.msra.mxu0 0.0
    %525 = vmatprep.subr.mxu0 0.0
    %526 = vmatpush1.msra.mxu0 0.0
    %527 = vmatprep.subr.mxu0 0.0
    %528 = vmatpush1.msra.mxu0 0.0
    %529 = vmatprep.mubr.f32.mxu0 0.0
    %530 = vmatmul.mubr.f32.gmra.mrb[0].mxu0 %v463
    %v531 = vpop.f32.mrb[0].mxu0
    %v532 = vadd.f32 0.0, %v531
    %v533 = vpop.f32.mrb[0].mxu0
    %534 = vdwg.mxu0
    %v536 = vsel %vm96, %v68, 0
    %538 = vmatprep.subr.mxu0 0.0
    %539 = vmatpush1.msra.mxu0 %v94
    %540 = vmatprep.subr.mxu0 0.0
    %541 = vmatpush1.msra.mxu0 0.0
    %542 = vmatprep.subr.mxu0 0.0
    %543 = vmatpush1.msra.mxu0 0.0
    %544 = vmatprep.subr.mxu0 0.0
    %545 = vmatpush1.msra.mxu0 0.0
    %546 = vmatprep.subr.mxu0 0.0
    %547 = vmatpush1.msra.mxu0 0.0
    %548 = vmatprep.subr.mxu0 0.0
    %549 = vmatpush1.msra.mxu0 0.0
    %550 = vmatprep.subr.mxu0 0.0
    %551 = vmatpush1.msra.mxu0 0.0
    %552 = vmatprep.subr.mxu0 0.0
    %553 = vmatpush1.msra.mxu0 0.0
    %554 = vmatprep.subr.mxu0 0.0
    %555 = vmatpush1.msra.mxu0 0.0
    %556 = vmatprep.subr.mxu0 0.0
    %557 = vmatpush1.msra.mxu0 0.0
    %558 = vmatprep.subr.mxu0 0.0
    %559 = vmatpush1.msra.mxu0 0.0
    %560 = vmatprep.subr.mxu0 0.0
    %561 = vmatpush1.msra.mxu0 0.0
    %562 = vmatprep.subr.mxu0 0.0
    %563 = vmatpush1.msra.mxu0 0.0
    %564 = vmatprep.subr.mxu0 0.0
    %565 = vmatpush1.msra.mxu0 0.0
    %566 = vmatprep.subr.mxu0 0.0
    %567 = vmatpush1.msra.mxu0 0.0
    %568 = vmatprep.subr.mxu0 0.0
    %569 = vmatpush1.msra.mxu0 0.0
    %570 = vmatprep.subr.mxu0 0.0
    %571 = vmatpush1.msra.mxu0 0.0
    %572 = vmatprep.subr.mxu0 0.0
    %573 = vmatpush1.msra.mxu0 0.0
    %574 = vmatprep.subr.mxu0 0.0
    %575 = vmatpush1.msra.mxu0 0.0
    %576 = vmatprep.subr.mxu0 0.0
    %577 = vmatpush1.msra.mxu0 0.0
    %578 = vmatprep.subr.mxu0 0.0
    %579 = vmatpush1.msra.mxu0 0.0
    %580 = vmatprep.subr.mxu0 0.0
    %581 = vmatpush1.msra.mxu0 0.0
    %582 = vmatprep.subr.mxu0 0.0
    %583 = vmatpush1.msra.mxu0 0.0
    %584 = vmatprep.subr.mxu0 0.0
    %585 = vmatpush1.msra.mxu0 0.0
    %586 = vmatprep.subr.mxu0 0.0
    %587 = vmatpush1.msra.mxu0 0.0
    %588 = vmatprep.subr.mxu0 0.0
    %589 = vmatpush1.msra.mxu0 0.0
    %590 = vmatprep.subr.mxu0 0.0
    %591 = vmatpush1.msra.mxu0 0.0
    %592 = vmatprep.subr.mxu0 0.0
    %593 = vmatpush1.msra.mxu0 0.0
    %594 = vmatprep.subr.mxu0 0.0
    %595 = vmatpush1.msra.mxu0 0.0
    %596 = vmatprep.subr.mxu0 0.0
    %597 = vmatpush1.msra.mxu0 0.0
    %598 = vmatprep.subr.mxu0 0.0
    %599 = vmatpush1.msra.mxu0 0.0
    %600 = vmatprep.subr.mxu0 0.0
    %601 = vmatpush1.msra.mxu0 0.0
    %602 = vmatprep.mubr.f32.mxu0 0.0
    %603 = vmatmul.mubr.f32.gmra.mrb[0].mxu0 %v536
    %v604 = vpop.f32.mrb[0].mxu0
    %v605 = vadd.f32 0.0, %v604
    %v606 = vpop.f32.mrb[0].mxu0
    %607 = vdwg.mxu0
    %v609 = vsel %vm96, %v69, 0
    %611 = vmatprep.subr.mxu0 0.0
    %612 = vmatpush1.msra.mxu0 %v95
    %613 = vmatprep.subr.mxu0 0.0
    %614 = vmatpush1.msra.mxu0 0.0
    %615 = vmatprep.subr.mxu0 0.0
    %616 = vmatpush1.msra.mxu0 0.0
    %617 = vmatprep.subr.mxu0 0.0
    %618 = vmatpush1.msra.mxu0 0.0
    %619 = vmatprep.subr.mxu0 0.0
    %620 = vmatpush1.msra.mxu0 0.0
    %621 = vmatprep.subr.mxu0 0.0
    %622 = vmatpush1.msra.mxu0 0.0
    %623 = vmatprep.subr.mxu0 0.0
    %624 = vmatpush1.msra.mxu0 0.0
    %625 = vmatprep.subr.mxu0 0.0
    %626 = vmatpush1.msra.mxu0 0.0
    %627 = vmatprep.subr.mxu0 0.0
    %628 = vmatpush1.msra.mxu0 0.0
    %629 = vmatprep.subr.mxu0 0.0
    %630 = vmatpush1.msra.mxu0 0.0
    %631 = vmatprep.subr.mxu0 0.0
    %632 = vmatpush1.msra.mxu0 0.0
    %633 = vmatprep.subr.mxu0 0.0
    %634 = vmatpush1.msra.mxu0 0.0
    %635 = vmatprep.subr.mxu0 0.0
    %636 = vmatpush1.msra.mxu0 0.0
    %637 = vmatprep.subr.mxu0 0.0
    %638 = vmatpush1.msra.mxu0 0.0
    %639 = vmatprep.subr.mxu0 0.0
    %640 = vmatpush1.msra.mxu0 0.0
    %641 = vmatprep.subr.mxu0 0.0
    %642 = vmatpush1.msra.mxu0 0.0
    %643 = vmatprep.subr.mxu0 0.0
    %644 = vmatpush1.msra.mxu0 0.0
    %645 = vmatprep.subr.mxu0 0.0
    %646 = vmatpush1.msra.mxu0 0.0
    %647 = vmatprep.subr.mxu0 0.0
    %648 = vmatpush1.msra.mxu0 0.0
    %649 = vmatprep.subr.mxu0 0.0
    %650 = vmatpush1.msra.mxu0 0.0
    %651 = vmatprep.subr.mxu0 0.0
    %652 = vmatpush1.msra.mxu0 0.0
    %653 = vmatprep.subr.mxu0 0.0
    %654 = vmatpush1.msra.mxu0 0.0
    %655 = vmatprep.subr.mxu0 0.0
    %656 = vmatpush1.msra.mxu0 0.0
    %657 = vmatprep.subr.mxu0 0.0
    %658 = vmatpush1.msra.mxu0 0.0
    %659 = vmatprep.subr.mxu0 0.0
    %660 = vmatpush1.msra.mxu0 0.0
    %661 = vmatprep.subr.mxu0 0.0
    %662 = vmatpush1.msra.mxu0 0.0
    %663 = vmatprep.subr.mxu0 0.0
    %664 = vmatpush1.msra.mxu0 0.0
    %665 = vmatprep.subr.mxu0 0.0
    %666 = vmatpush1.msra.mxu0 0.0
    %667 = vmatprep.subr.mxu0 0.0
    %668 = vmatpush1.msra.mxu0 0.0
    %669 = vmatprep.subr.mxu0 0.0
    %670 = vmatpush1.msra.mxu0 0.0
    %671 = vmatprep.subr.mxu0 0.0
    %672 = vmatpush1.msra.mxu0 0.0
    %673 = vmatprep.subr.mxu0 0.0
    %674 = vmatpush1.msra.mxu0 0.0
    %675 = vmatprep.mubr.f32.mxu0 0.0
    %676 = vmatmul.mubr.f32.gmra.mrb[0].mxu0 %v609
    %v677 = vpop.f32.mrb[0].mxu0
    %v678 = vadd.f32 0.0, %v677
    %v679 = vpop.f32.mrb[0].mxu0
    %680 = vdwg.mxu0
    %s681 = scalar_lea.vmem [#allocation2], 64
    %v682 = vld [vmem:[%s681] sm:$0xff]
    %v683 = vld [vmem:[%s681 + $0x8] sm:$0xff]
    %v684 = vld [vmem:[%s681 + $0x10] sm:$0xff]
    %v685 = vld [vmem:[%s681 + $0x18] sm:$0xff]
    %v686 = vld [vmem:[%s681 + $0x20] sm:$0xff]
    %v687 = vld [vmem:[%s681 + $0x28] sm:$0xff]
    %v688 = vld [vmem:[%s681 + $0x30] sm:$0xff]
    %v689 = vld [vmem:[%s681 + $0x38] sm:$0xff]
    %v691 = vsel %vm96, %v71, 0
    %693 = vmatprep.subr.mxu0 0.0
    %694 = vmatpush1.msra.mxu0 %v682
    %695 = vmatprep.subr.mxu0 0.0
    %696 = vmatpush1.msra.mxu0 0.0
    %697 = vmatprep.subr.mxu0 0.0
    %698 = vmatpush1.msra.mxu0 0.0
    %699 = vmatprep.subr.mxu0 0.0
    %700 = vmatpush1.msra.mxu0 0.0
    %701 = vmatprep.subr.mxu0 0.0
    %702 = vmatpush1.msra.mxu0 0.0
    %703 = vmatprep.subr.mxu0 0.0
    %704 = vmatpush1.msra.mxu0 0.0
    %705 = vmatprep.subr.mxu0 0.0
    %706 = vmatpush1.msra.mxu0 0.0
    %707 = vmatprep.subr.mxu0 0.0
    %708 = vmatpush1.msra.mxu0 0.0
    %709 = vmatprep.subr.mxu0 0.0
    %710 = vmatpush1.msra.mxu0 0.0
    %711 = vmatprep.subr.mxu0 0.0
    %712 = vmatpush1.msra.mxu0 0.0
    %713 = vmatprep.subr.mxu0 0.0
    %714 = vmatpush1.msra.mxu0 0.0
    %715 = vmatprep.subr.mxu0 0.0
    %716 = vmatpush1.msra.mxu0 0.0
    %717 = vmatprep.subr.mxu0 0.0
    %718 = vmatpush1.msra.mxu0 0.0
    %719 = vmatprep.subr.mxu0 0.0
    %720 = vmatpush1.msra.mxu0 0.0
    %721 = vmatprep.subr.mxu0 0.0
    %722 = vmatpush1.msra.mxu0 0.0
    %723 = vmatprep.subr.mxu0 0.0
    %724 = vmatpush1.msra.mxu0 0.0
    %725 = vmatprep.subr.mxu0 0.0
    %726 = vmatpush1.msra.mxu0 0.0
    %727 = vmatprep.subr.mxu0 0.0
    %728 = vmatpush1.msra.mxu0 0.0
    %729 = vmatprep.subr.mxu0 0.0
    %730 = vmatpush1.msra.mxu0 0.0
    %731 = vmatprep.subr.mxu0 0.0
    %732 = vmatpush1.msra.mxu0 0.0
    %733 = vmatprep.subr.mxu0 0.0
    %734 = vmatpush1.msra.mxu0 0.0
    %735 = vmatprep.subr.mxu0 0.0
    %736 = vmatpush1.msra.mxu0 0.0
    %737 = vmatprep.subr.mxu0 0.0
    %738 = vmatpush1.msra.mxu0 0.0
    %739 = vmatprep.subr.mxu0 0.0
    %740 = vmatpush1.msra.mxu0 0.0
    %741 = vmatprep.subr.mxu0 0.0
    %742 = vmatpush1.msra.mxu0 0.0
    %743 = vmatprep.subr.mxu0 0.0
    %744 = vmatpush1.msra.mxu0 0.0
    %745 = vmatprep.subr.mxu0 0.0
    %746 = vmatpush1.msra.mxu0 0.0
    %747 = vmatprep.subr.mxu0 0.0
    %748 = vmatpush1.msra.mxu0 0.0
    %749 = vmatprep.subr.mxu0 0.0
    %750 = vmatpush1.msra.mxu0 0.0
    %751 = vmatprep.subr.mxu0 0.0
    %752 = vmatpush1.msra.mxu0 0.0
    %753 = vmatprep.subr.mxu0 0.0
    %754 = vmatpush1.msra.mxu0 0.0
    %755 = vmatprep.subr.mxu0 0.0
    %756 = vmatpush1.msra.mxu0 0.0
    %757 = vmatprep.mubr.f32.mxu0 0.0
    %758 = vmatmul.mubr.f32.gmra.mrb[0].mxu0 %v691
    %v759 = vpop.f32.mrb[0].mxu0
    %v760 = vadd.f32 0.0, %v759
    %v761 = vpop.f32.mrb[0].mxu0
    %762 = vdwg.mxu0
    %v764 = vsel %vm96, %v72, 0
    %766 = vmatprep.subr.mxu0 0.0
    %767 = vmatpush1.msra.mxu0 %v683
    %768 = vmatprep.subr.mxu0 0.0
    %769 = vmatpush1.msra.mxu0 0.0
    %770 = vmatprep.subr.mxu0 0.0
    %771 = vmatpush1.msra.mxu0 0.0
    %772 = vmatprep.subr.mxu0 0.0
    %773 = vmatpush1.msra.mxu0 0.0
    %774 = vmatprep.subr.mxu0 0.0
    %775 = vmatpush1.msra.mxu0 0.0
    %776 = vmatprep.subr.mxu0 0.0
    %777 = vmatpush1.msra.mxu0 0.0
    %778 = vmatprep.subr.mxu0 0.0
    %779 = vmatpush1.msra.mxu0 0.0
    %780 = vmatprep.subr.mxu0 0.0
    %781 = vmatpush1.msra.mxu0 0.0
    %782 = vmatprep.subr.mxu0 0.0
    %783 = vmatpush1.msra.mxu0 0.0
    %784 = vmatprep.subr.mxu0 0.0
    %785 = vmatpush1.msra.mxu0 0.0
    %786 = vmatprep.subr.mxu0 0.0
    %787 = vmatpush1.msra.mxu0 0.0
    %788 = vmatprep.subr.mxu0 0.0
    %789 = vmatpush1.msra.mxu0 0.0
    %790 = vmatprep.subr.mxu0 0.0
    %791 = vmatpush1.msra.mxu0 0.0
    %792 = vmatprep.subr.mxu0 0.0
    %793 = vmatpush1.msra.mxu0 0.0
    %794 = vmatprep.subr.mxu0 0.0
    %795 = vmatpush1.msra.mxu0 0.0
    %796 = vmatprep.subr.mxu0 0.0
    %797 = vmatpush1.msra.mxu0 0.0
    %798 = vmatprep.subr.mxu0 0.0
    %799 = vmatpush1.msra.mxu0 0.0
    %800 = vmatprep.subr.mxu0 0.0
    %801 = vmatpush1.msra.mxu0 0.0
    %802 = vmatprep.subr.mxu0 0.0
    %803 = vmatpush1.msra.mxu0 0.0
    %804 = vmatprep.subr.mxu0 0.0
    %805 = vmatpush1.msra.mxu0 0.0
    %806 = vmatprep.subr.mxu0 0.0
    %807 = vmatpush1.msra.mxu0 0.0
    %808 = vmatprep.subr.mxu0 0.0
    %809 = vmatpush1.msra.mxu0 0.0
    %810 = vmatprep.subr.mxu0 0.0
    %811 = vmatpush1.msra.mxu0 0.0
    %812 = vmatprep.subr.mxu0 0.0
    %813 = vmatpush1.msra.mxu0 0.0
    %814 = vmatprep.subr.mxu0 0.0
    %815 = vmatpush1.msra.mxu0 0.0
    %816 = vmatprep.subr.mxu0 0.0
    %817 = vmatpush1.msra.mxu0 0.0
    %818 = vmatprep.subr.mxu0 0.0
    %819 = vmatpush1.msra.mxu0 0.0
    %820 = vmatprep.subr.mxu0 0.0
    %821 = vmatpush1.msra.mxu0 0.0
    %822 = vmatprep.subr.mxu0 0.0
    %823 = vmatpush1.msra.mxu0 0.0
    %824 = vmatprep.subr.mxu0 0.0
    %825 = vmatpush1.msra.mxu0 0.0
    %826 = vmatprep.subr.mxu0 0.0
    %827 = vmatpush1.msra.mxu0 0.0
    %828 = vmatprep.subr.mxu0 0.0
    %829 = vmatpush1.msra.mxu0 0.0
    %830 = vmatprep.mubr.f32.mxu0 0.0
    %831 = vmatmul.mubr.f32.gmra.mrb[0].mxu0 %v764
    %v832 = vpop.f32.mrb[0].mxu0
    %v833 = vadd.f32 0.0, %v832
    %v834 = vpop.f32.mrb[0].mxu0
    %835 = vdwg.mxu0
    %v837 = vsel %vm96, %v73, 0
    %839 = vmatprep.subr.mxu0 0.0
    %840 = vmatpush1.msra.mxu0 %v684
    %841 = vmatprep.subr.mxu0 0.0
    %842 = vmatpush1.msra.mxu0 0.0
    %843 = vmatprep.subr.mxu0 0.0
    %844 = vmatpush1.msra.mxu0 0.0
    %845 = vmatprep.subr.mxu0 0.0
    %846 = vmatpush1.msra.mxu0 0.0
    %847 = vmatprep.subr.mxu0 0.0
    %848 = vmatpush1.msra.mxu0 0.0
    %849 = vmatprep.subr.mxu0 0.0
    %850 = vmatpush1.msra.mxu0 0.0
    %851 = vmatprep.subr.mxu0 0.0
    %852 = vmatpush1.msra.mxu0 0.0
    %853 = vmatprep.subr.mxu0 0.0
    %854 = vmatpush1.msra.mxu0 0.0
    %855 = vmatprep.subr.mxu0 0.0
    %856 = vmatpush1.msra.mxu0 0.0
    %857 = vmatprep.subr.mxu0 0.0
    %858 = vmatpush1.msra.mxu0 0.0
    %859 = vmatprep.subr.mxu0 0.0
    %860 = vmatpush1.msra.mxu0 0.0
    %861 = vmatprep.subr.mxu0 0.0
    %862 = vmatpush1.msra.mxu0 0.0
    %863 = vmatprep.subr.mxu0 0.0
    %864 = vmatpush1.msra.mxu0 0.0
    %865 = vmatprep.subr.mxu0 0.0
    %866 = vmatpush1.msra.mxu0 0.0
    %867 = vmatprep.subr.mxu0 0.0
    %868 = vmatpush1.msra.mxu0 0.0
    %869 = vmatprep.subr.mxu0 0.0
    %870 = vmatpush1.msra.mxu0 0.0
    %871 = vmatprep.subr.mxu0 0.0
    %872 = vmatpush1.msra.mxu0 0.0
    %873 = vmatprep.subr.mxu0 0.0
    %874 = vmatpush1.msra.mxu0 0.0
    %875 = vmatprep.subr.mxu0 0.0
    %876 = vmatpush1.msra.mxu0 0.0
    %877 = vmatprep.subr.mxu0 0.0
    %878 = vmatpush1.msra.mxu0 0.0
    %879 = vmatprep.subr.mxu0 0.0
    %880 = vmatpush1.msra.mxu0 0.0
    %881 = vmatprep.subr.mxu0 0.0
    %882 = vmatpush1.msra.mxu0 0.0
    %883 = vmatprep.subr.mxu0 0.0
    %884 = vmatpush1.msra.mxu0 0.0
    %885 = vmatprep.subr.mxu0 0.0
    %886 = vmatpush1.msra.mxu0 0.0
    %887 = vmatprep.subr.mxu0 0.0
    %888 = vmatpush1.msra.mxu0 0.0
    %889 = vmatprep.subr.mxu0 0.0
    %890 = vmatpush1.msra.mxu0 0.0
    %891 = vmatprep.subr.mxu0 0.0
    %892 = vmatpush1.msra.mxu0 0.0
    %893 = vmatprep.subr.mxu0 0.0
    %894 = vmatpush1.msra.mxu0 0.0
    %895 = vmatprep.subr.mxu0 0.0
    %896 = vmatpush1.msra.mxu0 0.0
    %897 = vmatprep.subr.mxu0 0.0
    %898 = vmatpush1.msra.mxu0 0.0
    %899 = vmatprep.subr.mxu0 0.0
    %900 = vmatpush1.msra.mxu0 0.0
    %901 = vmatprep.subr.mxu0 0.0
    %902 = vmatpush1.msra.mxu0 0.0
    %903 = vmatprep.mubr.f32.mxu0 0.0
    %904 = vmatmul.mubr.f32.gmra.mrb[0].mxu0 %v837
    %v905 = vpop.f32.mrb[0].mxu0
    %v906 = vadd.f32 0.0, %v905
    %v907 = vpop.f32.mrb[0].mxu0
    %908 = vdwg.mxu0
    %v910 = vsel %vm96, %v74, 0
    %912 = vmatprep.subr.mxu0 0.0
    %913 = vmatpush1.msra.mxu0 %v685
    %914 = vmatprep.subr.mxu0 0.0
    %915 = vmatpush1.msra.mxu0 0.0
    %916 = vmatprep.subr.mxu0 0.0
    %917 = vmatpush1.msra.mxu0 0.0
    %918 = vmatprep.subr.mxu0 0.0
    %919 = vmatpush1.msra.mxu0 0.0
    %920 = vmatprep.subr.mxu0 0.0
    %921 = vmatpush1.msra.mxu0 0.0
    %922 = vmatprep.subr.mxu0 0.0
    %923 = vmatpush1.msra.mxu0 0.0
    %924 = vmatprep.subr.mxu0 0.0
    %925 = vmatpush1.msra.mxu0 0.0
    %926 = vmatprep.subr.mxu0 0.0
    %927 = vmatpush1.msra.mxu0 0.0
    %928 = vmatprep.subr.mxu0 0.0
    %929 = vmatpush1.msra.mxu0 0.0
    %930 = vmatprep.subr.mxu0 0.0
    %931 = vmatpush1.msra.mxu0 0.0
    %932 = vmatprep.subr.mxu0 0.0
    %933 = vmatpush1.msra.mxu0 0.0
    %934 = vmatprep.subr.mxu0 0.0
    %935 = vmatpush1.msra.mxu0 0.0
    %936 = vmatprep.subr.mxu0 0.0
    %937 = vmatpush1.msra.mxu0 0.0
    %938 = vmatprep.subr.mxu0 0.0
    %939 = vmatpush1.msra.mxu0 0.0
    %940 = vmatprep.subr.mxu0 0.0
    %941 = vmatpush1.msra.mxu0 0.0
    %942 = vmatprep.subr.mxu0 0.0
    %943 = vmatpush1.msra.mxu0 0.0
    %944 = vmatprep.subr.mxu0 0.0
    %945 = vmatpush1.msra.mxu0 0.0
    %946 = vmatprep.subr.mxu0 0.0
    %947 = vmatpush1.msra.mxu0 0.0
    %948 = vmatprep.subr.mxu0 0.0
    %949 = vmatpush1.msra.mxu0 0.0
    %950 = vmatprep.subr.mxu0 0.0
    %951 = vmatpush1.msra.mxu0 0.0
    %952 = vmatprep.subr.mxu0 0.0
    %953 = vmatpush1.msra.mxu0 0.0
    %954 = vmatprep.subr.mxu0 0.0
    %955 = vmatpush1.msra.mxu0 0.0
    %956 = vmatprep.subr.mxu0 0.0
    %957 = vmatpush1.msra.mxu0 0.0
    %958 = vmatprep.subr.mxu0 0.0
    %959 = vmatpush1.msra.mxu0 0.0
    %960 = vmatprep.subr.mxu0 0.0
    %961 = vmatpush1.msra.mxu0 0.0
    %962 = vmatprep.subr.mxu0 0.0
    %963 = vmatpush1.msra.mxu0 0.0
    %964 = vmatprep.subr.mxu0 0.0
    %965 = vmatpush1.msra.mxu0 0.0
    %966 = vmatprep.subr.mxu0 0.0
    %967 = vmatpush1.msra.mxu0 0.0
    %968 = vmatprep.subr.mxu0 0.0
    %969 = vmatpush1.msra.mxu0 0.0
    %970 = vmatprep.subr.mxu0 0.0
    %971 = vmatpush1.msra.mxu0 0.0
    %972 = vmatprep.subr.mxu0 0.0
    %973 = vmatpush1.msra.mxu0 0.0
    %974 = vmatprep.subr.mxu0 0.0
    %975 = vmatpush1.msra.mxu0 0.0
    %976 = vmatprep.mubr.f32.mxu0 0.0
    %977 = vmatmul.mubr.f32.gmra.mrb[0].mxu0 %v910
    %v978 = vpop.f32.mrb[0].mxu0
    %v979 = vadd.f32 0.0, %v978
    %v980 = vpop.f32.mrb[0].mxu0
    %981 = vdwg.mxu0
    %v983 = vsel %vm96, %v75, 0
    %985 = vmatprep.subr.mxu0 0.0
    %986 = vmatpush1.msra.mxu0 %v686
    %987 = vmatprep.subr.mxu0 0.0
    %988 = vmatpush1.msra.mxu0 0.0
    %989 = vmatprep.subr.mxu0 0.0
    %990 = vmatpush1.msra.mxu0 0.0
    %991 = vmatprep.subr.mxu0 0.0
    %992 = vmatpush1.msra.mxu0 0.0
    %993 = vmatprep.subr.mxu0 0.0
    %994 = vmatpush1.msra.mxu0 0.0
    %995 = vmatprep.subr.mxu0 0.0
    %996 = vmatpush1.msra.mxu0 0.0
    %997 = vmatprep.subr.mxu0 0.0
    %998 = vmatpush1.msra.mxu0 0.0
    %999 = vmatprep.subr.mxu0 0.0
    %1000 = vmatpush1.msra.mxu0 0.0
    %1001 = vmatprep.subr.mxu0 0.0
    %1002 = vmatpush1.msra.mxu0 0.0
    %1003 = vmatprep.subr.mxu0 0.0
    %1004 = vmatpush1.msra.mxu0 0.0
    %1005 = vmatprep.subr.mxu0 0.0
    %1006 = vmatpush1.msra.mxu0 0.0
    %1007 = vmatprep.subr.mxu0 0.0
    %1008 = vmatpush1.msra.mxu0 0.0
    %1009 = vmatprep.subr.mxu0 0.0
    %1010 = vmatpush1.msra.mxu0 0.0
    %1011 = vmatprep.subr.mxu0 0.0
    %1012 = vmatpush1.msra.mxu0 0.0
    %1013 = vmatprep.subr.mxu0 0.0
    %1014 = vmatpush1.msra.mxu0 0.0
    %1015 = vmatprep.subr.mxu0 0.0
    %1016 = vmatpush1.msra.mxu0 0.0
    %1017 = vmatprep.subr.mxu0 0.0
    %1018 = vmatpush1.msra.mxu0 0.0
    %1019 = vmatprep.subr.mxu0 0.0
    %1020 = vmatpush1.msra.mxu0 0.0
    %1021 = vmatprep.subr.mxu0 0.0
    %1022 = vmatpush1.msra.mxu0 0.0
    %1023 = vmatprep.subr.mxu0 0.0
    %1024 = vmatpush1.msra.mxu0 0.0
    %1025 = vmatprep.subr.mxu0 0.0
    %1026 = vmatpush1.msra.mxu0 0.0
    %1027 = vmatprep.subr.mxu0 0.0
    %1028 = vmatpush1.msra.mxu0 0.0
    %1029 = vmatprep.subr.mxu0 0.0
    %1030 = vmatpush1.msra.mxu0 0.0
    %1031 = vmatprep.subr.mxu0 0.0
    %1032 = vmatpush1.msra.mxu0 0.0
    %1033 = vmatprep.subr.mxu0 0.0
    %1034 = vmatpush1.msra.mxu0 0.0
    %1035 = vmatprep.subr.mxu0 0.0
    %1036 = vmatpush1.msra.mxu0 0.0
    %1037 = vmatprep.subr.mxu0 0.0
    %1038 = vmatpush1.msra.mxu0 0.0
    %1039 = vmatprep.subr.mxu0 0.0
    %1040 = vmatpush1.msra.mxu0 0.0
    %1041 = vmatprep.subr.mxu0 0.0
    %1042 = vmatpush1.msra.mxu0 0.0
    %1043 = vmatprep.subr.mxu0 0.0
    %1044 = vmatpush1.msra.mxu0 0.0
    %1045 = vmatprep.subr.mxu0 0.0
    %1046 = vmatpush1.msra.mxu0 0.0
    %1047 = vmatprep.subr.mxu0 0.0
    %1048 = vmatpush1.msra.mxu0 0.0
    %1049 = vmatprep.mubr.f32.mxu0 0.0
    %1050 = vmatmul.mubr.f32.gmra.mrb[0].mxu0 %v983
    %v1051 = vpop.f32.mrb[0].mxu0
    %v1052 = vadd.f32 0.0, %v1051
    %v1053 = vpop.f32.mrb[0].mxu0
    %1054 = vdwg.mxu0
    %v1056 = vsel %vm96, %v76, 0
    %1058 = vmatprep.subr.mxu0 0.0
    %1059 = vmatpush1.msra.mxu0 %v687
    %1060 = vmatprep.subr.mxu0 0.0
    %1061 = vmatpush1.msra.mxu0 0.0
    %1062 = vmatprep.subr.mxu0 0.0
    %1063 = vmatpush1.msra.mxu0 0.0
    %1064 = vmatprep.subr.mxu0 0.0
    %1065 = vmatpush1.msra.mxu0 0.0
    %1066 = vmatprep.subr.mxu0 0.0
    %1067 = vmatpush1.msra.mxu0 0.0
    %1068 = vmatprep.subr.mxu0 0.0
    %1069 = vmatpush1.msra.mxu0 0.0
    %1070 = vmatprep.subr.mxu0 0.0
    %1071 = vmatpush1.msra.mxu0 0.0
    %1072 = vmatprep.subr.mxu0 0.0
    %1073 = vmatpush1.msra.mxu0 0.0
    %1074 = vmatprep.subr.mxu0 0.0
    %1075 = vmatpush1.msra.mxu0 0.0
    %1076 = vmatprep.subr.mxu0 0.0
    %1077 = vmatpush1.msra.mxu0 0.0
    %1078 = vmatprep.subr.mxu0 0.0
    %1079 = vmatpush1.msra.mxu0 0.0
    %1080 = vmatprep.subr.mxu0 0.0
    %1081 = vmatpush1.msra.mxu0 0.0
    %1082 = vmatprep.subr.mxu0 0.0
    %1083 = vmatpush1.msra.mxu0 0.0
    %1084 = vmatprep.subr.mxu0 0.0
    %1085 = vmatpush1.msra.mxu0 0.0
    %1086 = vmatprep.subr.mxu0 0.0
    %1087 = vmatpush1.msra.mxu0 0.0
    %1088 = vmatprep.subr.mxu0 0.0
    %1089 = vmatpush1.msra.mxu0 0.0
    %1090 = vmatprep.subr.mxu0 0.0
    %1091 = vmatpush1.msra.mxu0 0.0
    %1092 = vmatprep.subr.mxu0 0.0
    %1093 = vmatpush1.msra.mxu0 0.0
    %1094 = vmatprep.subr.mxu0 0.0
    %1095 = vmatpush1.msra.mxu0 0.0
    %1096 = vmatprep.subr.mxu0 0.0
    %1097 = vmatpush1.msra.mxu0 0.0
    %1098 = vmatprep.subr.mxu0 0.0
    %1099 = vmatpush1.msra.mxu0 0.0
    %1100 = vmatprep.subr.mxu0 0.0
    %1101 = vmatpush1.msra.mxu0 0.0
    %1102 = vmatprep.subr.mxu0 0.0
    %1103 = vmatpush1.msra.mxu0 0.0
    %1104 = vmatprep.subr.mxu0 0.0
    %1105 = vmatpush1.msra.mxu0 0.0
    %1106 = vmatprep.subr.mxu0 0.0
    %1107 = vmatpush1.msra.mxu0 0.0
    %1108 = vmatprep.subr.mxu0 0.0
    %1109 = vmatpush1.msra.mxu0 0.0
    %1110 = vmatprep.subr.mxu0 0.0
    %1111 = vmatpush1.msra.mxu0 0.0
    %1112 = vmatprep.subr.mxu0 0.0
    %1113 = vmatpush1.msra.mxu0 0.0
    %1114 = vmatprep.subr.mxu0 0.0
    %1115 = vmatpush1.msra.mxu0 0.0
    %1116 = vmatprep.subr.mxu0 0.0
    %1117 = vmatpush1.msra.mxu0 0.0
    %1118 = vmatprep.subr.mxu0 0.0
    %1119 = vmatpush1.msra.mxu0 0.0
    %1120 = vmatprep.subr.mxu0 0.0
    %1121 = vmatpush1.msra.mxu0 0.0
    %1122 = vmatprep.mubr.f32.mxu0 0.0
    %1123 = vmatmul.mubr.f32.gmra.mrb[0].mxu0 %v1056
    %v1124 = vpop.f32.mrb[0].mxu0
    %v1125 = vadd.f32 0.0, %v1124
    %v1126 = vpop.f32.mrb[0].mxu0
    %1127 = vdwg.mxu0
    %v1129 = vsel %vm96, %v77, 0
    %1131 = vmatprep.subr.mxu0 0.0
    %1132 = vmatpush1.msra.mxu0 %v688
    %1133 = vmatprep.subr.mxu0 0.0
    %1134 = vmatpush1.msra.mxu0 0.0
    %1135 = vmatprep.subr.mxu0 0.0
    %1136 = vmatpush1.msra.mxu0 0.0
    %1137 = vmatprep.subr.mxu0 0.0
    %1138 = vmatpush1.msra.mxu0 0.0
    %1139 = vmatprep.subr.mxu0 0.0
    %1140 = vmatpush1.msra.mxu0 0.0
    %1141 = vmatprep.subr.mxu0 0.0
    %1142 = vmatpush1.msra.mxu0 0.0
    %1143 = vmatprep.subr.mxu0 0.0
    %1144 = vmatpush1.msra.mxu0 0.0
    %1145 = vmatprep.subr.mxu0 0.0
    %1146 = vmatpush1.msra.mxu0 0.0
    %1147 = vmatprep.subr.mxu0 0.0
    %1148 = vmatpush1.msra.mxu0 0.0
    %1149 = vmatprep.subr.mxu0 0.0
    %1150 = vmatpush1.msra.mxu0 0.0
    %1151 = vmatprep.subr.mxu0 0.0
    %1152 = vmatpush1.msra.mxu0 0.0
    %1153 = vmatprep.subr.mxu0 0.0
    %1154 = vmatpush1.msra.mxu0 0.0
    %1155 = vmatprep.subr.mxu0 0.0
    %1156 = vmatpush1.msra.mxu0 0.0
    %1157 = vmatprep.subr.mxu0 0.0
    %1158 = vmatpush1.msra.mxu0 0.0
    %1159 = vmatprep.subr.mxu0 0.0
    %1160 = vmatpush1.msra.mxu0 0.0
    %1161 = vmatprep.subr.mxu0 0.0
    %1162 = vmatpush1.msra.mxu0 0.0
    %1163 = vmatprep.subr.mxu0 0.0
    %1164 = vmatpush1.msra.mxu0 0.0
    %1165 = vmatprep.subr.mxu0 0.0
    %1166 = vmatpush1.msra.mxu0 0.0
    %1167 = vmatprep.subr.mxu0 0.0
    %1168 = vmatpush1.msra.mxu0 0.0
    %1169 = vmatprep.subr.mxu0 0.0
    %1170 = vmatpush1.msra.mxu0 0.0
    %1171 = vmatprep.subr.mxu0 0.0
    %1172 = vmatpush1.msra.mxu0 0.0
    %1173 = vmatprep.subr.mxu0 0.0
    %1174 = vmatpush1.msra.mxu0 0.0
    %1175 = vmatprep.subr.mxu0 0.0
    %1176 = vmatpush1.msra.mxu0 0.0
    %1177 = vmatprep.subr.mxu0 0.0
    %1178 = vmatpush1.msra.mxu0 0.0
    %1179 = vmatprep.subr.mxu0 0.0
    %1180 = vmatpush1.msra.mxu0 0.0
    %1181 = vmatprep.subr.mxu0 0.0
    %1182 = vmatpush1.msra.mxu0 0.0
    %1183 = vmatprep.subr.mxu0 0.0
    %1184 = vmatpush1.msra.mxu0 0.0
    %1185 = vmatprep.subr.mxu0 0.0
    %1186 = vmatpush1.msra.mxu0 0.0
    %1187 = vmatprep.subr.mxu0 0.0
    %1188 = vmatpush1.msra.mxu0 0.0
    %1189 = vmatprep.subr.mxu0 0.0
    %1190 = vmatpush1.msra.mxu0 0.0
    %1191 = vmatprep.subr.mxu0 0.0
    %1192 = vmatpush1.msra.mxu0 0.0
    %1193 = vmatprep.subr.mxu0 0.0
    %1194 = vmatpush1.msra.mxu0 0.0
    %1195 = vmatprep.mubr.f32.mxu0 0.0
    %1196 = vmatmul.mubr.f32.gmra.mrb[0].mxu0 %v1129
    %v1197 = vpop.f32.mrb[0].mxu0
    %v1198 = vadd.f32 0.0, %v1197
    %v1199 = vpop.f32.mrb[0].mxu0
    %1200 = vdwg.mxu0
    %v1202 = vsel %vm96, %v78, 0
    %1204 = vmatprep.subr.mxu0 0.0
    %1205 = vmatpush1.msra.mxu0 %v689
    %1206 = vmatprep.subr.mxu0 0.0
    %1207 = vmatpush1.msra.mxu0 0.0
    %1208 = vmatprep.subr.mxu0 0.0
    %1209 = vmatpush1.msra.mxu0 0.0
    %1210 = vmatprep.subr.mxu0 0.0
    %1211 = vmatpush1.msra.mxu0 0.0
    %1212 = vmatprep.subr.mxu0 0.0
    %1213 = vmatpush1.msra.mxu0 0.0
    %1214 = vmatprep.subr.mxu0 0.0
    %1215 = vmatpush1.msra.mxu0 0.0
    %1216 = vmatprep.subr.mxu0 0.0
    %1217 = vmatpush1.msra.mxu0 0.0
    %1218 = vmatprep.subr.mxu0 0.0
    %1219 = vmatpush1.msra.mxu0 0.0
    %1220 = vmatprep.subr.mxu0 0.0
    %1221 = vmatpush1.msra.mxu0 0.0
    %1222 = vmatprep.subr.mxu0 0.0
    %1223 = vmatpush1.msra.mxu0 0.0
    %1224 = vmatprep.subr.mxu0 0.0
    %1225 = vmatpush1.msra.mxu0 0.0
    %1226 = vmatprep.subr.mxu0 0.0
    %1227 = vmatpush1.msra.mxu0 0.0
    %1228 = vmatprep.subr.mxu0 0.0
    %1229 = vmatpush1.msra.mxu0 0.0
    %1230 = vmatprep.subr.mxu0 0.0
    %1231 = vmatpush1.msra.mxu0 0.0
    %1232 = vmatprep.subr.mxu0 0.0
    %1233 = vmatpush1.msra.mxu0 0.0
    %1234 = vmatprep.subr.mxu0 0.0
    %1235 = vmatpush1.msra.mxu0 0.0
    %1236 = vmatprep.subr.mxu0 0.0
    %1237 = vmatpush1.msra.mxu0 0.0
    %1238 = vmatprep.subr.mxu0 0.0
    %1239 = vmatpush1.msra.mxu0 0.0
    %1240 = vmatprep.subr.mxu0 0.0
    %1241 = vmatpush1.msra.mxu0 0.0
    %1242 = vmatprep.subr.mxu0 0.0
    %1243 = vmatpush1.msra.mxu0 0.0
    %1244 = vmatprep.subr.mxu0 0.0
    %1245 = vmatpush1.msra.mxu0 0.0
    %1246 = vmatprep.subr.mxu0 0.0
    %1247 = vmatpush1.msra.mxu0 0.0
    %1248 = vmatprep.subr.mxu0 0.0
    %1249 = vmatpush1.msra.mxu0 0.0
    %1250 = vmatprep.subr.mxu0 0.0
    %1251 = vmatpush1.msra.mxu0 0.0
    %1252 = vmatprep.subr.mxu0 0.0
    %1253 = vmatpush1.msra.mxu0 0.0
    %1254 = vmatprep.subr.mxu0 0.0
    %1255 = vmatpush1.msra.mxu0 0.0
    %1256 = vmatprep.subr.mxu0 0.0
    %1257 = vmatpush1.msra.mxu0 0.0
    %1258 = vmatprep.subr.mxu0 0.0
    %1259 = vmatpush1.msra.mxu0 0.0
    %1260 = vmatprep.subr.mxu0 0.0
    %1261 = vmatpush1.msra.mxu0 0.0
    %1262 = vmatprep.subr.mxu0 0.0
    %1263 = vmatpush1.msra.mxu0 0.0
    %1264 = vmatprep.subr.mxu0 0.0
    %1265 = vmatpush1.msra.mxu0 0.0
    %1266 = vmatprep.subr.mxu0 0.0
    %1267 = vmatpush1.msra.mxu0 0.0
    %1268 = vmatprep.mubr.f32.mxu0 0.0
    %1269 = vmatmul.mubr.f32.gmra.mrb[0].mxu0 %v1202
    %v1270 = vpop.f32.mrb[0].mxu0
    %v1271 = vadd.f32 0.0, %v1270
    %v1272 = vpop.f32.mrb[0].mxu0
    %1273 = vdwg.mxu0
    %s1274 = scalar_lea.vmem [#allocation2], 128
    %v1275 = vld [vmem:[%s1274] sm:$0xff]
    %v1276 = vld [vmem:[%s1274 + $0x8] sm:$0xff]
    %v1277 = vld [vmem:[%s1274 + $0x10] sm:$0xff]
    %v1278 = vld [vmem:[%s1274 + $0x18] sm:$0xff]
    %v1279 = vld [vmem:[%s1274 + $0x20] sm:$0xff]
    %v1280 = vld [vmem:[%s1274 + $0x28] sm:$0xff]
    %v1281 = vld [vmem:[%s1274 + $0x30] sm:$0xff]
    %v1282 = vld [vmem:[%s1274 + $0x38] sm:$0xff]
    %v1284 = vsel %vm96, %v80, 0
    %1286 = vmatprep.subr.mxu0 0.0
    %1287 = vmatpush1.msra.mxu0 %v1275
    %1288 = vmatprep.subr.mxu0 0.0
    %1289 = vmatpush1.msra.mxu0 0.0
    %1290 = vmatprep.subr.mxu0 0.0
    %1291 = vmatpush1.msra.mxu0 0.0
    %1292 = vmatprep.subr.mxu0 0.0
    %1293 = vmatpush1.msra.mxu0 0.0
    %1294 = vmatprep.subr.mxu0 0.0
    %1295 = vmatpush1.msra.mxu0 0.0
    %1296 = vmatprep.subr.mxu0 0.0
    %1297 = vmatpush1.msra.mxu0 0.0
    %1298 = vmatprep.subr.mxu0 0.0
    %1299 = vmatpush1.msra.mxu0 0.0
    %1300 = vmatprep.subr.mxu0 0.0
    %1301 = vmatpush1.msra.mxu0 0.0
    %1302 = vmatprep.subr.mxu0 0.0
    %1303 = vmatpush1.msra.mxu0 0.0
    %1304 = vmatprep.subr.mxu0 0.0
    %1305 = vmatpush1.msra.mxu0 0.0
    %1306 = vmatprep.subr.mxu0 0.0
    %1307 = vmatpush1.msra.mxu0 0.0
    %1308 = vmatprep.subr.mxu0 0.0
    %1309 = vmatpush1.msra.mxu0 0.0
    %1310 = vmatprep.subr.mxu0 0.0
    %1311 = vmatpush1.msra.mxu0 0.0
    %1312 = vmatprep.subr.mxu0 0.0
    %1313 = vmatpush1.msra.mxu0 0.0
    %1314 = vmatprep.subr.mxu0 0.0
    %1315 = vmatpush1.msra.mxu0 0.0
    %1316 = vmatprep.subr.mxu0 0.0
    %1317 = vmatpush1.msra.mxu0 0.0
    %1318 = vmatprep.subr.mxu0 0.0
    %1319 = vmatpush1.msra.mxu0 0.0
    %1320 = vmatprep.subr.mxu0 0.0
    %1321 = vmatpush1.msra.mxu0 0.0
    %1322 = vmatprep.subr.mxu0 0.0
    %1323 = vmatpush1.msra.mxu0 0.0
    %1324 = vmatprep.subr.mxu0 0.0
    %1325 = vmatpush1.msra.mxu0 0.0
    %1326 = vmatprep.subr.mxu0 0.0
    %1327 = vmatpush1.msra.mxu0 0.0
    %1328 = vmatprep.subr.mxu0 0.0
    %1329 = vmatpush1.msra.mxu0 0.0
    %1330 = vmatprep.subr.mxu0 0.0
    %1331 = vmatpush1.msra.mxu0 0.0
    %1332 = vmatprep.subr.mxu0 0.0
    %1333 = vmatpush1.msra.mxu0 0.0
    %1334 = vmatprep.subr.mxu0 0.0
    %1335 = vmatpush1.msra.mxu0 0.0
    %1336 = vmatprep.subr.mxu0 0.0
    %1337 = vmatpush1.msra.mxu0 0.0
    %1338 = vmatprep.subr.mxu0 0.0
    %1339 = vmatpush1.msra.mxu0 0.0
    %1340 = vmatprep.subr.mxu0 0.0
    %1341 = vmatpush1.msra.mxu0 0.0
    %1342 = vmatprep.subr.mxu0 0.0
    %1343 = vmatpush1.msra.mxu0 0.0
    %1344 = vmatprep.subr.mxu0 0.0
    %1345 = vmatpush1.msra.mxu0 0.0
    %1346 = vmatprep.subr.mxu0 0.0
    %1347 = vmatpush1.msra.mxu0 0.0
    %1348 = vmatprep.subr.mxu0 0.0
    %1349 = vmatpush1.msra.mxu0 0.0
    %1350 = vmatprep.mubr.f32.mxu0 0.0
    %1351 = vmatmul.mubr.f32.gmra.mrb[0].mxu0 %v1284
    %v1352 = vpop.f32.mrb[0].mxu0
    %v1353 = vadd.f32 0.0, %v1352
    %v1354 = vpop.f32.mrb[0].mxu0
    %1355 = vdwg.mxu0
    %v1357 = vsel %vm96, %v81, 0
    %1359 = vmatprep.subr.mxu0 0.0
    %1360 = vmatpush1.msra.mxu0 %v1276
    %1361 = vmatprep.subr.mxu0 0.0
    %1362 = vmatpush1.msra.mxu0 0.0
    %1363 = vmatprep.subr.mxu0 0.0
    %1364 = vmatpush1.msra.mxu0 0.0
    %1365 = vmatprep.subr.mxu0 0.0
    %1366 = vmatpush1.msra.mxu0 0.0
    %1367 = vmatprep.subr.mxu0 0.0
    %1368 = vmatpush1.msra.mxu0 0.0
    %1369 = vmatprep.subr.mxu0 0.0
    %1370 = vmatpush1.msra.mxu0 0.0
    %1371 = vmatprep.subr.mxu0 0.0
    %1372 = vmatpush1.msra.mxu0 0.0
    %1373 = vmatprep.subr.mxu0 0.0
    %1374 = vmatpush1.msra.mxu0 0.0
    %1375 = vmatprep.subr.mxu0 0.0
    %1376 = vmatpush1.msra.mxu0 0.0
    %1377 = vmatprep.subr.mxu0 0.0
    %1378 = vmatpush1.msra.mxu0 0.0
    %1379 = vmatprep.subr.mxu0 0.0
    %1380 = vmatpush1.msra.mxu0 0.0
    %1381 = vmatprep.subr.mxu0 0.0
    %1382 = vmatpush1.msra.mxu0 0.0
    %1383 = vmatprep.subr.mxu0 0.0
    %1384 = vmatpush1.msra.mxu0 0.0
    %1385 = vmatprep.subr.mxu0 0.0
    %1386 = vmatpush1.msra.mxu0 0.0
    %1387 = vmatprep.subr.mxu0 0.0
    %1388 = vmatpush1.msra.mxu0 0.0
    %1389 = vmatprep.subr.mxu0 0.0
    %1390 = vmatpush1.msra.mxu0 0.0
    %1391 = vmatprep.subr.mxu0 0.0
    %1392 = vmatpush1.msra.mxu0 0.0
    %1393 = vmatprep.subr.mxu0 0.0
    %1394 = vmatpush1.msra.mxu0 0.0
    %1395 = vmatprep.subr.mxu0 0.0
    %1396 = vmatpush1.msra.mxu0 0.0
    %1397 = vmatprep.subr.mxu0 0.0
    %1398 = vmatpush1.msra.mxu0 0.0
    %1399 = vmatprep.subr.mxu0 0.0
    %1400 = vmatpush1.msra.mxu0 0.0
    %1401 = vmatprep.subr.mxu0 0.0
    %1402 = vmatpush1.msra.mxu0 0.0
    %1403 = vmatprep.subr.mxu0 0.0
    %1404 = vmatpush1.msra.mxu0 0.0
    %1405 = vmatprep.subr.mxu0 0.0
    %1406 = vmatpush1.msra.mxu0 0.0
    %1407 = vmatprep.subr.mxu0 0.0
    %1408 = vmatpush1.msra.mxu0 0.0
    %1409 = vmatprep.subr.mxu0 0.0
    %1410 = vmatpush1.msra.mxu0 0.0
    %1411 = vmatprep.subr.mxu0 0.0
    %1412 = vmatpush1.msra.mxu0 0.0
    %1413 = vmatprep.subr.mxu0 0.0
    %1414 = vmatpush1.msra.mxu0 0.0
    %1415 = vmatprep.subr.mxu0 0.0
    %1416 = vmatpush1.msra.mxu0 0.0
    %1417 = vmatprep.subr.mxu0 0.0
    %1418 = vmatpush1.msra.mxu0 0.0
    %1419 = vmatprep.subr.mxu0 0.0
    %1420 = vmatpush1.msra.mxu0 0.0
    %1421 = vmatprep.subr.mxu0 0.0
    %1422 = vmatpush1.msra.mxu0 0.0
    %1423 = vmatprep.mubr.f32.mxu0 0.0
    %1424 = vmatmul.mubr.f32.gmra.mrb[0].mxu0 %v1357
    %v1425 = vpop.f32.mrb[0].mxu0
    %v1426 = vadd.f32 0.0, %v1425
    %v1427 = vpop.f32.mrb[0].mxu0
    %1428 = vdwg.mxu0
    %v1430 = vsel %vm96, %v82, 0
    %1432 = vmatprep.subr.mxu0 0.0
    %1433 = vmatpush1.msra.mxu0 %v1277
    %1434 = vmatprep.subr.mxu0 0.0
    %1435 = vmatpush1.msra.mxu0 0.0
    %1436 = vmatprep.subr.mxu0 0.0
    %1437 = vmatpush1.msra.mxu0 0.0
    %1438 = vmatprep.subr.mxu0 0.0
    %1439 = vmatpush1.msra.mxu0 0.0
    %1440 = vmatprep.subr.mxu0 0.0
    %1441 = vmatpush1.msra.mxu0 0.0
    %1442 = vmatprep.subr.mxu0 0.0
    %1443 = vmatpush1.msra.mxu0 0.0
    %1444 = vmatprep.subr.mxu0 0.0
    %1445 = vmatpush1.msra.mxu0 0.0
    %1446 = vmatprep.subr.mxu0 0.0
    %1447 = vmatpush1.msra.mxu0 0.0
    %1448 = vmatprep.subr.mxu0 0.0
    %1449 = vmatpush1.msra.mxu0 0.0
    %1450 = vmatprep.subr.mxu0 0.0
    %1451 = vmatpush1.msra.mxu0 0.0
    %1452 = vmatprep.subr.mxu0 0.0
    %1453 = vmatpush1.msra.mxu0 0.0
    %1454 = vmatprep.subr.mxu0 0.0
    %1455 = vmatpush1.msra.mxu0 0.0
    %1456 = vmatprep.subr.mxu0 0.0
    %1457 = vmatpush1.msra.mxu0 0.0
    %1458 = vmatprep.subr.mxu0 0.0
    %1459 = vmatpush1.msra.mxu0 0.0
    %1460 = vmatprep.subr.mxu0 0.0
    %1461 = vmatpush1.msra.mxu0 0.0
    %1462 = vmatprep.subr.mxu0 0.0
    %1463 = vmatpush1.msra.mxu0 0.0
    %1464 = vmatprep.subr.mxu0 0.0
    %1465 = vmatpush1.msra.mxu0 0.0
    %1466 = vmatprep.subr.mxu0 0.0
    %1467 = vmatpush1.msra.mxu0 0.0
    %1468 = vmatprep.subr.mxu0 0.0
    %1469 = vmatpush1.msra.mxu0 0.0
    %1470 = vmatprep.subr.mxu0 0.0
    %1471 = vmatpush1.msra.mxu0 0.0
    %1472 = vmatprep.subr.mxu0 0.0
    %1473 = vmatpush1.msra.mxu0 0.0
    %1474 = vmatprep.subr.mxu0 0.0
    %1475 = vmatpush1.msra.mxu0 0.0
    %1476 = vmatprep.subr.mxu0 0.0
    %1477 = vmatpush1.msra.mxu0 0.0
    %1478 = vmatprep.subr.mxu0 0.0
    %1479 = vmatpush1.msra.mxu0 0.0
    %1480 = vmatprep.subr.mxu0 0.0
    %1481 = vmatpush1.msra.mxu0 0.0
    %1482 = vmatprep.subr.mxu0 0.0
    %1483 = vmatpush1.msra.mxu0 0.0
    %1484 = vmatprep.subr.mxu0 0.0
    %1485 = vmatpush1.msra.mxu0 0.0
    %1486 = vmatprep.subr.mxu0 0.0
    %1487 = vmatpush1.msra.mxu0 0.0
    %1488 = vmatprep.subr.mxu0 0.0
    %1489 = vmatpush1.msra.mxu0 0.0
    %1490 = vmatprep.subr.mxu0 0.0
    %1491 = vmatpush1.msra.mxu0 0.0
    %1492 = vmatprep.subr.mxu0 0.0
    %1493 = vmatpush1.msra.mxu0 0.0
    %1494 = vmatprep.subr.mxu0 0.0
    %1495 = vmatpush1.msra.mxu0 0.0
    %1496 = vmatprep.mubr.f32.mxu0 0.0
    %1497 = vmatmul.mubr.f32.gmra.mrb[0].mxu0 %v1430
    %v1498 = vpop.f32.mrb[0].mxu0
    %v1499 = vadd.f32 0.0, %v1498
    %v1500 = vpop.f32.mrb[0].mxu0
    %1501 = vdwg.mxu0
    %v1503 = vsel %vm96, %v83, 0
    %1505 = vmatprep.subr.mxu0 0.0
    %1506 = vmatpush1.msra.mxu0 %v1278
    %1507 = vmatprep.subr.mxu0 0.0
    %1508 = vmatpush1.msra.mxu0 0.0
    %1509 = vmatprep.subr.mxu0 0.0
    %1510 = vmatpush1.msra.mxu0 0.0
    %1511 = vmatprep.subr.mxu0 0.0
    %1512 = vmatpush1.msra.mxu0 0.0
    %1513 = vmatprep.subr.mxu0 0.0
    %1514 = vmatpush1.msra.mxu0 0.0
    %1515 = vmatprep.subr.mxu0 0.0
    %1516 = vmatpush1.msra.mxu0 0.0
    %1517 = vmatprep.subr.mxu0 0.0
    %1518 = vmatpush1.msra.mxu0 0.0
    %1519 = vmatprep.subr.mxu0 0.0
    %1520 = vmatpush1.msra.mxu0 0.0
    %1521 = vmatprep.subr.mxu0 0.0
    %1522 = vmatpush1.msra.mxu0 0.0
    %1523 = vmatprep.subr.mxu0 0.0
    %1524 = vmatpush1.msra.mxu0 0.0
    %1525 = vmatprep.subr.mxu0 0.0
    %1526 = vmatpush1.msra.mxu0 0.0
    %1527 = vmatprep.subr.mxu0 0.0
    %1528 = vmatpush1.msra.mxu0 0.0
    %1529 = vmatprep.subr.mxu0 0.0
    %1530 = vmatpush1.msra.mxu0 0.0
    %1531 = vmatprep.subr.mxu0 0.0
    %1532 = vmatpush1.msra.mxu0 0.0
    %1533 = vmatprep.subr.mxu0 0.0
    %1534 = vmatpush1.msra.mxu0 0.0
    %1535 = vmatprep.subr.mxu0 0.0
    %1536 = vmatpush1.msra.mxu0 0.0
    %1537 = vmatprep.subr.mxu0 0.0
    %1538 = vmatpush1.msra.mxu0 0.0
    %1539 = vmatprep.subr.mxu0 0.0
    %1540 = vmatpush1.msra.mxu0 0.0
    %1541 = vmatprep.subr.mxu0 0.0
    %1542 = vmatpush1.msra.mxu0 0.0
    %1543 = vmatprep.subr.mxu0 0.0
    %1544 = vmatpush1.msra.mxu0 0.0
    %1545 = vmatprep.subr.mxu0 0.0
    %1546 = vmatpush1.msra.mxu0 0.0
    %1547 = vmatprep.subr.mxu0 0.0
    %1548 = vmatpush1.msra.mxu0 0.0
    %1549 = vmatprep.subr.mxu0 0.0
    %1550 = vmatpush1.msra.mxu0 0.0
    %1551 = vmatprep.subr.mxu0 0.0
    %1552 = vmatpush1.msra.mxu0 0.0
    %1553 = vmatprep.subr.mxu0 0.0
    %1554 = vmatpush1.msra.mxu0 0.0
    %1555 = vmatprep.subr.mxu0 0.0
    %1556 = vmatpush1.msra.mxu0 0.0
    %1557 = vmatprep.subr.mxu0 0.0
    %1558 = vmatpush1.msra.mxu0 0.0
    %1559 = vmatprep.subr.mxu0 0.0
    %1560 = vmatpush1.msra.mxu0 0.0
    %1561 = vmatprep.subr.mxu0 0.0
    %1562 = vmatpush1.msra.mxu0 0.0
    %1563 = vmatprep.subr.mxu0 0.0
    %1564 = vmatpush1.msra.mxu0 0.0
    %1565 = vmatprep.subr.mxu0 0.0
    %1566 = vmatpush1.msra.mxu0 0.0
    %1567 = vmatprep.subr.mxu0 0.0
    %1568 = vmatpush1.msra.mxu0 0.0
    %1569 = vmatprep.mubr.f32.mxu0 0.0
    %1570 = vmatmul.mubr.f32.gmra.mrb[0].mxu0 %v1503
    %v1571 = vpop.f32.mrb[0].mxu0
    %v1572 = vadd.f32 0.0, %v1571
    %v1573 = vpop.f32.mrb[0].mxu0
    %1574 = vdwg.mxu0
    %v1576 = vsel %vm96, %v84, 0
    %1578 = vmatprep.subr.mxu0 0.0
    %1579 = vmatpush1.msra.mxu0 %v1279
    %1580 = vmatprep.subr.mxu0 0.0
    %1581 = vmatpush1.msra.mxu0 0.0
    %1582 = vmatprep.subr.mxu0 0.0
    %1583 = vmatpush1.msra.mxu0 0.0
    %1584 = vmatprep.subr.mxu0 0.0
    %1585 = vmatpush1.msra.mxu0 0.0
    %1586 = vmatprep.subr.mxu0 0.0
    %1587 = vmatpush1.msra.mxu0 0.0
    %1588 = vmatprep.subr.mxu0 0.0
    %1589 = vmatpush1.msra.mxu0 0.0
    %1590 = vmatprep.subr.mxu0 0.0
    %1591 = vmatpush1.msra.mxu0 0.0
    %1592 = vmatprep.subr.mxu0 0.0
    %1593 = vmatpush1.msra.mxu0 0.0
    %1594 = vmatprep.subr.mxu0 0.0
    %1595 = vmatpush1.msra.mxu0 0.0
    %1596 = vmatprep.subr.mxu0 0.0
    %1597 = vmatpush1.msra.mxu0 0.0
    %1598 = vmatprep.subr.mxu0 0.0
    %1599 = vmatpush1.msra.mxu0 0.0
    %1600 = vmatprep.subr.mxu0 0.0
    %1601 = vmatpush1.msra.mxu0 0.0
    %1602 = vmatprep.subr.mxu0 0.0
    %1603 = vmatpush1.msra.mxu0 0.0
    %1604 = vmatprep.subr.mxu0 0.0
    %1605 = vmatpush1.msra.mxu0 0.0
    %1606 = vmatprep.subr.mxu0 0.0
    %1607 = vmatpush1.msra.mxu0 0.0
    %1608 = vmatprep.subr.mxu0 0.0
    %1609 = vmatpush1.msra.mxu0 0.0
    %1610 = vmatprep.subr.mxu0 0.0
    %1611 = vmatpush1.msra.mxu0 0.0
    %1612 = vmatprep.subr.mxu0 0.0
    %1613 = vmatpush1.msra.mxu0 0.0
    %1614 = vmatprep.subr.mxu0 0.0
    %1615 = vmatpush1.msra.mxu0 0.0
    %1616 = vmatprep.subr.mxu0 0.0
    %1617 = vmatpush1.msra.mxu0 0.0
    %1618 = vmatprep.subr.mxu0 0.0
    %1619 = vmatpush1.msra.mxu0 0.0
    %1620 = vmatprep.subr.mxu0 0.0
    %1621 = vmatpush1.msra.mxu0 0.0
    %1622 = vmatprep.subr.mxu0 0.0
    %1623 = vmatpush1.msra.mxu0 0.0
    %1624 = vmatprep.subr.mxu0 0.0
    %1625 = vmatpush1.msra.mxu0 0.0
    %1626 = vmatprep.subr.mxu0 0.0
    %1627 = vmatpush1.msra.mxu0 0.0
    %1628 = vmatprep.subr.mxu0 0.0
    %1629 = vmatpush1.msra.mxu0 0.0
    %1630 = vmatprep.subr.mxu0 0.0
    %1631 = vmatpush1.msra.mxu0 0.0
    %1632 = vmatprep.subr.mxu0 0.0
    %1633 = vmatpush1.msra.mxu0 0.0
    %1634 = vmatprep.subr.mxu0 0.0
    %1635 = vmatpush1.msra.mxu0 0.0
    %1636 = vmatprep.subr.mxu0 0.0
    %1637 = vmatpush1.msra.mxu0 0.0
    %1638 = vmatprep.subr.mxu0 0.0
    %1639 = vmatpush1.msra.mxu0 0.0
    %1640 = vmatprep.subr.mxu0 0.0
    %1641 = vmatpush1.msra.mxu0 0.0
    %1642 = vmatprep.mubr.f32.mxu0 0.0
    %1643 = vmatmul.mubr.f32.gmra.mrb[0].mxu0 %v1576
    %v1644 = vpop.f32.mrb[0].mxu0
    %v1645 = vadd.f32 0.0, %v1644
    %v1646 = vpop.f32.mrb[0].mxu0
    %1647 = vdwg.mxu0
    %v1649 = vsel %vm96, %v85, 0
    %1651 = vmatprep.subr.mxu0 0.0
    %1652 = vmatpush1.msra.mxu0 %v1280
    %1653 = vmatprep.subr.mxu0 0.0
    %1654 = vmatpush1.msra.mxu0 0.0
    %1655 = vmatprep.subr.mxu0 0.0
    %1656 = vmatpush1.msra.mxu0 0.0
    %1657 = vmatprep.subr.mxu0 0.0
    %1658 = vmatpush1.msra.mxu0 0.0
    %1659 = vmatprep.subr.mxu0 0.0
    %1660 = vmatpush1.msra.mxu0 0.0
    %1661 = vmatprep.subr.mxu0 0.0
    %1662 = vmatpush1.msra.mxu0 0.0
    %1663 = vmatprep.subr.mxu0 0.0
    %1664 = vmatpush1.msra.mxu0 0.0
    %1665 = vmatprep.subr.mxu0 0.0
    %1666 = vmatpush1.msra.mxu0 0.0
    %1667 = vmatprep.subr.mxu0 0.0
    %1668 = vmatpush1.msra.mxu0 0.0
    %1669 = vmatprep.subr.mxu0 0.0
    %1670 = vmatpush1.msra.mxu0 0.0
    %1671 = vmatprep.subr.mxu0 0.0
    %1672 = vmatpush1.msra.mxu0 0.0
    %1673 = vmatprep.subr.mxu0 0.0
    %1674 = vmatpush1.msra.mxu0 0.0
    %1675 = vmatprep.subr.mxu0 0.0
    %1676 = vmatpush1.msra.mxu0 0.0
    %1677 = vmatprep.subr.mxu0 0.0
    %1678 = vmatpush1.msra.mxu0 0.0
    %1679 = vmatprep.subr.mxu0 0.0
    %1680 = vmatpush1.msra.mxu0 0.0
    %1681 = vmatprep.subr.mxu0 0.0
    %1682 = vmatpush1.msra.mxu0 0.0
    %1683 = vmatprep.subr.mxu0 0.0
    %1684 = vmatpush1.msra.mxu0 0.0
    %1685 = vmatprep.subr.mxu0 0.0
    %1686 = vmatpush1.msra.mxu0 0.0
    %1687 = vmatprep.subr.mxu0 0.0
    %1688 = vmatpush1.msra.mxu0 0.0
    %1689 = vmatprep.subr.mxu0 0.0
    %1690 = vmatpush1.msra.mxu0 0.0
    %1691 = vmatprep.subr.mxu0 0.0
    %1692 = vmatpush1.msra.mxu0 0.0
    %1693 = vmatprep.subr.mxu0 0.0
    %1694 = vmatpush1.msra.mxu0 0.0
    %1695 = vmatprep.subr.mxu0 0.0
    %1696 = vmatpush1.msra.mxu0 0.0
    %1697 = vmatprep.subr.mxu0 0.0
    %1698 = vmatpush1.msra.mxu0 0.0
    %1699 = vmatprep.subr.mxu0 0.0
    %1700 = vmatpush1.msra.mxu0 0.0
    %1701 = vmatprep.subr.mxu0 0.0
    %1702 = vmatpush1.msra.mxu0 0.0
    %1703 = vmatprep.subr.mxu0 0.0
    %1704 = vmatpush1.msra.mxu0 0.0
    %1705 = vmatprep.subr.mxu0 0.0
    %1706 = vmatpush1.msra.mxu0 0.0
    %1707 = vmatprep.subr.mxu0 0.0
    %1708 = vmatpush1.msra.mxu0 0.0
    %1709 = vmatprep.subr.mxu0 0.0
    %1710 = vmatpush1.msra.mxu0 0.0
    %1711 = vmatprep.subr.mxu0 0.0
    %1712 = vmatpush1.msra.mxu0 0.0
    %1713 = vmatprep.subr.mxu0 0.0
    %1714 = vmatpush1.msra.mxu0 0.0
    %1715 = vmatprep.mubr.f32.mxu0 0.0
    %1716 = vmatmul.mubr.f32.gmra.mrb[0].mxu0 %v1649
    %v1717 = vpop.f32.mrb[0].mxu0
    %v1718 = vadd.f32 0.0, %v1717
    %v1719 = vpop.f32.mrb[0].mxu0
    %1720 = vdwg.mxu0
    %v1722 = vsel %vm96, %v86, 0
    %1724 = vmatprep.subr.mxu0 0.0
    %1725 = vmatpush1.msra.mxu0 %v1281
    %1726 = vmatprep.subr.mxu0 0.0
    %1727 = vmatpush1.msra.mxu0 0.0
    %1728 = vmatprep.subr.mxu0 0.0
    %1729 = vmatpush1.msra.mxu0 0.0
    %1730 = vmatprep.subr.mxu0 0.0
    %1731 = vmatpush1.msra.mxu0 0.0
    %1732 = vmatprep.subr.mxu0 0.0
    %1733 = vmatpush1.msra.mxu0 0.0
    %1734 = vmatprep.subr.mxu0 0.0
    %1735 = vmatpush1.msra.mxu0 0.0
    %1736 = vmatprep.subr.mxu0 0.0
    %1737 = vmatpush1.msra.mxu0 0.0
    %1738 = vmatprep.subr.mxu0 0.0
    %1739 = vmatpush1.msra.mxu0 0.0
    %1740 = vmatprep.subr.mxu0 0.0
    %1741 = vmatpush1.msra.mxu0 0.0
    %1742 = vmatprep.subr.mxu0 0.0
    %1743 = vmatpush1.msra.mxu0 0.0
    %1744 = vmatprep.subr.mxu0 0.0
    %1745 = vmatpush1.msra.mxu0 0.0
    %1746 = vmatprep.subr.mxu0 0.0
    %1747 = vmatpush1.msra.mxu0 0.0
    %1748 = vmatprep.subr.mxu0 0.0
    %1749 = vmatpush1.msra.mxu0 0.0
    %1750 = vmatprep.subr.mxu0 0.0
    %1751 = vmatpush1.msra.mxu0 0.0
    %1752 = vmatprep.subr.mxu0 0.0
    %1753 = vmatpush1.msra.mxu0 0.0
    %1754 = vmatprep.subr.mxu0 0.0
    %1755 = vmatpush1.msra.mxu0 0.0
    %1756 = vmatprep.subr.mxu0 0.0
    %1757 = vmatpush1.msra.mxu0 0.0
    %1758 = vmatprep.subr.mxu0 0.0
    %1759 = vmatpush1.msra.mxu0 0.0
    %1760 = vmatprep.subr.mxu0 0.0
    %1761 = vmatpush1.msra.mxu0 0.0
    %1762 = vmatprep.subr.mxu0 0.0
    %1763 = vmatpush1.msra.mxu0 0.0
    %1764 = vmatprep.subr.mxu0 0.0
    %1765 = vmatpush1.msra.mxu0 0.0
    %1766 = vmatprep.subr.mxu0 0.0
    %1767 = vmatpush1.msra.mxu0 0.0
    %1768 = vmatprep.subr.mxu0 0.0
    %1769 = vmatpush1.msra.mxu0 0.0
    %1770 = vmatprep.subr.mxu0 0.0
    %1771 = vmatpush1.msra.mxu0 0.0
    %1772 = vmatprep.subr.mxu0 0.0
    %1773 = vmatpush1.msra.mxu0 0.0
    %1774 = vmatprep.subr.mxu0 0.0
    %1775 = vmatpush1.msra.mxu0 0.0
    %1776 = vmatprep.subr.mxu0 0.0
    %1777 = vmatpush1.msra.mxu0 0.0
    %1778 = vmatprep.subr.mxu0 0.0
    %1779 = vmatpush1.msra.mxu0 0.0
    %1780 = vmatprep.subr.mxu0 0.0
    %1781 = vmatpush1.msra.mxu0 0.0
    %1782 = vmatprep.subr.mxu0 0.0
    %1783 = vmatpush1.msra.mxu0 0.0
    %1784 = vmatprep.subr.mxu0 0.0
    %1785 = vmatpush1.msra.mxu0 0.0
    %1786 = vmatprep.subr.mxu0 0.0
    %1787 = vmatpush1.msra.mxu0 0.0
    %1788 = vmatprep.mubr.f32.mxu0 0.0
    %1789 = vmatmul.mubr.f32.gmra.mrb[0].mxu0 %v1722
    %v1790 = vpop.f32.mrb[0].mxu0
    %v1791 = vadd.f32 0.0, %v1790
    %v1792 = vpop.f32.mrb[0].mxu0
    %1793 = vdwg.mxu0
    %v1795 = vsel %vm96, %v87, 0
    %1797 = vmatprep.subr.mxu0 0.0
    %1798 = vmatpush1.msra.mxu0 %v1282
    %1799 = vmatprep.subr.mxu0 0.0
    %1800 = vmatpush1.msra.mxu0 0.0
    %1801 = vmatprep.subr.mxu0 0.0
    %1802 = vmatpush1.msra.mxu0 0.0
    %1803 = vmatprep.subr.mxu0 0.0
    %1804 = vmatpush1.msra.mxu0 0.0
    %1805 = vmatprep.subr.mxu0 0.0
    %1806 = vmatpush1.msra.mxu0 0.0
    %1807 = vmatprep.subr.mxu0 0.0
    %1808 = vmatpush1.msra.mxu0 0.0
    %1809 = vmatprep.subr.mxu0 0.0
    %1810 = vmatpush1.msra.mxu0 0.0
    %1811 = vmatprep.subr.mxu0 0.0
    %1812 = vmatpush1.msra.mxu0 0.0
    %1813 = vmatprep.subr.mxu0 0.0
    %1814 = vmatpush1.msra.mxu0 0.0
    %1815 = vmatprep.subr.mxu0 0.0
    %1816 = vmatpush1.msra.mxu0 0.0
    %1817 = vmatprep.subr.mxu0 0.0
    %1818 = vmatpush1.msra.mxu0 0.0
    %1819 = vmatprep.subr.mxu0 0.0
    %1820 = vmatpush1.msra.mxu0 0.0
    %1821 = vmatprep.subr.mxu0 0.0
    %1822 = vmatpush1.msra.mxu0 0.0
    %1823 = vmatprep.subr.mxu0 0.0
    %1824 = vmatpush1.msra.mxu0 0.0
    %1825 = vmatprep.subr.mxu0 0.0
    %1826 = vmatpush1.msra.mxu0 0.0
    %1827 = vmatprep.subr.mxu0 0.0
    %1828 = vmatpush1.msra.mxu0 0.0
    %1829 = vmatprep.subr.mxu0 0.0
    %1830 = vmatpush1.msra.mxu0 0.0
    %1831 = vmatprep.subr.mxu0 0.0
    %1832 = vmatpush1.msra.mxu0 0.0
    %1833 = vmatprep.subr.mxu0 0.0
    %1834 = vmatpush1.msra.mxu0 0.0
    %1835 = vmatprep.subr.mxu0 0.0
    %1836 = vmatpush1.msra.mxu0 0.0
    %1837 = vmatprep.subr.mxu0 0.0
    %1838 = vmatpush1.msra.mxu0 0.0
    %1839 = vmatprep.subr.mxu0 0.0
    %1840 = vmatpush1.msra.mxu0 0.0
    %1841 = vmatprep.subr.mxu0 0.0
    %1842 = vmatpush1.msra.mxu0 0.0
    %1843 = vmatprep.subr.mxu0 0.0
    %1844 = vmatpush1.msra.mxu0 0.0
    %1845 = vmatprep.subr.mxu0 0.0
    %1846 = vmatpush1.msra.mxu0 0.0
    %1847 = vmatprep.subr.mxu0 0.0
    %1848 = vmatpush1.msra.mxu0 0.0
    %1849 = vmatprep.subr.mxu0 0.0
    %1850 = vmatpush1.msra.mxu0 0.0
    %1851 = vmatprep.subr.mxu0 0.0
    %1852 = vmatpush1.msra.mxu0 0.0
    %1853 = vmatprep.subr.mxu0 0.0
    %1854 = vmatpush1.msra.mxu0 0.0
    %1855 = vmatprep.subr.mxu0 0.0
    %1856 = vmatpush1.msra.mxu0 0.0
    %1857 = vmatprep.subr.mxu0 0.0
    %1858 = vmatpush1.msra.mxu0 0.0
    %1859 = vmatprep.subr.mxu0 0.0
    %1860 = vmatpush1.msra.mxu0 0.0
    %1861 = vmatprep.mubr.f32.mxu0 0.0
    %1862 = vmatmul.mubr.f32.gmra.mrb[0].mxu0 %v1795
    %v1863 = vpop.f32.mrb[0].mxu0
    %v1864 = vadd.f32 0.0, %v1863
    %v1865 = vpop.f32.mrb[0].mxu0
    %1866 = vdwg.mxu0
    %vm1867 = vcmask 261120
    %v1869 = vsel %vm1867, %v167, 0
    %v1872 = vsel %vm1867, %v760, 0
    %1874 = vmatprep.subr.mxu0 0.0
    %1875 = vmatpush1.xpose.msra.mxu0 %v1872
    %1876 = vmatprep.subr.mxu0 0.0
    %1877 = vmatpush1.xpose.msra.mxu0 0.0
    %1878 = vmatprep.subr.mxu0 0.0
    %1879 = vmatpush1.xpose.msra.mxu0 0.0
    %1880 = vmatprep.subr.mxu0 0.0
    %1881 = vmatpush1.xpose.msra.mxu0 0.0
    %1882 = vmatprep.subr.mxu0 0.0
    %1883 = vmatpush1.xpose.msra.mxu0 0.0
    %1884 = vmatprep.subr.mxu0 0.0
    %1885 = vmatpush1.xpose.msra.mxu0 0.0
    %1886 = vmatprep.subr.mxu0 0.0
    %1887 = vmatpush1.xpose.msra.mxu0 0.0
    %1888 = vmatprep.subr.mxu0 0.0
    %1889 = vmatpush1.xpose.msra.mxu0 0.0
    %1890 = vmatprep.subr.mxu0 0.0
    %1891 = vmatpush1.xpose.msra.mxu0 0.0
    %1892 = vmatprep.subr.mxu0 0.0
    %1893 = vmatpush1.xpose.msra.mxu0 0.0
    %1894 = vmatprep.subr.mxu0 0.0
    %1895 = vmatpush1.xpose.msra.mxu0 0.0
    %1896 = vmatprep.subr.mxu0 0.0
    %1897 = vmatpush1.xpose.msra.mxu0 0.0
    %1898 = vmatprep.subr.mxu0 0.0
    %1899 = vmatpush1.xpose.msra.mxu0 0.0
    %1900 = vmatprep.subr.mxu0 0.0
    %1901 = vmatpush1.xpose.msra.mxu0 0.0
    %1902 = vmatprep.subr.mxu0 0.0
    %1903 = vmatpush1.xpose.msra.mxu0 0.0
    %1904 = vmatprep.subr.mxu0 0.0
    %1905 = vmatpush1.xpose.msra.mxu0 0.0
    %1906 = vmatprep.subr.mxu0 0.0
    %1907 = vmatpush1.xpose.msra.mxu0 0.0
    %1908 = vmatprep.subr.mxu0 0.0
    %1909 = vmatpush1.xpose.msra.mxu0 0.0
    %1910 = vmatprep.subr.mxu0 0.0
    %1911 = vmatpush1.xpose.msra.mxu0 0.0
    %1912 = vmatprep.subr.mxu0 0.0
    %1913 = vmatpush1.xpose.msra.mxu0 0.0
    %1914 = vmatprep.subr.mxu0 0.0
    %1915 = vmatpush1.xpose.msra.mxu0 0.0
    %1916 = vmatprep.subr.mxu0 0.0
    %1917 = vmatpush1.xpose.msra.mxu0 0.0
    %1918 = vmatprep.subr.mxu0 0.0
    %1919 = vmatpush1.xpose.msra.mxu0 0.0
    %1920 = vmatprep.subr.mxu0 0.0
    %1921 = vmatpush1.xpose.msra.mxu0 0.0
    %1922 = vmatprep.subr.mxu0 0.0
    %1923 = vmatpush1.xpose.msra.mxu0 0.0
    %1924 = vmatprep.subr.mxu0 0.0
    %1925 = vmatpush1.xpose.msra.mxu0 0.0
    %1926 = vmatprep.subr.mxu0 0.0
    %1927 = vmatpush1.xpose.msra.mxu0 0.0
    %1928 = vmatprep.subr.mxu0 0.0
    %1929 = vmatpush1.xpose.msra.mxu0 0.0
    %1930 = vmatprep.subr.mxu0 0.0
    %1931 = vmatpush1.xpose.msra.mxu0 0.0
    %1932 = vmatprep.subr.mxu0 0.0
    %1933 = vmatpush1.xpose.msra.mxu0 0.0
    %1934 = vmatprep.subr.mxu0 0.0
    %1935 = vmatpush1.xpose.msra.mxu0 0.0
    %1936 = vmatprep.subr.mxu0 0.0
    %1937 = vmatpush1.xpose.msra.mxu0 0.0
    %1938 = vmatprep.mubr.f32.mxu0 0.0
    %1939 = vmatmul.mubr.f32.gmra.mrb[0].mxu0 %v1869
    %v1940 = vpop.f32.mrb[0].mxu0
    %v1941 = vadd.f32 0.0, %v1940
    %v1942 = vpop.f32.mrb[0].mxu0
    %1943 = vdwg.mxu0
    %v1945 = vsel %vm1867, %v240, 0
    %v1948 = vsel %vm1867, %v833, 0
    %1950 = vmatprep.subr.mxu0 0.0
    %1951 = vmatpush1.xpose.msra.mxu0 %v1948
    %1952 = vmatprep.subr.mxu0 0.0
    %1953 = vmatpush1.xpose.msra.mxu0 0.0
    %1954 = vmatprep.subr.mxu0 0.0
    %1955 = vmatpush1.xpose.msra.mxu0 0.0
    %1956 = vmatprep.subr.mxu0 0.0
    %1957 = vmatpush1.xpose.msra.mxu0 0.0
    %1958 = vmatprep.subr.mxu0 0.0
    %1959 = vmatpush1.xpose.msra.mxu0 0.0
    %1960 = vmatprep.subr.mxu0 0.0
    %1961 = vmatpush1.xpose.msra.mxu0 0.0
    %1962 = vmatprep.subr.mxu0 0.0
    %1963 = vmatpush1.xpose.msra.mxu0 0.0
    %1964 = vmatprep.subr.mxu0 0.0
    %1965 = vmatpush1.xpose.msra.mxu0 0.0
    %1966 = vmatprep.subr.mxu0 0.0
    %1967 = vmatpush1.xpose.msra.mxu0 0.0
    %1968 = vmatprep.subr.mxu0 0.0
    %1969 = vmatpush1.xpose.msra.mxu0 0.0
    %1970 = vmatprep.subr.mxu0 0.0
    %1971 = vmatpush1.xpose.msra.mxu0 0.0
    %1972 = vmatprep.subr.mxu0 0.0
    %1973 = vmatpush1.xpose.msra.mxu0 0.0
    %1974 = vmatprep.subr.mxu0 0.0
    %1975 = vmatpush1.xpose.msra.mxu0 0.0
    %1976 = vmatprep.subr.mxu0 0.0
    %1977 = vmatpush1.xpose.msra.mxu0 0.0
    %1978 = vmatprep.subr.mxu0 0.0
    %1979 = vmatpush1.xpose.msra.mxu0 0.0
    %1980 = vmatprep.subr.mxu0 0.0
    %1981 = vmatpush1.xpose.msra.mxu0 0.0
    %1982 = vmatprep.subr.mxu0 0.0
    %1983 = vmatpush1.xpose.msra.mxu0 0.0
    %1984 = vmatprep.subr.mxu0 0.0
    %1985 = vmatpush1.xpose.msra.mxu0 0.0
    %1986 = vmatprep.subr.mxu0 0.0
    %1987 = vmatpush1.xpose.msra.mxu0 0.0
    %1988 = vmatprep.subr.mxu0 0.0
    %1989 = vmatpush1.xpose.msra.mxu0 0.0
    %1990 = vmatprep.subr.mxu0 0.0
    %1991 = vmatpush1.xpose.msra.mxu0 0.0
    %1992 = vmatprep.subr.mxu0 0.0
    %1993 = vmatpush1.xpose.msra.mxu0 0.0
    %1994 = vmatprep.subr.mxu0 0.0
    %1995 = vmatpush1.xpose.msra.mxu0 0.0
    %1996 = vmatprep.subr.mxu0 0.0
    %1997 = vmatpush1.xpose.msra.mxu0 0.0
    %1998 = vmatprep.subr.mxu0 0.0
    %1999 = vmatpush1.xpose.msra.mxu0 0.0
    %2000 = vmatprep.subr.mxu0 0.0
    %2001 = vmatpush1.xpose.msra.mxu0 0.0
    %2002 = vmatprep.subr.mxu0 0.0
    %2003 = vmatpush1.xpose.msra.mxu0 0.0
    %2004 = vmatprep.subr.mxu0 0.0
    %2005 = vmatpush1.xpose.msra.mxu0 0.0
    %2006 = vmatprep.subr.mxu0 0.0
    %2007 = vmatpush1.xpose.msra.mxu0 0.0
    %2008 = vmatprep.subr.mxu0 0.0
    %2009 = vmatpush1.xpose.msra.mxu0 0.0
    %2010 = vmatprep.subr.mxu0 0.0
    %2011 = vmatpush1.xpose.msra.mxu0 0.0
    %2012 = vmatprep.subr.mxu0 0.0
    %2013 = vmatpush1.xpose.msra.mxu0 0.0
    %2014 = vmatprep.mubr.f32.mxu0 0.0
    %2015 = vmatmul.mubr.f32.gmra.mrb[0].mxu0 %v1945
    %v2016 = vpop.f32.mrb[0].mxu0
    %v2017 = vadd.f32 0.0, %v2016
    %v2018 = vpop.f32.mrb[0].mxu0
    %2019 = vdwg.mxu0
    %v2021 = vsel %vm1867, %v313, 0
    %v2024 = vsel %vm1867, %v906, 0
    %2026 = vmatprep.subr.mxu0 0.0
    %2027 = vmatpush1.xpose.msra.mxu0 %v2024
    %2028 = vmatprep.subr.mxu0 0.0
    %2029 = vmatpush1.xpose.msra.mxu0 0.0
    %2030 = vmatprep.subr.mxu0 0.0
    %2031 = vmatpush1.xpose.msra.mxu0 0.0
    %2032 = vmatprep.subr.mxu0 0.0
    %2033 = vmatpush1.xpose.msra.mxu0 0.0
    %2034 = vmatprep.subr.mxu0 0.0
    %2035 = vmatpush1.xpose.msra.mxu0 0.0
    %2036 = vmatprep.subr.mxu0 0.0
    %2037 = vmatpush1.xpose.msra.mxu0 0.0
    %2038 = vmatprep.subr.mxu0 0.0
    %2039 = vmatpush1.xpose.msra.mxu0 0.0
    %2040 = vmatprep.subr.mxu0 0.0
    %2041 = vmatpush1.xpose.msra.mxu0 0.0
    %2042 = vmatprep.subr.mxu0 0.0
    %2043 = vmatpush1.xpose.msra.mxu0 0.0
    %2044 = vmatprep.subr.mxu0 0.0
    %2045 = vmatpush1.xpose.msra.mxu0 0.0
    %2046 = vmatprep.subr.mxu0 0.0
    %2047 = vmatpush1.xpose.msra.mxu0 0.0
    %2048 = vmatprep.subr.mxu0 0.0
    %2049 = vmatpush1.xpose.msra.mxu0 0.0
    %2050 = vmatprep.subr.mxu0 0.0
    %2051 = vmatpush1.xpose.msra.mxu0 0.0
    %2052 = vmatprep.subr.mxu0 0.0
    %2053 = vmatpush1.xpose.msra.mxu0 0.0
    %2054 = vmatprep.subr.mxu0 0.0
    %2055 = vmatpush1.xpose.msra.mxu0 0.0
    %2056 = vmatprep.subr.mxu0 0.0
    %2057 = vmatpush1.xpose.msra.mxu0 0.0
    %2058 = vmatprep.subr.mxu0 0.0
    %2059 = vmatpush1.xpose.msra.mxu0 0.0
    %2060 = vmatprep.subr.mxu0 0.0
    %2061 = vmatpush1.xpose.msra.mxu0 0.0
    %2062 = vmatprep.subr.mxu0 0.0
    %2063 = vmatpush1.xpose.msra.mxu0 0.0
    %2064 = vmatprep.subr.mxu0 0.0
    %2065 = vmatpush1.xpose.msra.mxu0 0.0
    %2066 = vmatprep.subr.mxu0 0.0
    %2067 = vmatpush1.xpose.msra.mxu0 0.0
    %2068 = vmatprep.subr.mxu0 0.0
    %2069 = vmatpush1.xpose.msra.mxu0 0.0
    %2070 = vmatprep.subr.mxu0 0.0
    %2071 = vmatpush1.xpose.msra.mxu0 0.0
    %2072 = vmatprep.subr.mxu0 0.0
    %2073 = vmatpush1.xpose.msra.mxu0 0.0
    %2074 = vmatprep.subr.mxu0 0.0
    %2075 = vmatpush1.xpose.msra.mxu0 0.0
    %2076 = vmatprep.subr.mxu0 0.0
    %2077 = vmatpush1.xpose.msra.mxu0 0.0
    %2078 = vmatprep.subr.mxu0 0.0
    %2079 = vmatpush1.xpose.msra.mxu0 0.0
    %2080 = vmatprep.subr.mxu0 0.0
    %2081 = vmatpush1.xpose.msra.mxu0 0.0
    %2082 = vmatprep.subr.mxu0 0.0
    %2083 = vmatpush1.xpose.msra.mxu0 0.0
    %2084 = vmatprep.subr.mxu0 0.0
    %2085 = vmatpush1.xpose.msra.mxu0 0.0
    %2086 = vmatprep.subr.mxu0 0.0
    %2087 = vmatpush1.xpose.msra.mxu0 0.0
    %2088 = vmatprep.subr.mxu0 0.0
    %2089 = vmatpush1.xpose.msra.mxu0 0.0
    %2090 = vmatprep.mubr.f32.mxu0 0.0
    %2091 = vmatmul.mubr.f32.gmra.mrb[0].mxu0 %v2021
    %v2092 = vpop.f32.mrb[0].mxu0
    %v2093 = vadd.f32 0.0, %v2092
    %v2094 = vpop.f32.mrb[0].mxu0
    %2095 = vdwg.mxu0
    %v2097 = vsel %vm1867, %v386, 0
    %v2100 = vsel %vm1867, %v979, 0
    %2102 = vmatprep.subr.mxu0 0.0
    %2103 = vmatpush1.xpose.msra.mxu0 %v2100
    %2104 = vmatprep.subr.mxu0 0.0
    %2105 = vmatpush1.xpose.msra.mxu0 0.0
    %2106 = vmatprep.subr.mxu0 0.0
    %2107 = vmatpush1.xpose.msra.mxu0 0.0
    %2108 = vmatprep.subr.mxu0 0.0
    %2109 = vmatpush1.xpose.msra.mxu0 0.0
    %2110 = vmatprep.subr.mxu0 0.0
    %2111 = vmatpush1.xpose.msra.mxu0 0.0
    %2112 = vmatprep.subr.mxu0 0.0
    %2113 = vmatpush1.xpose.msra.mxu0 0.0
    %2114 = vmatprep.subr.mxu0 0.0
    %2115 = vmatpush1.xpose.msra.mxu0 0.0
    %2116 = vmatprep.subr.mxu0 0.0
    %2117 = vmatpush1.xpose.msra.mxu0 0.0
    %2118 = vmatprep.subr.mxu0 0.0
    %2119 = vmatpush1.xpose.msra.mxu0 0.0
    %2120 = vmatprep.subr.mxu0 0.0
    %2121 = vmatpush1.xpose.msra.mxu0 0.0
    %2122 = vmatprep.subr.mxu0 0.0
    %2123 = vmatpush1.xpose.msra.mxu0 0.0
    %2124 = vmatprep.subr.mxu0 0.0
    %2125 = vmatpush1.xpose.msra.mxu0 0.0
    %2126 = vmatprep.subr.mxu0 0.0
    %2127 = vmatpush1.xpose.msra.mxu0 0.0
    %2128 = vmatprep.subr.mxu0 0.0
    %2129 = vmatpush1.xpose.msra.mxu0 0.0
    %2130 = vmatprep.subr.mxu0 0.0
    %2131 = vmatpush1.xpose.msra.mxu0 0.0
    %2132 = vmatprep.subr.mxu0 0.0
    %2133 = vmatpush1.xpose.msra.mxu0 0.0
    %2134 = vmatprep.subr.mxu0 0.0
    %2135 = vmatpush1.xpose.msra.mxu0 0.0
    %2136 = vmatprep.subr.mxu0 0.0
    %2137 = vmatpush1.xpose.msra.mxu0 0.0
    %2138 = vmatprep.subr.mxu0 0.0
    %2139 = vmatpush1.xpose.msra.mxu0 0.0
    %2140 = vmatprep.subr.mxu0 0.0
    %2141 = vmatpush1.xpose.msra.mxu0 0.0
    %2142 = vmatprep.subr.mxu0 0.0
    %2143 = vmatpush1.xpose.msra.mxu0 0.0
    %2144 = vmatprep.subr.mxu0 0.0
    %2145 = vmatpush1.xpose.msra.mxu0 0.0
    %2146 = vmatprep.subr.mxu0 0.0
    %2147 = vmatpush1.xpose.msra.mxu0 0.0
    %2148 = vmatprep.subr.mxu0 0.0
    %2149 = vmatpush1.xpose.msra.mxu0 0.0
    %2150 = vmatprep.subr.mxu0 0.0
    %2151 = vmatpush1.xpose.msra.mxu0 0.0
    %2152 = vmatprep.subr.mxu0 0.0
    %2153 = vmatpush1.xpose.msra.mxu0 0.0
    %2154 = vmatprep.subr.mxu0 0.0
    %2155 = vmatpush1.xpose.msra.mxu0 0.0
    %2156 = vmatprep.subr.mxu0 0.0
    %2157 = vmatpush1.xpose.msra.mxu0 0.0
    %2158 = vmatprep.subr.mxu0 0.0
    %2159 = vmatpush1.xpose.msra.mxu0 0.0
    %2160 = vmatprep.subr.mxu0 0.0
    %2161 = vmatpush1.xpose.msra.mxu0 0.0
    %2162 = vmatprep.subr.mxu0 0.0
    %2163 = vmatpush1.xpose.msra.mxu0 0.0
    %2164 = vmatprep.subr.mxu0 0.0
    %2165 = vmatpush1.xpose.msra.mxu0 0.0
    %2166 = vmatprep.mubr.f32.mxu0 0.0
    %2167 = vmatmul.mubr.f32.gmra.mrb[0].mxu0 %v2097
    %v2168 = vpop.f32.mrb[0].mxu0
    %v2169 = vadd.f32 0.0, %v2168
    %v2170 = vpop.f32.mrb[0].mxu0
    %2171 = vdwg.mxu0
    %v2173 = vsel %vm1867, %v459, 0
    %v2176 = vsel %vm1867, %v1052, 0
    %2178 = vmatprep.subr.mxu0 0.0
    %2179 = vmatpush1.xpose.msra.mxu0 %v2176
    %2180 = vmatprep.subr.mxu0 0.0
    %2181 = vmatpush1.xpose.msra.mxu0 0.0
    %2182 = vmatprep.subr.mxu0 0.0
    %2183 = vmatpush1.xpose.msra.mxu0 0.0
    %2184 = vmatprep.subr.mxu0 0.0
    %2185 = vmatpush1.xpose.msra.mxu0 0.0
    %2186 = vmatprep.subr.mxu0 0.0
    %2187 = vmatpush1.xpose.msra.mxu0 0.0
    %2188 = vmatprep.subr.mxu0 0.0
    %2189 = vmatpush1.xpose.msra.mxu0 0.0
    %2190 = vmatprep.subr.mxu0 0.0
    %2191 = vmatpush1.xpose.msra.mxu0 0.0
    %2192 = vmatprep.subr.mxu0 0.0
    %2193 = vmatpush1.xpose.msra.mxu0 0.0
    %2194 = vmatprep.subr.mxu0 0.0
    %2195 = vmatpush1.xpose.msra.mxu0 0.0
    %2196 = vmatprep.subr.mxu0 0.0
    %2197 = vmatpush1.xpose.msra.mxu0 0.0
    %2198 = vmatprep.subr.mxu0 0.0
    %2199 = vmatpush1.xpose.msra.mxu0 0.0
    %2200 = vmatprep.subr.mxu0 0.0
    %2201 = vmatpush1.xpose.msra.mxu0 0.0
    %2202 = vmatprep.subr.mxu0 0.0
    %2203 = vmatpush1.xpose.msra.mxu0 0.0
    %2204 = vmatprep.subr.mxu0 0.0
    %2205 = vmatpush1.xpose.msra.mxu0 0.0
    %2206 = vmatprep.subr.mxu0 0.0
    %2207 = vmatpush1.xpose.msra.mxu0 0.0
    %2208 = vmatprep.subr.mxu0 0.0
    %2209 = vmatpush1.xpose.msra.mxu0 0.0
    %2210 = vmatprep.subr.mxu0 0.0
    %2211 = vmatpush1.xpose.msra.mxu0 0.0
    %2212 = vmatprep.subr.mxu0 0.0
    %2213 = vmatpush1.xpose.msra.mxu0 0.0
    %2214 = vmatprep.subr.mxu0 0.0
    %2215 = vmatpush1.xpose.msra.mxu0 0.0
    %2216 = vmatprep.subr.mxu0 0.0
    %2217 = vmatpush1.xpose.msra.mxu0 0.0
    %2218 = vmatprep.subr.mxu0 0.0
    %2219 = vmatpush1.xpose.msra.mxu0 0.0
    %2220 = vmatprep.subr.mxu0 0.0
    %2221 = vmatpush1.xpose.msra.mxu0 0.0
    %2222 = vmatprep.subr.mxu0 0.0
    %2223 = vmatpush1.xpose.msra.mxu0 0.0
    %2224 = vmatprep.subr.mxu0 0.0
    %2225 = vmatpush1.xpose.msra.mxu0 0.0
    %2226 = vmatprep.subr.mxu0 0.0
    %2227 = vmatpush1.xpose.msra.mxu0 0.0
    %2228 = vmatprep.subr.mxu0 0.0
    %2229 = vmatpush1.xpose.msra.mxu0 0.0
    %2230 = vmatprep.subr.mxu0 0.0
    %2231 = vmatpush1.xpose.msra.mxu0 0.0
    %2232 = vmatprep.subr.mxu0 0.0
    %2233 = vmatpush1.xpose.msra.mxu0 0.0
    %2234 = vmatprep.subr.mxu0 0.0
    %2235 = vmatpush1.xpose.msra.mxu0 0.0
    %2236 = vmatprep.subr.mxu0 0.0
    %2237 = vmatpush1.xpose.msra.mxu0 0.0
    %2238 = vmatprep.subr.mxu0 0.0
    %2239 = vmatpush1.xpose.msra.mxu0 0.0
    %2240 = vmatprep.subr.mxu0 0.0
    %2241 = vmatpush1.xpose.msra.mxu0 0.0
    %2242 = vmatprep.mubr.f32.mxu0 0.0
    %2243 = vmatmul.mubr.f32.gmra.mrb[0].mxu0 %v2173
    %v2244 = vpop.f32.mrb[0].mxu0
    %v2245 = vadd.f32 0.0, %v2244
    %v2246 = vpop.f32.mrb[0].mxu0
    %2247 = vdwg.mxu0
    %v2249 = vsel %vm1867, %v532, 0
    %v2252 = vsel %vm1867, %v1125, 0
    %2254 = vmatprep.subr.mxu0 0.0
    %2255 = vmatpush1.xpose.msra.mxu0 %v2252
    %2256 = vmatprep.subr.mxu0 0.0
    %2257 = vmatpush1.xpose.msra.mxu0 0.0
    %2258 = vmatprep.subr.mxu0 0.0
    %2259 = vmatpush1.xpose.msra.mxu0 0.0
    %2260 = vmatprep.subr.mxu0 0.0
    %2261 = vmatpush1.xpose.msra.mxu0 0.0
    %2262 = vmatprep.subr.mxu0 0.0
    %2263 = vmatpush1.xpose.msra.mxu0 0.0
    %2264 = vmatprep.subr.mxu0 0.0
    %2265 = vmatpush1.xpose.msra.mxu0 0.0
    %2266 = vmatprep.subr.mxu0 0.0
    %2267 = vmatpush1.xpose.msra.mxu0 0.0
    %2268 = vmatprep.subr.mxu0 0.0
    %2269 = vmatpush1.xpose.msra.mxu0 0.0
    %2270 = vmatprep.subr.mxu0 0.0
    %2271 = vmatpush1.xpose.msra.mxu0 0.0
    %2272 = vmatprep.subr.mxu0 0.0
    %2273 = vmatpush1.xpose.msra.mxu0 0.0
    %2274 = vmatprep.subr.mxu0 0.0
    %2275 = vmatpush1.xpose.msra.mxu0 0.0
    %2276 = vmatprep.subr.mxu0 0.0
    %2277 = vmatpush1.xpose.msra.mxu0 0.0
    %2278 = vmatprep.subr.mxu0 0.0
    %2279 = vmatpush1.xpose.msra.mxu0 0.0
    %2280 = vmatprep.subr.mxu0 0.0
    %2281 = vmatpush1.xpose.msra.mxu0 0.0
    %2282 = vmatprep.subr.mxu0 0.0
    %2283 = vmatpush1.xpose.msra.mxu0 0.0
    %2284 = vmatprep.subr.mxu0 0.0
    %2285 = vmatpush1.xpose.msra.mxu0 0.0
    %2286 = vmatprep.subr.mxu0 0.0
    %2287 = vmatpush1.xpose.msra.mxu0 0.0
    %2288 = vmatprep.subr.mxu0 0.0
    %2289 = vmatpush1.xpose.msra.mxu0 0.0
    %2290 = vmatprep.subr.mxu0 0.0
    %2291 = vmatpush1.xpose.msra.mxu0 0.0
    %2292 = vmatprep.subr.mxu0 0.0
    %2293 = vmatpush1.xpose.msra.mxu0 0.0
    %2294 = vmatprep.subr.mxu0 0.0
    %2295 = vmatpush1.xpose.msra.mxu0 0.0
    %2296 = vmatprep.subr.mxu0 0.0
    %2297 = vmatpush1.xpose.msra.mxu0 0.0
    %2298 = vmatprep.subr.mxu0 0.0
    %2299 = vmatpush1.xpose.msra.mxu0 0.0
    %2300 = vmatprep.subr.mxu0 0.0
    %2301 = vmatpush1.xpose.msra.mxu0 0.0
    %2302 = vmatprep.subr.mxu0 0.0
    %2303 = vmatpush1.xpose.msra.mxu0 0.0
    %2304 = vmatprep.subr.mxu0 0.0
    %2305 = vmatpush1.xpose.msra.mxu0 0.0
    %2306 = vmatprep.subr.mxu0 0.0
    %2307 = vmatpush1.xpose.msra.mxu0 0.0
    %2308 = vmatprep.subr.mxu0 0.0
    %2309 = vmatpush1.xpose.msra.mxu0 0.0
    %2310 = vmatprep.subr.mxu0 0.0
    %2311 = vmatpush1.xpose.msra.mxu0 0.0
    %2312 = vmatprep.subr.mxu0 0.0
    %2313 = vmatpush1.xpose.msra.mxu0 0.0
    %2314 = vmatprep.subr.mxu0 0.0
    %2315 = vmatpush1.xpose.msra.mxu0 0.0
    %2316 = vmatprep.subr.mxu0 0.0
    %2317 = vmatpush1.xpose.msra.mxu0 0.0
    %2318 = vmatprep.mubr.f32.mxu0 0.0
    %2319 = vmatmul.mubr.f32.gmra.mrb[0].mxu0 %v2249
    %v2320 = vpop.f32.mrb[0].mxu0
    %v2321 = vadd.f32 0.0, %v2320
    %v2322 = vpop.f32.mrb[0].mxu0
    %2323 = vdwg.mxu0
    %v2325 = vsel %vm1867, %v605, 0
    %v2328 = vsel %vm1867, %v1198, 0
    %2330 = vmatprep.subr.mxu0 0.0
    %2331 = vmatpush1.xpose.msra.mxu0 %v2328
    %2332 = vmatprep.subr.mxu0 0.0
    %2333 = vmatpush1.xpose.msra.mxu0 0.0
    %2334 = vmatprep.subr.mxu0 0.0
    %2335 = vmatpush1.xpose.msra.mxu0 0.0
    %2336 = vmatprep.subr.mxu0 0.0
    %2337 = vmatpush1.xpose.msra.mxu0 0.0
    %2338 = vmatprep.subr.mxu0 0.0
    %2339 = vmatpush1.xpose.msra.mxu0 0.0
    %2340 = vmatprep.subr.mxu0 0.0
    %2341 = vmatpush1.xpose.msra.mxu0 0.0
    %2342 = vmatprep.subr.mxu0 0.0
    %2343 = vmatpush1.xpose.msra.mxu0 0.0
    %2344 = vmatprep.subr.mxu0 0.0
    %2345 = vmatpush1.xpose.msra.mxu0 0.0
    %2346 = vmatprep.subr.mxu0 0.0
    %2347 = vmatpush1.xpose.msra.mxu0 0.0
    %2348 = vmatprep.subr.mxu0 0.0
    %2349 = vmatpush1.xpose.msra.mxu0 0.0
    %2350 = vmatprep.subr.mxu0 0.0
    %2351 = vmatpush1.xpose.msra.mxu0 0.0
    %2352 = vmatprep.subr.mxu0 0.0
    %2353 = vmatpush1.xpose.msra.mxu0 0.0
    %2354 = vmatprep.subr.mxu0 0.0
    %2355 = vmatpush1.xpose.msra.mxu0 0.0
    %2356 = vmatprep.subr.mxu0 0.0
    %2357 = vmatpush1.xpose.msra.mxu0 0.0
    %2358 = vmatprep.subr.mxu0 0.0
    %2359 = vmatpush1.xpose.msra.mxu0 0.0
    %2360 = vmatprep.subr.mxu0 0.0
    %2361 = vmatpush1.xpose.msra.mxu0 0.0
    %2362 = vmatprep.subr.mxu0 0.0
    %2363 = vmatpush1.xpose.msra.mxu0 0.0
    %2364 = vmatprep.subr.mxu0 0.0
    %2365 = vmatpush1.xpose.msra.mxu0 0.0
    %2366 = vmatprep.subr.mxu0 0.0
    %2367 = vmatpush1.xpose.msra.mxu0 0.0
    %2368 = vmatprep.subr.mxu0 0.0
    %2369 = vmatpush1.xpose.msra.mxu0 0.0
    %2370 = vmatprep.subr.mxu0 0.0
    %2371 = vmatpush1.xpose.msra.mxu0 0.0
    %2372 = vmatprep.subr.mxu0 0.0
    %2373 = vmatpush1.xpose.msra.mxu0 0.0
    %2374 = vmatprep.subr.mxu0 0.0
    %2375 = vmatpush1.xpose.msra.mxu0 0.0
    %2376 = vmatprep.subr.mxu0 0.0
    %2377 = vmatpush1.xpose.msra.mxu0 0.0
    %2378 = vmatprep.subr.mxu0 0.0
    %2379 = vmatpush1.xpose.msra.mxu0 0.0
    %2380 = vmatprep.subr.mxu0 0.0
    %2381 = vmatpush1.xpose.msra.mxu0 0.0
    %2382 = vmatprep.subr.mxu0 0.0
    %2383 = vmatpush1.xpose.msra.mxu0 0.0
    %2384 = vmatprep.subr.mxu0 0.0
    %2385 = vmatpush1.xpose.msra.mxu0 0.0
    %2386 = vmatprep.subr.mxu0 0.0
    %2387 = vmatpush1.xpose.msra.mxu0 0.0
    %2388 = vmatprep.subr.mxu0 0.0
    %2389 = vmatpush1.xpose.msra.mxu0 0.0
    %2390 = vmatprep.subr.mxu0 0.0
    %2391 = vmatpush1.xpose.msra.mxu0 0.0
    %2392 = vmatprep.subr.mxu0 0.0
    %2393 = vmatpush1.xpose.msra.mxu0 0.0
    %2394 = vmatprep.mubr.f32.mxu0 0.0
    %2395 = vmatmul.mubr.f32.gmra.mrb[0].mxu0 %v2325
    %v2396 = vpop.f32.mrb[0].mxu0
    %v2397 = vadd.f32 0.0, %v2396
    %v2398 = vpop.f32.mrb[0].mxu0
    %2399 = vdwg.mxu0
    %v2401 = vsel %vm1867, %v678, 0
    %v2404 = vsel %vm1867, %v1271, 0
    %2406 = vmatprep.subr.mxu0 0.0
    %2407 = vmatpush1.xpose.msra.mxu0 %v2404
    %2408 = vmatprep.subr.mxu0 0.0
    %2409 = vmatpush1.xpose.msra.mxu0 0.0
    %2410 = vmatprep.subr.mxu0 0.0
    %2411 = vmatpush1.xpose.msra.mxu0 0.0
    %2412 = vmatprep.subr.mxu0 0.0
    %2413 = vmatpush1.xpose.msra.mxu0 0.0
    %2414 = vmatprep.subr.mxu0 0.0
    %2415 = vmatpush1.xpose.msra.mxu0 0.0
    %2416 = vmatprep.subr.mxu0 0.0
    %2417 = vmatpush1.xpose.msra.mxu0 0.0
    %2418 = vmatprep.subr.mxu0 0.0
    %2419 = vmatpush1.xpose.msra.mxu0 0.0
    %2420 = vmatprep.subr.mxu0 0.0
    %2421 = vmatpush1.xpose.msra.mxu0 0.0
    %2422 = vmatprep.subr.mxu0 0.0
    %2423 = vmatpush1.xpose.msra.mxu0 0.0
    %2424 = vmatprep.subr.mxu0 0.0
    %2425 = vmatpush1.xpose.msra.mxu0 0.0
    %2426 = vmatprep.subr.mxu0 0.0
    %2427 = vmatpush1.xpose.msra.mxu0 0.0
    %2428 = vmatprep.subr.mxu0 0.0
    %2429 = vmatpush1.xpose.msra.mxu0 0.0
    %2430 = vmatprep.subr.mxu0 0.0
    %2431 = vmatpush1.xpose.msra.mxu0 0.0
    %2432 = vmatprep.subr.mxu0 0.0
    %2433 = vmatpush1.xpose.msra.mxu0 0.0
    %2434 = vmatprep.subr.mxu0 0.0
    %2435 = vmatpush1.xpose.msra.mxu0 0.0
    %2436 = vmatprep.subr.mxu0 0.0
    %2437 = vmatpush1.xpose.msra.mxu0 0.0
    %2438 = vmatprep.subr.mxu0 0.0
    %2439 = vmatpush1.xpose.msra.mxu0 0.0
    %2440 = vmatprep.subr.mxu0 0.0
    %2441 = vmatpush1.xpose.msra.mxu0 0.0
    %2442 = vmatprep.subr.mxu0 0.0
    %2443 = vmatpush1.xpose.msra.mxu0 0.0
    %2444 = vmatprep.subr.mxu0 0.0
    %2445 = vmatpush1.xpose.msra.mxu0 0.0
    %2446 = vmatprep.subr.mxu0 0.0
    %2447 = vmatpush1.xpose.msra.mxu0 0.0
    %2448 = vmatprep.subr.mxu0 0.0
    %2449 = vmatpush1.xpose.msra.mxu0 0.0
    %2450 = vmatprep.subr.mxu0 0.0
    %2451 = vmatpush1.xpose.msra.mxu0 0.0
    %2452 = vmatprep.subr.mxu0 0.0
    %2453 = vmatpush1.xpose.msra.mxu0 0.0
    %2454 = vmatprep.subr.mxu0 0.0
    %2455 = vmatpush1.xpose.msra.mxu0 0.0
    %2456 = vmatprep.subr.mxu0 0.0
    %2457 = vmatpush1.xpose.msra.mxu0 0.0
    %2458 = vmatprep.subr.mxu0 0.0
    %2459 = vmatpush1.xpose.msra.mxu0 0.0
    %2460 = vmatprep.subr.mxu0 0.0
    %2461 = vmatpush1.xpose.msra.mxu0 0.0
    %2462 = vmatprep.subr.mxu0 0.0
    %2463 = vmatpush1.xpose.msra.mxu0 0.0
    %2464 = vmatprep.subr.mxu0 0.0
    %2465 = vmatpush1.xpose.msra.mxu0 0.0
    %2466 = vmatprep.subr.mxu0 0.0
    %2467 = vmatpush1.xpose.msra.mxu0 0.0
    %2468 = vmatprep.subr.mxu0 0.0
    %2469 = vmatpush1.xpose.msra.mxu0 0.0
    %2470 = vmatprep.mubr.f32.mxu0 0.0
    %2471 = vmatmul.mubr.f32.gmra.mrb[0].mxu0 %v2401
    %v2472 = vpop.f32.mrb[0].mxu0
    %v2473 = vadd.f32 0.0, %v2472
    %v2474 = vpop.f32.mrb[0].mxu0
    %2475 = vdwg.mxu0
    %v2476 = vmul.f32 %v1941, 0.17677669
    %v2477 = vmul.f32 %v2017, 0.17677669
    %v2478 = vmul.f32 %v2093, 0.17677669
    %v2479 = vmul.f32 %v2169, 0.17677669
    %v2480 = vmul.f32 %v2245, 0.17677669
    %v2481 = vmul.f32 %v2321, 0.17677669
    %v2482 = vmul.f32 %v2397, 0.17677669
    %v2483 = vmul.f32 %v2473, 0.17677669
    %v2484 = vsel %vm96, %v2476, -inf
    %2485 = vmax.xlane.f32.xlu0 %v2484
    %v2486 = vpop.xlane.xlu0 %2485
    %v2487 = vsel %vm96, %v2477, -inf
    %2488 = vmax.xlane.f32.xlu0 %v2487
    %v2489 = vpop.xlane.xlu0 %2488
    %v2490 = vsel %vm96, %v2478, -inf
    %2491 = vmax.xlane.f32.xlu0 %v2490
    %v2492 = vpop.xlane.xlu0 %2491
    %v2493 = vsel %vm96, %v2479, -inf
    %2494 = vmax.xlane.f32.xlu0 %v2493
    %v2495 = vpop.xlane.xlu0 %2494
    %v2496 = vsel %vm96, %v2480, -inf
    %2497 = vmax.xlane.f32.xlu0 %v2496
    %v2498 = vpop.xlane.xlu0 %2497
    %v2499 = vsel %vm96, %v2481, -inf
    %2500 = vmax.xlane.f32.xlu0 %v2499
    %v2501 = vpop.xlane.xlu0 %2500
    %v2502 = vsel %vm96, %v2482, -inf
    %2503 = vmax.xlane.f32.xlu0 %v2502
    %v2504 = vpop.xlane.xlu0 %2503
    %v2505 = vsel %vm96, %v2483, -inf
    %2506 = vmax.xlane.f32.xlu0 %v2505
    %v2507 = vpop.xlane.xlu0 %2506
    %v2508 = vsub.f32 %v2476, %v2486
    %v2509 = vsub.f32 %v2477, %v2489
    %v2510 = vsub.f32 %v2478, %v2492
    %v2511 = vsub.f32 %v2479, %v2495
    %v2512 = vsub.f32 %v2480, %v2498
    %v2513 = vsub.f32 %v2481, %v2501
    %v2514 = vsub.f32 %v2482, %v2504
    %v2515 = vsub.f32 %v2483, %v2507
    %v2516 = vmul.f32 %v2508, 1.442695
    %v2517 = vpow.pop %v2516
    %v2518 = vmul.f32 %v2509, 1.442695
    %v2519 = vpow.pop %v2518
    %v2520 = vmul.f32 %v2510, 1.442695
    %v2521 = vpow.pop %v2520
    %v2522 = vmul.f32 %v2511, 1.442695
    %v2523 = vpow.pop %v2522
    %v2524 = vmul.f32 %v2512, 1.442695
    %v2525 = vpow.pop %v2524
    %v2526 = vmul.f32 %v2513, 1.442695
    %v2527 = vpow.pop %v2526
    %v2528 = vmul.f32 %v2514, 1.442695
    %v2529 = vpow.pop %v2528
    %v2530 = vmul.f32 %v2515, 1.442695
    %v2531 = vpow.pop %v2530
    %v2532 = vsel %vm96, %v2517, 0.0
    %2533 = vadd.xlane.f32.xlu0 %v2532
    %v2534 = vpop.xlane.xlu0 %2533
    %v2535 = vsel %vm96, %v2519, 0.0
    %2536 = vadd.xlane.f32.xlu0 %v2535
    %v2537 = vpop.xlane.xlu0 %2536
    %v2538 = vsel %vm96, %v2521, 0.0
    %2539 = vadd.xlane.f32.xlu0 %v2538
    %v2540 = vpop.xlane.xlu0 %2539
    %v2541 = vsel %vm96, %v2523, 0.0
    %2542 = vadd.xlane.f32.xlu0 %v2541
    %v2543 = vpop.xlane.xlu0 %2542
    %v2544 = vsel %vm96, %v2525, 0.0
    %2545 = vadd.xlane.f32.xlu0 %v2544
    %v2546 = vpop.xlane.xlu0 %2545
    %v2547 = vsel %vm96, %v2527, 0.0
    %2548 = vadd.xlane.f32.xlu0 %v2547
    %v2549 = vpop.xlane.xlu0 %2548
    %v2550 = vsel %vm96, %v2529, 0.0
    %2551 = vadd.xlane.f32.xlu0 %v2550
    %v2552 = vpop.xlane.xlu0 %2551
    %v2553 = vsel %vm96, %v2531, 0.0
    %2554 = vadd.xlane.f32.xlu0 %v2553
    %v2555 = vpop.xlane.xlu0 %2554
    %v2556 = vrcp.pop %v2534
    %v2557 = vrcp.pop %v2537
    %v2558 = vrcp.pop %v2540
    %v2559 = vrcp.pop %v2543
    %v2560 = vrcp.pop %v2546
    %v2561 = vrcp.pop %v2549
    %v2562 = vrcp.pop %v2552
    %v2563 = vrcp.pop %v2555
    %v2564 = vmul.f32 %v2517, %v2556
    %v2565 = vmul.f32 %v2519, %v2557
    %v2566 = vmul.f32 %v2521, %v2558
    %v2567 = vmul.f32 %v2523, %v2559
    %v2568 = vmul.f32 %v2525, %v2560
    %v2569 = vmul.f32 %v2527, %v2561
    %v2570 = vmul.f32 %v2529, %v2562
    %v2571 = vmul.f32 %v2531, %v2563
    %v2573 = vsel %vm96, %v2564, 0
    %2575 = vmatprep.subr.mxu0 0.0
    %2576 = vmatpush1.msra.mxu0 %v1353
    %2577 = vmatprep.subr.mxu0 0.0
    %2578 = vmatpush1.msra.mxu0 0.0
    %2579 = vmatprep.subr.mxu0 0.0
    %2580 = vmatpush1.msra.mxu0 0.0
    %2581 = vmatprep.subr.mxu0 0.0
    %2582 = vmatpush1.msra.mxu0 0.0
    %2583 = vmatprep.subr.mxu0 0.0
    %2584 = vmatpush1.msra.mxu0 0.0
    %2585 = vmatprep.subr.mxu0 0.0
    %2586 = vmatpush1.msra.mxu0 0.0
    %2587 = vmatprep.subr.mxu0 0.0
    %2588 = vmatpush1.msra.mxu0 0.0
    %2589 = vmatprep.subr.mxu0 0.0
    %2590 = vmatpush1.msra.mxu0 0.0
    %2591 = vmatprep.subr.mxu0 0.0
    %2592 = vmatpush1.msra.mxu0 0.0
    %2593 = vmatprep.subr.mxu0 0.0
    %2594 = vmatpush1.msra.mxu0 0.0
    %2595 = vmatprep.subr.mxu0 0.0
    %2596 = vmatpush1.msra.mxu0 0.0
    %2597 = vmatprep.subr.mxu0 0.0
    %2598 = vmatpush1.msra.mxu0 0.0
    %2599 = vmatprep.subr.mxu0 0.0
    %2600 = vmatpush1.msra.mxu0 0.0
    %2601 = vmatprep.subr.mxu0 0.0
    %2602 = vmatpush1.msra.mxu0 0.0
    %2603 = vmatprep.subr.mxu0 0.0
    %2604 = vmatpush1.msra.mxu0 0.0
    %2605 = vmatprep.subr.mxu0 0.0
    %2606 = vmatpush1.msra.mxu0 0.0
    %2607 = vmatprep.subr.mxu0 0.0
    %2608 = vmatpush1.msra.mxu0 0.0
    %2609 = vmatprep.subr.mxu0 0.0
    %2610 = vmatpush1.msra.mxu0 0.0
    %2611 = vmatprep.subr.mxu0 0.0
    %2612 = vmatpush1.msra.mxu0 0.0
    %2613 = vmatprep.subr.mxu0 0.0
    %2614 = vmatpush1.msra.mxu0 0.0
    %2615 = vmatprep.subr.mxu0 0.0
    %2616 = vmatpush1.msra.mxu0 0.0
    %2617 = vmatprep.subr.mxu0 0.0
    %2618 = vmatpush1.msra.mxu0 0.0
    %2619 = vmatprep.subr.mxu0 0.0
    %2620 = vmatpush1.msra.mxu0 0.0
    %2621 = vmatprep.subr.mxu0 0.0
    %2622 = vmatpush1.msra.mxu0 0.0
    %2623 = vmatprep.subr.mxu0 0.0
    %2624 = vmatpush1.msra.mxu0 0.0
    %2625 = vmatprep.subr.mxu0 0.0
    %2626 = vmatpush1.msra.mxu0 0.0
    %2627 = vmatprep.subr.mxu0 0.0
    %2628 = vmatpush1.msra.mxu0 0.0
    %2629 = vmatprep.subr.mxu0 0.0
    %2630 = vmatpush1.msra.mxu0 0.0
    %2631 = vmatprep.subr.mxu0 0.0
    %2632 = vmatpush1.msra.mxu0 0.0
    %2633 = vmatprep.subr.mxu0 0.0
    %2634 = vmatpush1.msra.mxu0 0.0
    %2635 = vmatprep.subr.mxu0 0.0
    %2636 = vmatpush1.msra.mxu0 0.0
    %2637 = vmatprep.subr.mxu0 0.0
    %2638 = vmatpush1.msra.mxu0 0.0
    %2639 = vmatprep.mubr.f32.mxu0 0.0
    %2640 = vmatmul.mubr.f32.gmra.mrb[0].mxu0 %v2573
    %v2641 = vpop.f32.mrb[0].mxu0
    %v2642 = vadd.f32 0.0, %v2641
    %v2643 = vpop.f32.mrb[0].mxu0
    %2644 = vdwg.mxu0
    %v2646 = vsel %vm96, %v2565, 0
    %2648 = vmatprep.subr.mxu0 0.0
    %2649 = vmatpush1.msra.mxu0 %v1426
    %2650 = vmatprep.subr.mxu0 0.0
    %2651 = vmatpush1.msra.mxu0 0.0
    %2652 = vmatprep.subr.mxu0 0.0
    %2653 = vmatpush1.msra.mxu0 0.0
    %2654 = vmatprep.subr.mxu0 0.0
    %2655 = vmatpush1.msra.mxu0 0.0
    %2656 = vmatprep.subr.mxu0 0.0
    %2657 = vmatpush1.msra.mxu0 0.0
    %2658 = vmatprep.subr.mxu0 0.0
    %2659 = vmatpush1.msra.mxu0 0.0
    %2660 = vmatprep.subr.mxu0 0.0
    %2661 = vmatpush1.msra.mxu0 0.0
    %2662 = vmatprep.subr.mxu0 0.0
    %2663 = vmatpush1.msra.mxu0 0.0
    %2664 = vmatprep.subr.mxu0 0.0
    %2665 = vmatpush1.msra.mxu0 0.0
    %2666 = vmatprep.subr.mxu0 0.0
    %2667 = vmatpush1.msra.mxu0 0.0
    %2668 = vmatprep.subr.mxu0 0.0
    %2669 = vmatpush1.msra.mxu0 0.0
    %2670 = vmatprep.subr.mxu0 0.0
    %2671 = vmatpush1.msra.mxu0 0.0
    %2672 = vmatprep.subr.mxu0 0.0
    %2673 = vmatpush1.msra.mxu0 0.0
    %2674 = vmatprep.subr.mxu0 0.0
    %2675 = vmatpush1.msra.mxu0 0.0
    %2676 = vmatprep.subr.mxu0 0.0
    %2677 = vmatpush1.msra.mxu0 0.0
    %2678 = vmatprep.subr.mxu0 0.0
    %2679 = vmatpush1.msra.mxu0 0.0
    %2680 = vmatprep.subr.mxu0 0.0
    %2681 = vmatpush1.msra.mxu0 0.0
    %2682 = vmatprep.subr.mxu0 0.0
    %2683 = vmatpush1.msra.mxu0 0.0
    %2684 = vmatprep.subr.mxu0 0.0
    %2685 = vmatpush1.msra.mxu0 0.0
    %2686 = vmatprep.subr.mxu0 0.0
    %2687 = vmatpush1.msra.mxu0 0.0
    %2688 = vmatprep.subr.mxu0 0.0
    %2689 = vmatpush1.msra.mxu0 0.0
    %2690 = vmatprep.subr.mxu0 0.0
    %2691 = vmatpush1.msra.mxu0 0.0
    %2692 = vmatprep.subr.mxu0 0.0
    %2693 = vmatpush1.msra.mxu0 0.0
    %2694 = vmatprep.subr.mxu0 0.0
    %2695 = vmatpush1.msra.mxu0 0.0
    %2696 = vmatprep.subr.mxu0 0.0
    %2697 = vmatpush1.msra.mxu0 0.0
    %2698 = vmatprep.subr.mxu0 0.0
    %2699 = vmatpush1.msra.mxu0 0.0
    %2700 = vmatprep.subr.mxu0 0.0
    %2701 = vmatpush1.msra.mxu0 0.0
    %2702 = vmatprep.subr.mxu0 0.0
    %2703 = vmatpush1.msra.mxu0 0.0
    %2704 = vmatprep.subr.mxu0 0.0
    %2705 = vmatpush1.msra.mxu0 0.0
    %2706 = vmatprep.subr.mxu0 0.0
    %2707 = vmatpush1.msra.mxu0 0.0
    %2708 = vmatprep.subr.mxu0 0.0
    %2709 = vmatpush1.msra.mxu0 0.0
    %2710 = vmatprep.subr.mxu0 0.0
    %2711 = vmatpush1.msra.mxu0 0.0
    %2712 = vmatprep.mubr.f32.mxu0 0.0
    %2713 = vmatmul.mubr.f32.gmra.mrb[0].mxu0 %v2646
    %v2714 = vpop.f32.mrb[0].mxu0
    %v2715 = vadd.f32 0.0, %v2714
    %v2716 = vpop.f32.mrb[0].mxu0
    %2717 = vdwg.mxu0
    %v2719 = vsel %vm96, %v2566, 0
    %2721 = vmatprep.subr.mxu0 0.0
    %2722 = vmatpush1.msra.mxu0 %v1499
    %2723 = vmatprep.subr.mxu0 0.0
    %2724 = vmatpush1.msra.mxu0 0.0
    %2725 = vmatprep.subr.mxu0 0.0
    %2726 = vmatpush1.msra.mxu0 0.0
    %2727 = vmatprep.subr.mxu0 0.0
    %2728 = vmatpush1.msra.mxu0 0.0
    %2729 = vmatprep.subr.mxu0 0.0
    %2730 = vmatpush1.msra.mxu0 0.0
    %2731 = vmatprep.subr.mxu0 0.0
    %2732 = vmatpush1.msra.mxu0 0.0
    %2733 = vmatprep.subr.mxu0 0.0
    %2734 = vmatpush1.msra.mxu0 0.0
    %2735 = vmatprep.subr.mxu0 0.0
    %2736 = vmatpush1.msra.mxu0 0.0
    %2737 = vmatprep.subr.mxu0 0.0
    %2738 = vmatpush1.msra.mxu0 0.0
    %2739 = vmatprep.subr.mxu0 0.0
    %2740 = vmatpush1.msra.mxu0 0.0
    %2741 = vmatprep.subr.mxu0 0.0
    %2742 = vmatpush1.msra.mxu0 0.0
    %2743 = vmatprep.subr.mxu0 0.0
    %2744 = vmatpush1.msra.mxu0 0.0
    %2745 = vmatprep.subr.mxu0 0.0
    %2746 = vmatpush1.msra.mxu0 0.0
    %2747 = vmatprep.subr.mxu0 0.0
    %2748 = vmatpush1.msra.mxu0 0.0
    %2749 = vmatprep.subr.mxu0 0.0
    %2750 = vmatpush1.msra.mxu0 0.0
    %2751 = vmatprep.subr.mxu0 0.0
    %2752 = vmatpush1.msra.mxu0 0.0
    %2753 = vmatprep.subr.mxu0 0.0
    %2754 = vmatpush1.msra.mxu0 0.0
    %2755 = vmatprep.subr.mxu0 0.0
    %2756 = vmatpush1.msra.mxu0 0.0
    %2757 = vmatprep.subr.mxu0 0.0
    %2758 = vmatpush1.msra.mxu0 0.0
    %2759 = vmatprep.subr.mxu0 0.0
    %2760 = vmatpush1.msra.mxu0 0.0
    %2761 = vmatprep.subr.mxu0 0.0
    %2762 = vmatpush1.msra.mxu0 0.0
    %2763 = vmatprep.subr.mxu0 0.0
    %2764 = vmatpush1.msra.mxu0 0.0
    %2765 = vmatprep.subr.mxu0 0.0
    %2766 = vmatpush1.msra.mxu0 0.0
    %2767 = vmatprep.subr.mxu0 0.0
    %2768 = vmatpush1.msra.mxu0 0.0
    %2769 = vmatprep.subr.mxu0 0.0
    %2770 = vmatpush1.msra.mxu0 0.0
    %2771 = vmatprep.subr.mxu0 0.0
    %2772 = vmatpush1.msra.mxu0 0.0
    %2773 = vmatprep.subr.mxu0 0.0
    %2774 = vmatpush1.msra.mxu0 0.0
    %2775 = vmatprep.subr.mxu0 0.0
    %2776 = vmatpush1.msra.mxu0 0.0
    %2777 = vmatprep.subr.mxu0 0.0
    %2778 = vmatpush1.msra.mxu0 0.0
    %2779 = vmatprep.subr.mxu0 0.0
    %2780 = vmatpush1.msra.mxu0 0.0
    %2781 = vmatprep.subr.mxu0 0.0
    %2782 = vmatpush1.msra.mxu0 0.0
    %2783 = vmatprep.subr.mxu0 0.0
    %2784 = vmatpush1.msra.mxu0 0.0
    %2785 = vmatprep.mubr.f32.mxu0 0.0
    %2786 = vmatmul.mubr.f32.gmra.mrb[0].mxu0 %v2719
    %v2787 = vpop.f32.mrb[0].mxu0
    %v2788 = vadd.f32 0.0, %v2787
    %v2789 = vpop.f32.mrb[0].mxu0
    %2790 = vdwg.mxu0
    %v2792 = vsel %vm96, %v2567, 0
    %2794 = vmatprep.subr.mxu0 0.0
    %2795 = vmatpush1.msra.mxu0 %v1572
    %2796 = vmatprep.subr.mxu0 0.0
    %2797 = vmatpush1.msra.mxu0 0.0
    %2798 = vmatprep.subr.mxu0 0.0
    %2799 = vmatpush1.msra.mxu0 0.0
    %2800 = vmatprep.subr.mxu0 0.0
    %2801 = vmatpush1.msra.mxu0 0.0
    %2802 = vmatprep.subr.mxu0 0.0
    %2803 = vmatpush1.msra.mxu0 0.0
    %2804 = vmatprep.subr.mxu0 0.0
    %2805 = vmatpush1.msra.mxu0 0.0
    %2806 = vmatprep.subr.mxu0 0.0
    %2807 = vmatpush1.msra.mxu0 0.0
    %2808 = vmatprep.subr.mxu0 0.0
    %2809 = vmatpush1.msra.mxu0 0.0
    %2810 = vmatprep.subr.mxu0 0.0
    %2811 = vmatpush1.msra.mxu0 0.0
    %2812 = vmatprep.subr.mxu0 0.0
    %2813 = vmatpush1.msra.mxu0 0.0
    %2814 = vmatprep.subr.mxu0 0.0
    %2815 = vmatpush1.msra.mxu0 0.0
    %2816 = vmatprep.subr.mxu0 0.0
    %2817 = vmatpush1.msra.mxu0 0.0
    %2818 = vmatprep.subr.mxu0 0.0
    %2819 = vmatpush1.msra.mxu0 0.0
    %2820 = vmatprep.subr.mxu0 0.0
    %2821 = vmatpush1.msra.mxu0 0.0
    %2822 = vmatprep.subr.mxu0 0.0
    %2823 = vmatpush1.msra.mxu0 0.0
    %2824 = vmatprep.subr.mxu0 0.0
    %2825 = vmatpush1.msra.mxu0 0.0
    %2826 = vmatprep.subr.mxu0 0.0
    %2827 = vmatpush1.msra.mxu0 0.0
    %2828 = vmatprep.subr.mxu0 0.0
    %2829 = vmatpush1.msra.mxu0 0.0
    %2830 = vmatprep.subr.mxu0 0.0
    %2831 = vmatpush1.msra.mxu0 0.0
    %2832 = vmatprep.subr.mxu0 0.0
    %2833 = vmatpush1.msra.mxu0 0.0
    %2834 = vmatprep.subr.mxu0 0.0
    %2835 = vmatpush1.msra.mxu0 0.0
    %2836 = vmatprep.subr.mxu0 0.0
    %2837 = vmatpush1.msra.mxu0 0.0
    %2838 = vmatprep.subr.mxu0 0.0
    %2839 = vmatpush1.msra.mxu0 0.0
    %2840 = vmatprep.subr.mxu0 0.0
    %2841 = vmatpush1.msra.mxu0 0.0
    %2842 = vmatprep.subr.mxu0 0.0
    %2843 = vmatpush1.msra.mxu0 0.0
    %2844 = vmatprep.subr.mxu0 0.0
    %2845 = vmatpush1.msra.mxu0 0.0
    %2846 = vmatprep.subr.mxu0 0.0
    %2847 = vmatpush1.msra.mxu0 0.0
    %2848 = vmatprep.subr.mxu0 0.0
    %2849 = vmatpush1.msra.mxu0 0.0
    %2850 = vmatprep.subr.mxu0 0.0
    %2851 = vmatpush1.msra.mxu0 0.0
    %2852 = vmatprep.subr.mxu0 0.0
    %2853 = vmatpush1.msra.mxu0 0.0
    %2854 = vmatprep.subr.mxu0 0.0
    %2855 = vmatpush1.msra.mxu0 0.0
    %2856 = vmatprep.subr.mxu0 0.0
    %2857 = vmatpush1.msra.mxu0 0.0
    %2858 = vmatprep.mubr.f32.mxu0 0.0
    %2859 = vmatmul.mubr.f32.gmra.mrb[0].mxu0 %v2792
    %v2860 = vpop.f32.mrb[0].mxu0
    %v2861 = vadd.f32 0.0, %v2860
    %v2862 = vpop.f32.mrb[0].mxu0
    %2863 = vdwg.mxu0
    %v2865 = vsel %vm96, %v2568, 0
    %2867 = vmatprep.subr.mxu0 0.0
    %2868 = vmatpush1.msra.mxu0 %v1645
    %2869 = vmatprep.subr.mxu0 0.0
    %2870 = vmatpush1.msra.mxu0 0.0
    %2871 = vmatprep.subr.mxu0 0.0
    %2872 = vmatpush1.msra.mxu0 0.0
    %2873 = vmatprep.subr.mxu0 0.0
    %2874 = vmatpush1.msra.mxu0 0.0
    %2875 = vmatprep.subr.mxu0 0.0
    %2876 = vmatpush1.msra.mxu0 0.0
    %2877 = vmatprep.subr.mxu0 0.0
    %2878 = vmatpush1.msra.mxu0 0.0
    %2879 = vmatprep.subr.mxu0 0.0
    %2880 = vmatpush1.msra.mxu0 0.0
    %2881 = vmatprep.subr.mxu0 0.0
    %2882 = vmatpush1.msra.mxu0 0.0
    %2883 = vmatprep.subr.mxu0 0.0
    %2884 = vmatpush1.msra.mxu0 0.0
    %2885 = vmatprep.subr.mxu0 0.0
    %2886 = vmatpush1.msra.mxu0 0.0
    %2887 = vmatprep.subr.mxu0 0.0
    %2888 = vmatpush1.msra.mxu0 0.0
    %2889 = vmatprep.subr.mxu0 0.0
    %2890 = vmatpush1.msra.mxu0 0.0
    %2891 = vmatprep.subr.mxu0 0.0
    %2892 = vmatpush1.msra.mxu0 0.0
    %2893 = vmatprep.subr.mxu0 0.0
    %2894 = vmatpush1.msra.mxu0 0.0
    %2895 = vmatprep.subr.mxu0 0.0
    %2896 = vmatpush1.msra.mxu0 0.0
    %2897 = vmatprep.subr.mxu0 0.0
    %2898 = vmatpush1.msra.mxu0 0.0
    %2899 = vmatprep.subr.mxu0 0.0
    %2900 = vmatpush1.msra.mxu0 0.0
    %2901 = vmatprep.subr.mxu0 0.0
    %2902 = vmatpush1.msra.mxu0 0.0
    %2903 = vmatprep.subr.mxu0 0.0
    %2904 = vmatpush1.msra.mxu0 0.0
    %2905 = vmatprep.subr.mxu0 0.0
    %2906 = vmatpush1.msra.mxu0 0.0
    %2907 = vmatprep.subr.mxu0 0.0
    %2908 = vmatpush1.msra.mxu0 0.0
    %2909 = vmatprep.subr.mxu0 0.0
    %2910 = vmatpush1.msra.mxu0 0.0
    %2911 = vmatprep.subr.mxu0 0.0
    %2912 = vmatpush1.msra.mxu0 0.0
    %2913 = vmatprep.subr.mxu0 0.0
    %2914 = vmatpush1.msra.mxu0 0.0
    %2915 = vmatprep.subr.mxu0 0.0
    %2916 = vmatpush1.msra.mxu0 0.0
    %2917 = vmatprep.subr.mxu0 0.0
    %2918 = vmatpush1.msra.mxu0 0.0
    %2919 = vmatprep.subr.mxu0 0.0
    %2920 = vmatpush1.msra.mxu0 0.0
    %2921 = vmatprep.subr.mxu0 0.0
    %2922 = vmatpush1.msra.mxu0 0.0
    %2923 = vmatprep.subr.mxu0 0.0
    %2924 = vmatpush1.msra.mxu0 0.0
    %2925 = vmatprep.subr.mxu0 0.0
    %2926 = vmatpush1.msra.mxu0 0.0
    %2927 = vmatprep.subr.mxu0 0.0
    %2928 = vmatpush1.msra.mxu0 0.0
    %2929 = vmatprep.subr.mxu0 0.0
    %2930 = vmatpush1.msra.mxu0 0.0
    %2931 = vmatprep.mubr.f32.mxu0 0.0
    %2932 = vmatmul.mubr.f32.gmra.mrb[0].mxu0 %v2865
    %v2933 = vpop.f32.mrb[0].mxu0
    %v2934 = vadd.f32 0.0, %v2933
    %v2935 = vpop.f32.mrb[0].mxu0
    %2936 = vdwg.mxu0
    %v2938 = vsel %vm96, %v2569, 0
    %2940 = vmatprep.subr.mxu0 0.0
    %2941 = vmatpush1.msra.mxu0 %v1718
    %2942 = vmatprep.subr.mxu0 0.0
    %2943 = vmatpush1.msra.mxu0 0.0
    %2944 = vmatprep.subr.mxu0 0.0
    %2945 = vmatpush1.msra.mxu0 0.0
    %2946 = vmatprep.subr.mxu0 0.0
    %2947 = vmatpush1.msra.mxu0 0.0
    %2948 = vmatprep.subr.mxu0 0.0
    %2949 = vmatpush1.msra.mxu0 0.0
    %2950 = vmatprep.subr.mxu0 0.0
    %2951 = vmatpush1.msra.mxu0 0.0
    %2952 = vmatprep.subr.mxu0 0.0
    %2953 = vmatpush1.msra.mxu0 0.0
    %2954 = vmatprep.subr.mxu0 0.0
    %2955 = vmatpush1.msra.mxu0 0.0
    %2956 = vmatprep.subr.mxu0 0.0
    %2957 = vmatpush1.msra.mxu0 0.0
    %2958 = vmatprep.subr.mxu0 0.0
    %2959 = vmatpush1.msra.mxu0 0.0
    %2960 = vmatprep.subr.mxu0 0.0
    %2961 = vmatpush1.msra.mxu0 0.0
    %2962 = vmatprep.subr.mxu0 0.0
    %2963 = vmatpush1.msra.mxu0 0.0
    %2964 = vmatprep.subr.mxu0 0.0
    %2965 = vmatpush1.msra.mxu0 0.0
    %2966 = vmatprep.subr.mxu0 0.0
    %2967 = vmatpush1.msra.mxu0 0.0
    %2968 = vmatprep.subr.mxu0 0.0
    %2969 = vmatpush1.msra.mxu0 0.0
    %2970 = vmatprep.subr.mxu0 0.0
    %2971 = vmatpush1.msra.mxu0 0.0
    %2972 = vmatprep.subr.mxu0 0.0
    %2973 = vmatpush1.msra.mxu0 0.0
    %2974 = vmatprep.subr.mxu0 0.0
    %2975 = vmatpush1.msra.mxu0 0.0
    %2976 = vmatprep.subr.mxu0 0.0
    %2977 = vmatpush1.msra.mxu0 0.0
    %2978 = vmatprep.subr.mxu0 0.0
    %2979 = vmatpush1.msra.mxu0 0.0
    %2980 = vmatprep.subr.mxu0 0.0
    %2981 = vmatpush1.msra.mxu0 0.0
    %2982 = vmatprep.subr.mxu0 0.0
    %2983 = vmatpush1.msra.mxu0 0.0
    %2984 = vmatprep.subr.mxu0 0.0
    %2985 = vmatpush1.msra.mxu0 0.0
    %2986 = vmatprep.subr.mxu0 0.0
    %2987 = vmatpush1.msra.mxu0 0.0
    %2988 = vmatprep.subr.mxu0 0.0
    %2989 = vmatpush1.msra.mxu0 0.0
    %2990 = vmatprep.subr.mxu0 0.0
    %2991 = vmatpush1.msra.mxu0 0.0
    %2992 = vmatprep.subr.mxu0 0.0
    %2993 = vmatpush1.msra.mxu0 0.0
    %2994 = vmatprep.subr.mxu0 0.0
    %2995 = vmatpush1.msra.mxu0 0.0
    %2996 = vmatprep.subr.mxu0 0.0
    %2997 = vmatpush1.msra.mxu0 0.0
    %2998 = vmatprep.subr.mxu0 0.0
    %2999 = vmatpush1.msra.mxu0 0.0
    %3000 = vmatprep.subr.mxu0 0.0
    %3001 = vmatpush1.msra.mxu0 0.0
    %3002 = vmatprep.subr.mxu0 0.0
    %3003 = vmatpush1.msra.mxu0 0.0
    %3004 = vmatprep.mubr.f32.mxu0 0.0
    %3005 = vmatmul.mubr.f32.gmra.mrb[0].mxu0 %v2938
    %v3006 = vpop.f32.mrb[0].mxu0
    %v3007 = vadd.f32 0.0, %v3006
    %v3008 = vpop.f32.mrb[0].mxu0
    %3009 = vdwg.mxu0
    %v3011 = vsel %vm96, %v2570, 0
    %3013 = vmatprep.subr.mxu0 0.0
    %3014 = vmatpush1.msra.mxu0 %v1791
    %3015 = vmatprep.subr.mxu0 0.0
    %3016 = vmatpush1.msra.mxu0 0.0
    %3017 = vmatprep.subr.mxu0 0.0
    %3018 = vmatpush1.msra.mxu0 0.0
    %3019 = vmatprep.subr.mxu0 0.0
    %3020 = vmatpush1.msra.mxu0 0.0
    %3021 = vmatprep.subr.mxu0 0.0
    %3022 = vmatpush1.msra.mxu0 0.0
    %3023 = vmatprep.subr.mxu0 0.0
    %3024 = vmatpush1.msra.mxu0 0.0
    %3025 = vmatprep.subr.mxu0 0.0
    %3026 = vmatpush1.msra.mxu0 0.0
    %3027 = vmatprep.subr.mxu0 0.0
    %3028 = vmatpush1.msra.mxu0 0.0
    %3029 = vmatprep.subr.mxu0 0.0
    %3030 = vmatpush1.msra.mxu0 0.0
    %3031 = vmatprep.subr.mxu0 0.0
    %3032 = vmatpush1.msra.mxu0 0.0
    %3033 = vmatprep.subr.mxu0 0.0
    %3034 = vmatpush1.msra.mxu0 0.0
    %3035 = vmatprep.subr.mxu0 0.0
    %3036 = vmatpush1.msra.mxu0 0.0
    %3037 = vmatprep.subr.mxu0 0.0
    %3038 = vmatpush1.msra.mxu0 0.0
    %3039 = vmatprep.subr.mxu0 0.0
    %3040 = vmatpush1.msra.mxu0 0.0
    %3041 = vmatprep.subr.mxu0 0.0
    %3042 = vmatpush1.msra.mxu0 0.0
    %3043 = vmatprep.subr.mxu0 0.0
    %3044 = vmatpush1.msra.mxu0 0.0
    %3045 = vmatprep.subr.mxu0 0.0
    %3046 = vmatpush1.msra.mxu0 0.0
    %3047 = vmatprep.subr.mxu0 0.0
    %3048 = vmatpush1.msra.mxu0 0.0
    %3049 = vmatprep.subr.mxu0 0.0
    %3050 = vmatpush1.msra.mxu0 0.0
    %3051 = vmatprep.subr.mxu0 0.0
    %3052 = vmatpush1.msra.mxu0 0.0
    %3053 = vmatprep.subr.mxu0 0.0
    %3054 = vmatpush1.msra.mxu0 0.0
    %3055 = vmatprep.subr.mxu0 0.0
    %3056 = vmatpush1.msra.mxu0 0.0
    %3057 = vmatprep.subr.mxu0 0.0
    %3058 = vmatpush1.msra.mxu0 0.0
    %3059 = vmatprep.subr.mxu0 0.0
    %3060 = vmatpush1.msra.mxu0 0.0
    %3061 = vmatprep.subr.mxu0 0.0
    %3062 = vmatpush1.msra.mxu0 0.0
    %3063 = vmatprep.subr.mxu0 0.0
    %3064 = vmatpush1.msra.mxu0 0.0
    %3065 = vmatprep.subr.mxu0 0.0
    %3066 = vmatpush1.msra.mxu0 0.0
    %3067 = vmatprep.subr.mxu0 0.0
    %3068 = vmatpush1.msra.mxu0 0.0
    %3069 = vmatprep.subr.mxu0 0.0
    %3070 = vmatpush1.msra.mxu0 0.0
    %3071 = vmatprep.subr.mxu0 0.0
    %3072 = vmatpush1.msra.mxu0 0.0
    %3073 = vmatprep.subr.mxu0 0.0
    %3074 = vmatpush1.msra.mxu0 0.0
    %3075 = vmatprep.subr.mxu0 0.0
    %3076 = vmatpush1.msra.mxu0 0.0
    %3077 = vmatprep.mubr.f32.mxu0 0.0
    %3078 = vmatmul.mubr.f32.gmra.mrb[0].mxu0 %v3011
    %v3079 = vpop.f32.mrb[0].mxu0
    %v3080 = vadd.f32 0.0, %v3079
    %v3081 = vpop.f32.mrb[0].mxu0
    %3082 = vdwg.mxu0
    %v3084 = vsel %vm96, %v2571, 0
    %3086 = vmatprep.subr.mxu0 0.0
    %3087 = vmatpush1.msra.mxu0 %v1864
    %3088 = vmatprep.subr.mxu0 0.0
    %3089 = vmatpush1.msra.mxu0 0.0
    %3090 = vmatprep.subr.mxu0 0.0
    %3091 = vmatpush1.msra.mxu0 0.0
    %3092 = vmatprep.subr.mxu0 0.0
    %3093 = vmatpush1.msra.mxu0 0.0
    %3094 = vmatprep.subr.mxu0 0.0
    %3095 = vmatpush1.msra.mxu0 0.0
    %3096 = vmatprep.subr.mxu0 0.0
    %3097 = vmatpush1.msra.mxu0 0.0
    %3098 = vmatprep.subr.mxu0 0.0
    %3099 = vmatpush1.msra.mxu0 0.0
    %3100 = vmatprep.subr.mxu0 0.0
    %3101 = vmatpush1.msra.mxu0 0.0
    %3102 = vmatprep.subr.mxu0 0.0
    %3103 = vmatpush1.msra.mxu0 0.0
    %3104 = vmatprep.subr.mxu0 0.0
    %3105 = vmatpush1.msra.mxu0 0.0
    %3106 = vmatprep.subr.mxu0 0.0
    %3107 = vmatpush1.msra.mxu0 0.0
    %3108 = vmatprep.subr.mxu0 0.0
    %3109 = vmatpush1.msra.mxu0 0.0
    %3110 = vmatprep.subr.mxu0 0.0
    %3111 = vmatpush1.msra.mxu0 0.0
    %3112 = vmatprep.subr.mxu0 0.0
    %3113 = vmatpush1.msra.mxu0 0.0
    %3114 = vmatprep.subr.mxu0 0.0
    %3115 = vmatpush1.msra.mxu0 0.0
    %3116 = vmatprep.subr.mxu0 0.0
    %3117 = vmatpush1.msra.mxu0 0.0
    %3118 = vmatprep.subr.mxu0 0.0
    %3119 = vmatpush1.msra.mxu0 0.0
    %3120 = vmatprep.subr.mxu0 0.0
    %3121 = vmatpush1.msra.mxu0 0.0
    %3122 = vmatprep.subr.mxu0 0.0
    %3123 = vmatpush1.msra.mxu0 0.0
    %3124 = vmatprep.subr.mxu0 0.0
    %3125 = vmatpush1.msra.mxu0 0.0
    %3126 = vmatprep.subr.mxu0 0.0
    %3127 = vmatpush1.msra.mxu0 0.0
    %3128 = vmatprep.subr.mxu0 0.0
    %3129 = vmatpush1.msra.mxu0 0.0
    %3130 = vmatprep.subr.mxu0 0.0
    %3131 = vmatpush1.msra.mxu0 0.0
    %3132 = vmatprep.subr.mxu0 0.0
    %3133 = vmatpush1.msra.mxu0 0.0
    %3134 = vmatprep.subr.mxu0 0.0
    %3135 = vmatpush1.msra.mxu0 0.0
    %3136 = vmatprep.subr.mxu0 0.0
    %3137 = vmatpush1.msra.mxu0 0.0
    %3138 = vmatprep.subr.mxu0 0.0
    %3139 = vmatpush1.msra.mxu0 0.0
    %3140 = vmatprep.subr.mxu0 0.0
    %3141 = vmatpush1.msra.mxu0 0.0
    %3142 = vmatprep.subr.mxu0 0.0
    %3143 = vmatpush1.msra.mxu0 0.0
    %3144 = vmatprep.subr.mxu0 0.0
    %3145 = vmatpush1.msra.mxu0 0.0
    %3146 = vmatprep.subr.mxu0 0.0
    %3147 = vmatpush1.msra.mxu0 0.0
    %3148 = vmatprep.subr.mxu0 0.0
    %3149 = vmatpush1.msra.mxu0 0.0
    %3150 = vmatprep.mubr.f32.mxu0 0.0
    %3151 = vmatmul.mubr.f32.gmra.mrb[0].mxu0 %v3084
    %v3152 = vpop.f32.mrb[0].mxu0
    %v3153 = vadd.f32 0.0, %v3152
    %v3154 = vpop.f32.mrb[0].mxu0
    %3155 = vdwg.mxu0
    %v3156 = vadd.f32 %v2642, %v2715
    %v3157 = vadd.f32 %v3156, %v2788
    %v3158 = vadd.f32 %v3157, %v2861
    %v3159 = vadd.f32 %v2934, %v3007
    %v3160 = vadd.f32 %v3159, %v3080
    %v3161 = vadd.f32 %v3160, %v3153
    %v3162 = vld [vmem:[%s4 + $0x80] sm:$0x3f]
    %v3163 = vlaneseq
    %v3164 = vshrl.u32 %v3163, 7
    %v3165 = vsub.s32 0, %v3164
    %v3166 = vrot.slane %v3162, %v3165
    %v3167 = vadd.f32 %v3158, %v3166
    %v3168 = vadd.f32 %v3161, %v3166
    %v3169 = vld [vmem:[#allocation5] sm:$0xff]
    %v3170 = vld [vmem:[#allocation5 + $0x8] sm:$0xff]
    %v3171 = vadd.f32 %v3167, %v3169
    %v3172 = vadd.f32 %v3168, %v3170
    %v3173 = vsel %vm1867, %v3171, 0.0
    %3174 = vadd.xlane.f32.xlu0 %v3173
    %v3175 = vpop.xlane.xlu0 %3174
    %v3176 = vsel %vm1867, %v3172, 0.0
    %3177 = vadd.xlane.f32.xlu0 %v3176
    %v3178 = vpop.xlane.xlu0 %3177
    %v3179 = vrcp.pop 32.0
    %v3180 = vmul.f32 %v3175, %v3179
    %v3181 = vmul.f32 %v3178, %v3179
    %v3182 = vsub.f32 %v3171, %v3180
    %v3183 = vsub.f32 %v3172, %v3181
    %v3184 = vmul.f32 %v3182, %v3182
    %v3185 = vmul.f32 %v3183, %v3183
    %v3186 = vsel %vm1867, %v3184, 0.0
    %3187 = vadd.xlane.f32.xlu0 %v3186
    %v3188 = vpop.xlane.xlu0 %3187
    %v3189 = vsel %vm1867, %v3185, 0.0
    %3190 = vadd.xlane.f32.xlu0 %v3189
    %v3191 = vpop.xlane.xlu0 %3190
    %v3192 = vmul.f32 %v3188, %v3179
    %v3193 = vmul.f32 %v3191, %v3179
    %v3194 = vadd.f32 %v3192, 1e-05
    %v3195 = vadd.f32 %v3193, 1e-05
    %v3196 = vrsqrt.pop %v3194
    %v3197 = vrsqrt.pop %v3195
    %v3198 = vmul.f32 %v3182, %v3196
    %v3199 = vmul.f32 %v3183, %v3197
    %v3200 = vlaneseq
    %v3201 = vshrl.u32 %v3200, 7
    %v3202 = vsub.s32 1, %v3201
    %v3203 = vrot.slane %v3162, %v3202
    %v3204 = vmul.f32 %v3198, %v3203
    %v3205 = vmul.f32 %v3199, %v3203
    %v3206 = vlaneseq
    %v3207 = vshrl.u32 %v3206, 7
    %v3208 = vsub.s32 2, %v3207
    %v3209 = vrot.slane %v3162, %v3208
    %v3210 = vadd.f32 %v3204, %v3209
    %v3211 = vadd.f32 %v3205, %v3209
    %v3212 = vld [vmem:[#allocation7] sm:$0xff]
    %v3213 = vld [vmem:[#allocation7 + $0x8] sm:$0xff]
    %v3214 = vld [vmem:[#allocation7 + $0x10] sm:$0xff]
    %v3215 = vld [vmem:[#allocation7 + $0x18] sm:$0xff]
    %v3216 = vld [vmem:[#allocation7 + $0x20] sm:$0x1]
    %v3217 = vlaneseq
    %v3218 = vshrl.u32 %v3217, 7
    %v3219 = vsub.s32 0, %v3218
    %v3220 = vrot.slane %v3216, %v3219
    %v3222 = vsel %vm1867, %v3210, 0
    %v3225 = vsel %vm1867, %v3211, 0
    %3227 = vmatprep.subr.mxu0 0.0
    %3228 = vmatpush1.msra.mxu0 %v3212
    %3229 = vmatprep.subr.mxu0 0.0
    %3230 = vmatpush1.msra.mxu0 %v3213
    %3231 = vmatprep.subr.mxu0 0.0
    %3232 = vmatpush1.msra.mxu0 %v3214
    %3233 = vmatprep.subr.mxu0 0.0
    %3234 = vmatpush1.msra.mxu0 %v3215
    %3235 = vmatprep.subr.mxu0 0.0
    %3236 = vmatpush1.msra.mxu0 0.0
    %3237 = vmatprep.subr.mxu0 0.0
    %3238 = vmatpush1.msra.mxu0 0.0
    %3239 = vmatprep.subr.mxu0 0.0
    %3240 = vmatpush1.msra.mxu0 0.0
    %3241 = vmatprep.subr.mxu0 0.0
    %3242 = vmatpush1.msra.mxu0 0.0
    %3243 = vmatprep.subr.mxu0 0.0
    %3244 = vmatpush1.msra.mxu0 0.0
    %3245 = vmatprep.subr.mxu0 0.0
    %3246 = vmatpush1.msra.mxu0 0.0
    %3247 = vmatprep.subr.mxu0 0.0
    %3248 = vmatpush1.msra.mxu0 0.0
    %3249 = vmatprep.subr.mxu0 0.0
    %3250 = vmatpush1.msra.mxu0 0.0
    %3251 = vmatprep.subr.mxu0 0.0
    %3252 = vmatpush1.msra.mxu0 0.0
    %3253 = vmatprep.subr.mxu0 0.0
    %3254 = vmatpush1.msra.mxu0 0.0
    %3255 = vmatprep.subr.mxu0 0.0
    %3256 = vmatpush1.msra.mxu0 0.0
    %3257 = vmatprep.subr.mxu0 0.0
    %3258 = vmatpush1.msra.mxu0 0.0
    %3259 = vmatprep.subr.mxu0 0.0
    %3260 = vmatpush1.msra.mxu0 0.0
    %3261 = vmatprep.subr.mxu0 0.0
    %3262 = vmatpush1.msra.mxu0 0.0
    %3263 = vmatprep.subr.mxu0 0.0
    %3264 = vmatpush1.msra.mxu0 0.0
    %3265 = vmatprep.subr.mxu0 0.0
    %3266 = vmatpush1.msra.mxu0 0.0
    %3267 = vmatprep.subr.mxu0 0.0
    %3268 = vmatpush1.msra.mxu0 0.0
    %3269 = vmatprep.subr.mxu0 0.0
    %3270 = vmatpush1.msra.mxu0 0.0
    %3271 = vmatprep.subr.mxu0 0.0
    %3272 = vmatpush1.msra.mxu0 0.0
    %3273 = vmatprep.subr.mxu0 0.0
    %3274 = vmatpush1.msra.mxu0 0.0
    %3275 = vmatprep.subr.mxu0 0.0
    %3276 = vmatpush1.msra.mxu0 0.0
    %3277 = vmatprep.subr.mxu0 0.0
    %3278 = vmatpush1.msra.mxu0 0.0
    %3279 = vmatprep.subr.mxu0 0.0
    %3280 = vmatpush1.msra.mxu0 0.0
    %3281 = vmatprep.subr.mxu0 0.0
    %3282 = vmatpush1.msra.mxu0 0.0
    %3283 = vmatprep.subr.mxu0 0.0
    %3284 = vmatpush1.msra.mxu0 0.0
    %3285 = vmatprep.subr.mxu0 0.0
    %3286 = vmatpush1.msra.mxu0 0.0
    %3287 = vmatprep.subr.mxu0 0.0
    %3288 = vmatpush1.msra.mxu0 0.0
    %3289 = vmatprep.subr.mxu0 0.0
    %3290 = vmatpush1.msra.mxu0 0.0
    %3291 = vmatprep.mubr.f32.mxu0 0.0
    %3292 = vmatmul.mubr.f32.gmra.mrb[0].mxu0 %v3222
    %v3293 = vpop.f32.mrb[0].mxu0
    %v3294 = vadd.f32 %v3220, %v3293
    %v3295 = vpop.f32.mrb[0].mxu0
    %3296 = vmatprep.mubr.f32.mxu0 0.0
    %3297 = vmatmul.mubr.f32.gmra.mrb[0].mxu0 %v3225
    %v3298 = vpop.f32.mrb[0].mxu0
    %v3299 = vadd.f32 %v3220, %v3298
    %v3300 = vpop.f32.mrb[0].mxu0
    %3301 = vdwg.mxu0
    %v3302 = vmax.f32 %v3294, 0.0
    %v3303 = vmax.f32 %v3299, 0.0
    %v3304 = vld [vmem:[%s4] sm:$0xff]
    %v3305 = vld [vmem:[%s4 + $0x8] sm:$0xff]
    %v3306 = vld [vmem:[%s4 + $0x10] sm:$0xff]
    %v3307 = vld [vmem:[%s4 + $0x18] sm:$0xff]
    %v3308 = vld [vmem:[%s4 + $0x20] sm:$0xff]
    %v3309 = vld [vmem:[%s4 + $0x28] sm:$0xff]
    %v3310 = vld [vmem:[%s4 + $0x30] sm:$0xff]
    %v3311 = vld [vmem:[%s4 + $0x38] sm:$0xff]
    %v3312 = vld [vmem:[%s4 + $0x40] sm:$0xff]
    %v3313 = vld [vmem:[%s4 + $0x48] sm:$0xff]
    %v3314 = vld [vmem:[%s4 + $0x50] sm:$0xff]
    %v3315 = vld [vmem:[%s4 + $0x58] sm:$0xff]
    %v3316 = vld [vmem:[%s4 + $0x60] sm:$0xff]
    %v3317 = vld [vmem:[%s4 + $0x68] sm:$0xff]
    %v3318 = vld [vmem:[%s4 + $0x70] sm:$0xff]
    %v3319 = vld [vmem:[%s4 + $0x78] sm:$0xff]
    %v3320 = vlaneseq
    %v3321 = vshrl.u32 %v3320, 7
    %v3322 = vsub.s32 3, %v3321
    %v3323 = vrot.slane %v3162, %v3322
    %3324 = vmatprep.subr.mxu0 0.0
    %3325 = vmatpush1.msra.mxu0 %v3304
    %3326 = vmatprep.subr.mxu0 0.0
    %3327 = vmatpush1.msra.mxu0 %v3305
    %3328 = vmatprep.subr.mxu0 0.0
    %3329 = vmatpush1.msra.mxu0 %v3306
    %3330 = vmatprep.subr.mxu0 0.0
    %3331 = vmatpush1.msra.mxu0 %v3307
    %3332 = vmatprep.subr.mxu0 0.0
    %3333 = vmatpush1.msra.mxu0 %v3308
    %3334 = vmatprep.subr.mxu0 0.0
    %3335 = vmatpush1.msra.mxu0 %v3309
    %3336 = vmatprep.subr.mxu0 0.0
    %3337 = vmatpush1.msra.mxu0 %v3310
    %3338 = vmatprep.subr.mxu0 0.0
    %3339 = vmatpush1.msra.mxu0 %v3311
    %3340 = vmatprep.subr.mxu0 0.0
    %3341 = vmatpush1.msra.mxu0 %v3312
    %3342 = vmatprep.subr.mxu0 0.0
    %3343 = vmatpush1.msra.mxu0 %v3313
    %3344 = vmatprep.subr.mxu0 0.0
    %3345 = vmatpush1.msra.mxu0 %v3314
    %3346 = vmatprep.subr.mxu0 0.0
    %3347 = vmatpush1.msra.mxu0 %v3315
    %3348 = vmatprep.subr.mxu0 0.0
    %3349 = vmatpush1.msra.mxu0 %v3316
    %3350 = vmatprep.subr.mxu0 0.0
    %3351 = vmatpush1.msra.mxu0 %v3317
    %3352 = vmatprep.subr.mxu0 0.0
    %3353 = vmatpush1.msra.mxu0 %v3318
    %3354 = vmatprep.subr.mxu0 0.0
    %3355 = vmatpush1.msra.mxu0 %v3319
    %3356 = vmatprep.subr.mxu0 0.0
    %3357 = vmatpush1.msra.mxu0 0.0
    %3358 = vmatprep.subr.mxu0 0.0
    %3359 = vmatpush1.msra.mxu0 0.0
    %3360 = vmatprep.subr.mxu0 0.0
    %3361 = vmatpush1.msra.mxu0 0.0
    %3362 = vmatprep.subr.mxu0 0.0
    %3363 = vmatpush1.msra.mxu0 0.0
    %3364 = vmatprep.subr.mxu0 0.0
    %3365 = vmatpush1.msra.mxu0 0.0
    %3366 = vmatprep.subr.mxu0 0.0
    %3367 = vmatpush1.msra.mxu0 0.0
    %3368 = vmatprep.subr.mxu0 0.0
    %3369 = vmatpush1.msra.mxu0 0.0
    %3370 = vmatprep.subr.mxu0 0.0
    %3371 = vmatpush1.msra.mxu0 0.0
    %3372 = vmatprep.subr.mxu0 0.0
    %3373 = vmatpush1.msra.mxu0 0.0
    %3374 = vmatprep.subr.mxu0 0.0
    %3375 = vmatpush1.msra.mxu0 0.0
    %3376 = vmatprep.subr.mxu0 0.0
    %3377 = vmatpush1.msra.mxu0 0.0
    %3378 = vmatprep.subr.mxu0 0.0
    %3379 = vmatpush1.msra.mxu0 0.0
    %3380 = vmatprep.subr.mxu0 0.0
    %3381 = vmatpush1.msra.mxu0 0.0
    %3382 = vmatprep.subr.mxu0 0.0
    %3383 = vmatpush1.msra.mxu0 0.0
    %3384 = vmatprep.subr.mxu0 0.0
    %3385 = vmatpush1.msra.mxu0 0.0
    %3386 = vmatprep.subr.mxu0 0.0
    %3387 = vmatpush1.msra.mxu0 0.0
    %3388 = vmatprep.mubr.f32.mxu0 0.0
    %3389 = vmatmul.mubr.f32.gmra.mrb[0].mxu0 %v3302
    %v3390 = vpop.f32.mrb[0].mxu0
    %v3391 = vadd.f32 %v3323, %v3390
    %v3392 = vpop.f32.mrb[0].mxu0
    %3393 = vmatprep.mubr.f32.mxu0 0.0
    %3394 = vmatmul.mubr.f32.gmra.mrb[0].mxu0 %v3303
    %v3395 = vpop.f32.mrb[0].mxu0
    %v3396 = vadd.f32 %v3323, %v3395
    %v3397 = vpop.f32.mrb[0].mxu0
    %3398 = vdwg.mxu0
    %v3399 = vadd.f32 %v3391, %v3210
    %v3400 = vadd.f32 %v3396, %v3211
    %v3401 = vsel %vm1867, %v3399, 0.0
    %3402 = vadd.xlane.f32.xlu0 %v3401
    %v3403 = vpop.xlane.xlu0 %3402
    %v3404 = vsel %vm1867, %v3400, 0.0
    %3405 = vadd.xlane.f32.xlu0 %v3404
    %v3406 = vpop.xlane.xlu0 %3405
    %v3407 = vmul.f32 %v3403, %v3179
    %v3408 = vmul.f32 %v3406, %v3179
    %v3409 = vsub.f32 %v3399, %v3407
    %v3410 = vsub.f32 %v3400, %v3408
    %v3411 = vmul.f32 %v3409, %v3409
    %v3412 = vmul.f32 %v3410, %v3410
    %v3413 = vsel %vm1867, %v3411, 0.0
    %3414 = vadd.xlane.f32.xlu0 %v3413
    %v3415 = vpop.xlane.xlu0 %3414
    %v3416 = vsel %vm1867, %v3412, 0.0
    %3417 = vadd.xlane.f32.xlu0 %v3416
    %v3418 = vpop.xlane.xlu0 %3417
    %v3419 = vmul.f32 %v3415, %v3179
    %v3420 = vmul.f32 %v3418, %v3179
    %v3421 = vadd.f32 %v3419, 1e-05
    %v3422 = vadd.f32 %v3420, 1e-05
    %v3423 = vrsqrt.pop %v3421
    %v3424 = vrsqrt.pop %v3422
    %v3425 = vmul.f32 %v3409, %v3423
    %v3426 = vmul.f32 %v3410, %v3424
    %v3427 = vlaneseq
    %v3428 = vshrl.u32 %v3427, 7
    %v3429 = vsub.s32 4, %v3428
    %v3430 = vrot.slane %v3162, %v3429
    %v3431 = vmul.f32 %v3425, %v3430
    %v3432 = vmul.f32 %v3426, %v3430
    %v3433 = vlaneseq
    %v3434 = vshrl.u32 %v3433, 7
    %v3435 = vsub.s32 5, %v3434
    %v3436 = vrot.slane %v3162, %v3435
    %v3437 = vadd.f32 %v3431, %v3436
    %v3438 = vadd.f32 %v3432, %v3436
    %3439 = vst.msk [vmem:[#allocation8] sm:$0xff] %vm1867, %v3437
    %3440 = vst.msk [vmem:[#allocation8 + $0x8] sm:$0xff] %vm1867, %v3438
    // Predicated region
    $region34: #{tpu_custom_call.1} parent=1 // pred_check
      _
    $region35: #{tpu_custom_call.1} parent=1 // pred_check_branch
      %3442 = sbr.rel (0) target = $region37
    $region36: #{tpu_custom_call.1} parent=1 // pred_region
      %s3444 = ssub.s32 256, 256
      %3445 = vsyncadd [#allocation4], %s3444
      %s3446 = sshll.u32 [#allocation8], 4
      %s3447 = int_to_ptr.vmem [resolvable:$true] %s3446
      %3452 = dma.vmem_to_hbm [thread:$0]  %s3447, 256, %s5, [#allocation4], 128, 128, 8
    $region37: #{tpu_custom_call.1} parent=1 // pred_fallthru
      _
    // Predicated region
    $region38: #{tpu_custom_call.1} parent=1 // pred_check
      _
    $region39: #{tpu_custom_call.1} parent=1 // pred_check_branch
      %3454 = sbr.rel (0) target = $region41
    $region40: #{tpu_custom_call.1} parent=1 // pred_region
      %3455 = dma.done [#allocation4], 256
    $region41: #{tpu_custom_call.1} parent=1 // pred_fallthru
      _
    %3456 = vsyncpa [#allocation3], 1
    %3457 = vsyncpa [#allocation6], 1
    %3458 = vsyncpa [#allocation4], 1

</llo_original>
